<compile_context>
chip_gen: v6e
topology: v6e:2x2x1
jax: 0.10.0
libtpu: 0.0.40
codegen_flags: <defaults>
</compile_context>

<pallas_src>
import functools

import jax
import jax.numpy as jnp
from jax.experimental import pallas as pl
from jax.experimental.pallas import tpu as pltpu


def _basic_block_kernel(NB, C, H, W,
                        x_ref,            # (1, NB, C*H*W) f32, lane-dense slab
                        w1_ref, b1_ref,   # SMEM: (9*C*C,) and (C,) f32 (BN1 folded)
                        w2_ref, b2_ref,   # SMEM: (9*C*C,) and (C,) f32 (BN2 folded)
                        o_ref):           # (1, NB, C*H*W) f32
    HW = H * W

    # Column position (w) of every flattened-lane element; used to zero values that a
    # +/-1 column shift would otherwise pull across a row boundary. Hoisted once.
    wpos = jax.lax.broadcasted_iota(jnp.int32, (1, HW), 1) % W
    ok_right = wpos < (W - 1)   # source column w+1 is inside the image
    ok_left = wpos > 0          # source column w-1 is inside the image

    def shift_map(v, dh, dw):
        """v: (NB, HW), one flattened HxW map per row. Returns the zero-padded shifted
        map: out[h, w] = v[h+dh, w+dw] (0 outside the image). Pure lane slice + concat
        on the resident value -- no padded scratch, no (8,128)-crossing ref slices."""
        s = dh * W + dw
        if s == 0:
            out = v
        elif s > 0:
            out = jnp.concatenate(
                [v[:, s:], jnp.zeros((NB, s), v.dtype)], axis=-1)
        else:
            out = jnp.concatenate(
                [jnp.zeros((NB, -s), v.dtype), v[:, :s]], axis=-1)
        if dw == 1:
            out = jnp.where(ok_right, out, 0.0)
        elif dw == -1:
            out = jnp.where(ok_left, out, 0.0)
        return out

    def conv3x3_bn(chans, w_ref, b_ref):
        """3x3 conv + folded BN as a 36-term per-output-channel VPU tap mix.
        chans: list of C maps (NB, HW). Weights/bias are SMEM scalars."""
        acc = [jnp.zeros((NB, HW), jnp.float32) + b_ref[co] for co in range(C)]
        for ci in range(C):
            for kh in range(3):
                for kw in range(3):
                    sh = shift_map(chans[ci], kh - 1, kw - 1)
                    base = ((kh * 3 + kw) * C + ci) * C
                    for co in range(C):
                        acc[co] = acc[co] + w_ref[base + co] * sh
        return acc

    x = x_ref[0]                                                   # (NB, C*HW) f32
    # Per-channel maps are lane-aligned slices (offsets are multiples of 256 lanes).
    chans_in = [x[:, ci * HW:(ci + 1) * HW] for ci in range(C)]

    # ---- conv1 + BN1 (folded) + dropout (identity in eval) + ReLU ----
    mid = [jnp.maximum(v, 0.0) for v in conv3x3_bn(chans_in, w1_ref, b1_ref)]

    # ---- conv2 + BN2 (folded) + dropout (identity) + identity residual + ReLU ----
    out = conv3x3_bn(mid, w2_ref, b2_ref)
    for co in range(C):
        # Lane-aligned, fully dense 256-wide stores (no masked vst.msk).
        o_ref[0, :, co * HW:(co + 1) * HW] = jnp.maximum(
            out[co] + chans_in[co], 0.0)


def _fold_bn(w_hwio, bn, eps):
    """Fold eval-mode BatchNorm into the conv: BN(conv(x, W)) == conv(x, W*scale) + bias."""
    scale = bn["gamma"] * jax.lax.rsqrt(bn["var"] + eps)           # (Cout,)
    bias = bn["beta"] - bn["mean"] * scale                          # (Cout,)
    w_eff = (w_hwio.astype(jnp.float32) * scale[None, None, None, :]).reshape(-1)
    return w_eff.astype(jnp.float32), bias.astype(jnp.float32)


def _pick_batch_block(N):
    """Whole batch in one grid step on single-TensorCore chips (v5e/v6e); keep a
    parallel batch axis on v7x so both TensorCores get work."""
    try:
        kind = jax.devices()[0].device_kind.lower()
    except Exception:
        kind = ""
    if ("v7" in kind or "7x" in kind) and N > 1:
        for nb in range(N // 2, 0, -1):
            if N % nb == 0:
                return nb
    return N


def basic_block_forward(x_nchw, w1_hwio, bn1, w2_hwio, bn2, eps=1e-5,
                        batch_block=None):
    """x_nchw: (N,C,H,W) f32 (native PyTorch layout). w*_hwio: (3,3,Cin,Cout).
    bn*: dict(gamma, beta, mean, var). Returns (N,C,H,W) f32."""
    x_nchw = x_nchw.astype(jnp.float32)
    N, C, H, W = x_nchw.shape
    assert w1_hwio.shape == (3, 3, C, C) and w2_hwio.shape == (3, 3, C, C), \
        "identity-shortcut BasicBlock requires in_channel == out_channel"

    w1f, b1f = _fold_bn(w1_hwio, bn1, eps)
    w2f, b2f = _fold_bn(w2_hwio, bn2, eps)

    NB = batch_block if batch_block is not None else _pick_batch_block(N)
    assert N % NB == 0
    G = N // NB
    CHW = C * H * W

    # Free (metadata-only) reshape: NCHW row-major == (G, NB, C*H*W) row-major.
    xf = x_nchw.reshape(G, NB, CHW)

    kernel = functools.partial(_basic_block_kernel, NB, C, H, W)

    # Advisory cost estimate: two 3x3 convs.
    flops = 2 * 2 * (N * H * W) * 9 * C * C
    bytes_accessed = (2 * N * CHW * 4
                      + (w1f.size + w2f.size + b1f.size + b2f.size) * 4)
    cost = pl.CostEstimate(flops=flops, transcendentals=0,
                           bytes_accessed=bytes_accessed)

    smem = pl.BlockSpec(memory_space=pltpu.MemorySpace.SMEM)
    out = pl.pallas_call(
        kernel,
        out_shape=jax.ShapeDtypeStruct((G, NB, CHW), jnp.float32),
        grid_spec=pltpu.PrefetchScalarGridSpec(
            num_scalar_prefetch=0,
            grid=(G,),
            in_specs=[
                pl.BlockSpec((1, NB, CHW), lambda g: (g, 0, 0)),
                smem, smem, smem, smem,
            ],
            out_specs=pl.BlockSpec((1, NB, CHW), lambda g: (g, 0, 0)),
        ),
        compiler_params=pltpu.CompilerParams(
            dimension_semantics=("parallel",)),
        cost_estimate=cost,
    )(xf, w1f, b1f, w2f, b2f)
    return out.reshape(N, C, H, W)


def _reference_forward(x_nchw, w1_hwio, bn1, w2_hwio, bn2, eps=1e-5):
    """Plain-JAX f32 reference (same eval-mode semantics) for validation."""
    dn = ("NCHW", "HWIO", "NCHW")

    def conv(x, w):
        return jax.lax.conv_general_dilated(
            x, w, window_strides=(1, 1), padding="SAME",
            dimension_numbers=dn,
            precision=jax.lax.Precision.HIGHEST,
            preferred_element_type=jnp.float32)

    def bn(x, p):
        scale = p["gamma"] * jax.lax.rsqrt(p["var"] + eps)
        bias = p["beta"] - p["mean"] * scale
        return x * scale.reshape(1, -1, 1, 1) + bias.reshape(1, -1, 1, 1)

    out = jax.nn.relu(bn(conv(x_nchw, w1_hwio), bn1))
    out = bn(conv(out, w2_hwio), bn2)
    return jax.nn.relu(out + x_nchw)


if __name__ == "__main__":
    # Small shapes consistent with the module: batch=2, channels=4, spatial=16.
    N, C, Hs, Ws = 2, 4, 16, 16

    key = jax.random.PRNGKey(0)
    kx, kw1, kw2, kg1, kb1, km1, kv1, kg2, kb2, km2, kv2 = jax.random.split(key, 11)

    # Native PyTorch layout (NCHW) goes straight into the kernel -- no transpose/pad.
    x_nchw = jax.random.normal(kx, (N, C, Hs, Ws), dtype=jnp.float32)

    # Conv weights: PyTorch OIHW -> HWIO.
    w1_oihw = 0.1 * jax.random.normal(kw1, (C, C, 3, 3), dtype=jnp.float32)
    w2_oihw = 0.1 * jax.random.normal(kw2, (C, C, 3, 3), dtype=jnp.float32)
    w1_hwio = jnp.transpose(w1_oihw, (2, 3, 1, 0))
    w2_hwio = jnp.transpose(w2_oihw, (2, 3, 1, 0))

    # BatchNorm parameters (affine + running stats), deterministic & nontrivial.
    bn1 = dict(gamma=1.0 + 0.1 * jax.random.normal(kg1, (C,), jnp.float32),
               beta=0.1 * jax.random.normal(kb1, (C,), jnp.float32),
               mean=0.1 * jax.random.normal(km1, (C,), jnp.float32),
               var=1.0 + 0.1 * jax.random.uniform(kv1, (C,), jnp.float32))
    bn2 = dict(gamma=1.0 + 0.1 * jax.random.normal(kg2, (C,), jnp.float32),
               beta=0.1 * jax.random.normal(kb2, (C,), jnp.float32),
               mean=0.1 * jax.random.normal(km2, (C,), jnp.float32),
               var=1.0 + 0.1 * jax.random.uniform(kv2, (C,), jnp.float32))

    out = basic_block_forward(x_nchw, w1_hwio, bn1, w2_hwio, bn2)
    out = jax.block_until_ready(out)
    assert out.shape == (N, C, Hs, Ws)

    # Full-f32 kernel -> tight check against the f32 module semantics.
    ref = _reference_forward(x_nchw, w1_hwio, bn1, w2_hwio, bn2)
    err = float(jnp.max(jnp.abs(out - ref)))
    assert err < 2e-4, f"mismatch vs f32 reference (max abs err {err:.3e})"

    print("KERNEL_OK")
</pallas_src>

<mosaic_0001>
module attributes {stable_mosaic.version = 11 : i64} {
  func.func @_basic_block_kernel(%arg0: i32, %arg1: memref<1x2x1024xf32, #tpu.memory_space<vmem>>, %arg2: memref<144xf32, #tpu.memory_space<smem>>, %arg3: memref<4xf32, #tpu.memory_space<smem>>, %arg4: memref<144xf32, #tpu.memory_space<smem>>, %arg5: memref<4xf32, #tpu.memory_space<smem>>, %arg6: memref<1x2x1024xf32, #tpu.memory_space<vmem>>) attributes {dimension_semantics = [#tpu.dimension_semantics<parallel>], iteration_bounds = array<i64: 1>, scalar_prefetch = 0 : i64, scratch_operands = 0 : i64, tpu.core_type = #tpu.core_type<tc>, window_params = [{transform_indices = @transform_0, window_bounds = array<i64: 1, 2, 1024>}, {transform_indices = @transform_1, window_bounds = array<i64: 144>}, {transform_indices = @transform_2, window_bounds = array<i64: 4>}, {transform_indices = @transform_3, window_bounds = array<i64: 144>}, {transform_indices = @transform_4, window_bounds = array<i64: 4>}, {transform_indices = @transform_5, window_bounds = array<i64: 1, 2, 1024>}]} {
    %0 = tpu.iota {dimensions = array<i32: 1>} : vector<1x256xi32>
    %c16_i32 = arith.constant 16 : i32
    %c0_i32 = arith.constant 0 : i32
    %1 = arith.cmpi eq, %c16_i32, %c0_i32 : i32
    %c1_i32 = arith.constant 1 : i32
    %2 = arith.select %1, %c1_i32, %c16_i32 : i32
    %3 = vector.broadcast %2 : i32 to vector<1x256xi32>
    %4 = arith.remsi %0, %3 : vector<1x256xi32>
    %c0_i32_0 = arith.constant 0 : i32
    %5 = vector.broadcast %c0_i32_0 : i32 to vector<1x256xi32>
    %6 = arith.cmpi ne, %4, %5 : vector<1x256xi32>
    %c0_i32_1 = arith.constant 0 : i32
    %7 = vector.broadcast %c0_i32_1 : i32 to vector<1x256xi32>
    %8 = arith.cmpi slt, %4, %7 : vector<1x256xi32>
    %c0_i32_2 = arith.constant 0 : i32
    %9 = arith.cmpi slt, %2, %c0_i32_2 : i32
    %10 = vector.broadcast %9 : i1 to vector<1x256xi1>
    %11 = vector.broadcast %10 : vector<1x256xi1> to vector<1x256xi1>
    %12 = arith.xori %8, %11 : vector<1x256xi1>
    %13 = arith.andi %12, %6 : vector<1x256xi1>
    %14 = vector.broadcast %2 : i32 to vector<1x256xi32>
    %15 = arith.addi %4, %14 : vector<1x256xi32>
    %16 = arith.select %13, %15, %4 : vector<1x256xi1>, vector<1x256xi32>
    %c15_i32 = arith.constant 15 : i32
    %17 = vector.broadcast %c15_i32 : i32 to vector<1x256xi32>
    %18 = arith.cmpi slt, %16, %17 : vector<1x256xi32>
    %c0_i32_3 = arith.constant 0 : i32
    %19 = vector.broadcast %c0_i32_3 : i32 to vector<1x256xi32>
    %20 = arith.cmpi sgt, %16, %19 : vector<1x256xi32>
    %c0 = arith.constant 0 : index
    %c0_4 = arith.constant 0 : index
    %c0_5 = arith.constant 0 : index
    %21 = vector.load %arg1[%c0, %c0_4, %c0_5] : memref<1x2x1024xf32, #tpu.memory_space<vmem>>, vector<1x2x1024xf32>
    %22 = vector.shape_cast %21 : vector<1x2x1024xf32> to vector<2x1024xf32>
    %23 = vector.extract_strided_slice %22 {offsets = [0, 0], sizes = [2, 256], strides = [1, 1]} : vector<2x1024xf32> to vector<2x256xf32>
    %24 = vector.extract_strided_slice %22 {offsets = [0, 256], sizes = [2, 256], strides = [1, 1]} : vector<2x1024xf32> to vector<2x256xf32>
    %25 = vector.extract_strided_slice %22 {offsets = [0, 512], sizes = [2, 256], strides = [1, 1]} : vector<2x1024xf32> to vector<2x256xf32>
    %26 = vector.extract_strided_slice %22 {offsets = [0, 768], sizes = [2, 256], strides = [1, 1]} : vector<2x1024xf32> to vector<2x256xf32>
    %cst = arith.constant 0.000000e+00 : f32
    %27 = vector.broadcast %cst : f32 to vector<2x256xf32>
    %c0_6 = arith.constant 0 : index
    %28 = memref.load %arg3[%c0_6] : memref<4xf32, #tpu.memory_space<smem>>
    %29 = vector.broadcast %28 : f32 to vector<2x256xf32>
    %30 = arith.addf %27, %29 : vector<2x256xf32>
    %cst_7 = arith.constant 0.000000e+00 : f32
    %31 = vector.broadcast %cst_7 : f32 to vector<2x256xf32>
    %c1 = arith.constant 1 : index
    %32 = memref.load %arg3[%c1] : memref<4xf32, #tpu.memory_space<smem>>
    %33 = vector.broadcast %32 : f32 to vector<2x256xf32>
    %34 = arith.addf %31, %33 : vector<2x256xf32>
    %cst_8 = arith.constant 0.000000e+00 : f32
    %35 = vector.broadcast %cst_8 : f32 to vector<2x256xf32>
    %c2 = arith.constant 2 : index
    %36 = memref.load %arg3[%c2] : memref<4xf32, #tpu.memory_space<smem>>
    %37 = vector.broadcast %36 : f32 to vector<2x256xf32>
    %38 = arith.addf %35, %37 : vector<2x256xf32>
    %cst_9 = arith.constant 0.000000e+00 : f32
    %39 = vector.broadcast %cst_9 : f32 to vector<2x256xf32>
    %c3 = arith.constant 3 : index
    %40 = memref.load %arg3[%c3] : memref<4xf32, #tpu.memory_space<smem>>
    %41 = vector.broadcast %40 : f32 to vector<2x256xf32>
    %42 = arith.addf %39, %41 : vector<2x256xf32>
    %cst_10 = arith.constant 0.000000e+00 : f32
    %43 = vector.broadcast %cst_10 : f32 to vector<2x17xf32>
    %44 = vector.extract_strided_slice %23 {offsets = [0, 0], sizes = [2, 239], strides = [1, 1]} : vector<2x256xf32> to vector<2x239xf32>
    %45 = tpu.concatenate %43, %44 in 1 : vector<2x17xf32>, vector<2x239xf32> -> vector<2x256xf32>
    %cst_11 = arith.constant 0.000000e+00 : f32
    %46 = vector.shape_cast %20 : vector<1x256xi1> to vector<1x256xi1>
    %47 = vector.broadcast %46 : vector<1x256xi1> to vector<2x256xi1>
    %48 = vector.broadcast %cst_11 : f32 to vector<2x256xf32>
    %49 = arith.select %47, %45, %48 : vector<2x256xi1>, vector<2x256xf32>
    %c0_12 = arith.constant 0 : index
    %50 = memref.load %arg2[%c0_12] : memref<144xf32, #tpu.memory_space<smem>>
    %51 = vector.broadcast %50 : f32 to vector<2x256xf32>
    %52 = arith.mulf %51, %49 : vector<2x256xf32>
    %53 = arith.addf %30, %52 : vector<2x256xf32>
    %c1_13 = arith.constant 1 : index
    %54 = memref.load %arg2[%c1_13] : memref<144xf32, #tpu.memory_space<smem>>
    %55 = vector.broadcast %54 : f32 to vector<2x256xf32>
    %56 = arith.mulf %55, %49 : vector<2x256xf32>
    %57 = arith.addf %34, %56 : vector<2x256xf32>
    %c2_14 = arith.constant 2 : index
    %58 = memref.load %arg2[%c2_14] : memref<144xf32, #tpu.memory_space<smem>>
    %59 = vector.broadcast %58 : f32 to vector<2x256xf32>
    %60 = arith.mulf %59, %49 : vector<2x256xf32>
    %61 = arith.addf %38, %60 : vector<2x256xf32>
    %c3_15 = arith.constant 3 : index
    %62 = memref.load %arg2[%c3_15] : memref<144xf32, #tpu.memory_space<smem>>
    %63 = vector.broadcast %62 : f32 to vector<2x256xf32>
    %64 = arith.mulf %63, %49 : vector<2x256xf32>
    %65 = arith.addf %42, %64 : vector<2x256xf32>
    %cst_16 = arith.constant 0.000000e+00 : f32
    %66 = vector.broadcast %cst_16 : f32 to vector<2x16xf32>
    %67 = vector.extract_strided_slice %23 {offsets = [0, 0], sizes = [2, 240], strides = [1, 1]} : vector<2x256xf32> to vector<2x240xf32>
    %68 = tpu.concatenate %66, %67 in 1 : vector<2x16xf32>, vector<2x240xf32> -> vector<2x256xf32>
    %c16 = arith.constant 16 : index
    %69 = memref.load %arg2[%c16] : memref<144xf32, #tpu.memory_space<smem>>
    %70 = vector.broadcast %69 : f32 to vector<2x256xf32>
    %71 = arith.mulf %70, %68 : vector<2x256xf32>
    %72 = arith.addf %53, %71 : vector<2x256xf32>
    %c17 = arith.constant 17 : index
    %73 = memref.load %arg2[%c17] : memref<144xf32, #tpu.memory_space<smem>>
    %74 = vector.broadcast %73 : f32 to vector<2x256xf32>
    %75 = arith.mulf %74, %68 : vector<2x256xf32>
    %76 = arith.addf %57, %75 : vector<2x256xf32>
    %c18 = arith.constant 18 : index
    %77 = memref.load %arg2[%c18] : memref<144xf32, #tpu.memory_space<smem>>
    %78 = vector.broadcast %77 : f32 to vector<2x256xf32>
    %79 = arith.mulf %78, %68 : vector<2x256xf32>
    %80 = arith.addf %61, %79 : vector<2x256xf32>
    %c19 = arith.constant 19 : index
    %81 = memref.load %arg2[%c19] : memref<144xf32, #tpu.memory_space<smem>>
    %82 = vector.broadcast %81 : f32 to vector<2x256xf32>
    %83 = arith.mulf %82, %68 : vector<2x256xf32>
    %84 = arith.addf %65, %83 : vector<2x256xf32>
    %cst_17 = arith.constant 0.000000e+00 : f32
    %85 = vector.broadcast %cst_17 : f32 to vector<2x15xf32>
    %86 = vector.extract_strided_slice %23 {offsets = [0, 0], sizes = [2, 241], strides = [1, 1]} : vector<2x256xf32> to vector<2x241xf32>
    %87 = tpu.concatenate %85, %86 in 1 : vector<2x15xf32>, vector<2x241xf32> -> vector<2x256xf32>
    %cst_18 = arith.constant 0.000000e+00 : f32
    %88 = vector.shape_cast %18 : vector<1x256xi1> to vector<1x256xi1>
    %89 = vector.broadcast %88 : vector<1x256xi1> to vector<2x256xi1>
    %90 = vector.broadcast %cst_18 : f32 to vector<2x256xf32>
    %91 = arith.select %89, %87, %90 : vector<2x256xi1>, vector<2x256xf32>
    %c32 = arith.constant 32 : index
    %92 = memref.load %arg2[%c32] : memref<144xf32, #tpu.memory_space<smem>>
    %93 = vector.broadcast %92 : f32 to vector<2x256xf32>
    %94 = arith.mulf %93, %91 : vector<2x256xf32>
    %95 = arith.addf %72, %94 : vector<2x256xf32>
    %c33 = arith.constant 33 : index
    %96 = memref.load %arg2[%c33] : memref<144xf32, #tpu.memory_space<smem>>
    %97 = vector.broadcast %96 : f32 to vector<2x256xf32>
    %98 = arith.mulf %97, %91 : vector<2x256xf32>
    %99 = arith.addf %76, %98 : vector<2x256xf32>
    %c34 = arith.constant 34 : index
    %100 = memref.load %arg2[%c34] : memref<144xf32, #tpu.memory_space<smem>>
    %101 = vector.broadcast %100 : f32 to vector<2x256xf32>
    %102 = arith.mulf %101, %91 : vector<2x256xf32>
    %103 = arith.addf %80, %102 : vector<2x256xf32>
    %c35 = arith.constant 35 : index
    %104 = memref.load %arg2[%c35] : memref<144xf32, #tpu.memory_space<smem>>
    %105 = vector.broadcast %104 : f32 to vector<2x256xf32>
    %106 = arith.mulf %105, %91 : vector<2x256xf32>
    %107 = arith.addf %84, %106 : vector<2x256xf32>
    %cst_19 = arith.constant 0.000000e+00 : f32
    %108 = vector.broadcast %cst_19 : f32 to vector<2x1xf32>
    %109 = vector.extract_strided_slice %23 {offsets = [0, 0], sizes = [2, 255], strides = [1, 1]} : vector<2x256xf32> to vector<2x255xf32>
    %110 = tpu.concatenate %108, %109 in 1 : vector<2x1xf32>, vector<2x255xf32> -> vector<2x256xf32>
    %cst_20 = arith.constant 0.000000e+00 : f32
    %111 = vector.shape_cast %20 : vector<1x256xi1> to vector<1x256xi1>
    %112 = vector.broadcast %111 : vector<1x256xi1> to vector<2x256xi1>
    %113 = vector.broadcast %cst_20 : f32 to vector<2x256xf32>
    %114 = arith.select %112, %110, %113 : vector<2x256xi1>, vector<2x256xf32>
    %c48 = arith.constant 48 : index
    %115 = memref.load %arg2[%c48] : memref<144xf32, #tpu.memory_space<smem>>
    %116 = vector.broadcast %115 : f32 to vector<2x256xf32>
    %117 = arith.mulf %116, %114 : vector<2x256xf32>
    %118 = arith.addf %95, %117 : vector<2x256xf32>
    %c49 = arith.constant 49 : index
    %119 = memref.load %arg2[%c49] : memref<144xf32, #tpu.memory_space<smem>>
    %120 = vector.broadcast %119 : f32 to vector<2x256xf32>
    %121 = arith.mulf %120, %114 : vector<2x256xf32>
    %122 = arith.addf %99, %121 : vector<2x256xf32>
    %c50 = arith.constant 50 : index
    %123 = memref.load %arg2[%c50] : memref<144xf32, #tpu.memory_space<smem>>
    %124 = vector.broadcast %123 : f32 to vector<2x256xf32>
    %125 = arith.mulf %124, %114 : vector<2x256xf32>
    %126 = arith.addf %103, %125 : vector<2x256xf32>
    %c51 = arith.constant 51 : index
    %127 = memref.load %arg2[%c51] : memref<144xf32, #tpu.memory_space<smem>>
    %128 = vector.broadcast %127 : f32 to vector<2x256xf32>
    %129 = arith.mulf %128, %114 : vector<2x256xf32>
    %130 = arith.addf %107, %129 : vector<2x256xf32>
    %c64 = arith.constant 64 : index
    %131 = memref.load %arg2[%c64] : memref<144xf32, #tpu.memory_space<smem>>
    %132 = vector.broadcast %131 : f32 to vector<2x256xf32>
    %133 = arith.mulf %132, %23 : vector<2x256xf32>
    %134 = arith.addf %118, %133 : vector<2x256xf32>
    %c65 = arith.constant 65 : index
    %135 = memref.load %arg2[%c65] : memref<144xf32, #tpu.memory_space<smem>>
    %136 = vector.broadcast %135 : f32 to vector<2x256xf32>
    %137 = arith.mulf %136, %23 : vector<2x256xf32>
    %138 = arith.addf %122, %137 : vector<2x256xf32>
    %c66 = arith.constant 66 : index
    %139 = memref.load %arg2[%c66] : memref<144xf32, #tpu.memory_space<smem>>
    %140 = vector.broadcast %139 : f32 to vector<2x256xf32>
    %141 = arith.mulf %140, %23 : vector<2x256xf32>
    %142 = arith.addf %126, %141 : vector<2x256xf32>
    %c67 = arith.constant 67 : index
    %143 = memref.load %arg2[%c67] : memref<144xf32, #tpu.memory_space<smem>>
    %144 = vector.broadcast %143 : f32 to vector<2x256xf32>
    %145 = arith.mulf %144, %23 : vector<2x256xf32>
    %146 = arith.addf %130, %145 : vector<2x256xf32>
    %147 = vector.extract_strided_slice %23 {offsets = [0, 1], sizes = [2, 255], strides = [1, 1]} : vector<2x256xf32> to vector<2x255xf32>
    %cst_21 = arith.constant 0.000000e+00 : f32
    %148 = vector.broadcast %cst_21 : f32 to vector<2x1xf32>
    %149 = tpu.concatenate %147, %148 in 1 : vector<2x255xf32>, vector<2x1xf32> -> vector<2x256xf32>
    %cst_22 = arith.constant 0.000000e+00 : f32
    %150 = vector.shape_cast %18 : vector<1x256xi1> to vector<1x256xi1>
    %151 = vector.broadcast %150 : vector<1x256xi1> to vector<2x256xi1>
    %152 = vector.broadcast %cst_22 : f32 to vector<2x256xf32>
    %153 = arith.select %151, %149, %152 : vector<2x256xi1>, vector<2x256xf32>
    %c80 = arith.constant 80 : index
    %154 = memref.load %arg2[%c80] : memref<144xf32, #tpu.memory_space<smem>>
    %155 = vector.broadcast %154 : f32 to vector<2x256xf32>
    %156 = arith.mulf %155, %153 : vector<2x256xf32>
    %157 = arith.addf %134, %156 : vector<2x256xf32>
    %c81 = arith.constant 81 : index
    %158 = memref.load %arg2[%c81] : memref<144xf32, #tpu.memory_space<smem>>
    %159 = vector.broadcast %158 : f32 to vector<2x256xf32>
    %160 = arith.mulf %159, %153 : vector<2x256xf32>
    %161 = arith.addf %138, %160 : vector<2x256xf32>
    %c82 = arith.constant 82 : index
    %162 = memref.load %arg2[%c82] : memref<144xf32, #tpu.memory_space<smem>>
    %163 = vector.broadcast %162 : f32 to vector<2x256xf32>
    %164 = arith.mulf %163, %153 : vector<2x256xf32>
    %165 = arith.addf %142, %164 : vector<2x256xf32>
    %c83 = arith.constant 83 : index
    %166 = memref.load %arg2[%c83] : memref<144xf32, #tpu.memory_space<smem>>
    %167 = vector.broadcast %166 : f32 to vector<2x256xf32>
    %168 = arith.mulf %167, %153 : vector<2x256xf32>
    %169 = arith.addf %146, %168 : vector<2x256xf32>
    %170 = vector.extract_strided_slice %23 {offsets = [0, 15], sizes = [2, 241], strides = [1, 1]} : vector<2x256xf32> to vector<2x241xf32>
    %cst_23 = arith.constant 0.000000e+00 : f32
    %171 = vector.broadcast %cst_23 : f32 to vector<2x15xf32>
    %172 = tpu.concatenate %170, %171 in 1 : vector<2x241xf32>, vector<2x15xf32> -> vector<2x256xf32>
    %cst_24 = arith.constant 0.000000e+00 : f32
    %173 = vector.shape_cast %20 : vector<1x256xi1> to vector<1x256xi1>
    %174 = vector.broadcast %173 : vector<1x256xi1> to vector<2x256xi1>
    %175 = vector.broadcast %cst_24 : f32 to vector<2x256xf32>
    %176 = arith.select %174, %172, %175 : vector<2x256xi1>, vector<2x256xf32>
    %c96 = arith.constant 96 : index
    %177 = memref.load %arg2[%c96] : memref<144xf32, #tpu.memory_space<smem>>
    %178 = vector.broadcast %177 : f32 to vector<2x256xf32>
    %179 = arith.mulf %178, %176 : vector<2x256xf32>
    %180 = arith.addf %157, %179 : vector<2x256xf32>
    %c97 = arith.constant 97 : index
    %181 = memref.load %arg2[%c97] : memref<144xf32, #tpu.memory_space<smem>>
    %182 = vector.broadcast %181 : f32 to vector<2x256xf32>
    %183 = arith.mulf %182, %176 : vector<2x256xf32>
    %184 = arith.addf %161, %183 : vector<2x256xf32>
    %c98 = arith.constant 98 : index
    %185 = memref.load %arg2[%c98] : memref<144xf32, #tpu.memory_space<smem>>
    %186 = vector.broadcast %185 : f32 to vector<2x256xf32>
    %187 = arith.mulf %186, %176 : vector<2x256xf32>
    %188 = arith.addf %165, %187 : vector<2x256xf32>
    %c99 = arith.constant 99 : index
    %189 = memref.load %arg2[%c99] : memref<144xf32, #tpu.memory_space<smem>>
    %190 = vector.broadcast %189 : f32 to vector<2x256xf32>
    %191 = arith.mulf %190, %176 : vector<2x256xf32>
    %192 = arith.addf %169, %191 : vector<2x256xf32>
    %193 = vector.extract_strided_slice %23 {offsets = [0, 16], sizes = [2, 240], strides = [1, 1]} : vector<2x256xf32> to vector<2x240xf32>
    %cst_25 = arith.constant 0.000000e+00 : f32
    %194 = vector.broadcast %cst_25 : f32 to vector<2x16xf32>
    %195 = tpu.concatenate %193, %194 in 1 : vector<2x240xf32>, vector<2x16xf32> -> vector<2x256xf32>
    %c112 = arith.constant 112 : index
    %196 = memref.load %arg2[%c112] : memref<144xf32, #tpu.memory_space<smem>>
    %197 = vector.broadcast %196 : f32 to vector<2x256xf32>
    %198 = arith.mulf %197, %195 : vector<2x256xf32>
    %199 = arith.addf %180, %198 : vector<2x256xf32>
    %c113 = arith.constant 113 : index
    %200 = memref.load %arg2[%c113] : memref<144xf32, #tpu.memory_space<smem>>
    %201 = vector.broadcast %200 : f32 to vector<2x256xf32>
    %202 = arith.mulf %201, %195 : vector<2x256xf32>
    %203 = arith.addf %184, %202 : vector<2x256xf32>
    %c114 = arith.constant 114 : index
    %204 = memref.load %arg2[%c114] : memref<144xf32, #tpu.memory_space<smem>>
    %205 = vector.broadcast %204 : f32 to vector<2x256xf32>
    %206 = arith.mulf %205, %195 : vector<2x256xf32>
    %207 = arith.addf %188, %206 : vector<2x256xf32>
    %c115 = arith.constant 115 : index
    %208 = memref.load %arg2[%c115] : memref<144xf32, #tpu.memory_space<smem>>
    %209 = vector.broadcast %208 : f32 to vector<2x256xf32>
    %210 = arith.mulf %209, %195 : vector<2x256xf32>
    %211 = arith.addf %192, %210 : vector<2x256xf32>
    %212 = vector.extract_strided_slice %23 {offsets = [0, 17], sizes = [2, 239], strides = [1, 1]} : vector<2x256xf32> to vector<2x239xf32>
    %cst_26 = arith.constant 0.000000e+00 : f32
    %213 = vector.broadcast %cst_26 : f32 to vector<2x17xf32>
    %214 = tpu.concatenate %212, %213 in 1 : vector<2x239xf32>, vector<2x17xf32> -> vector<2x256xf32>
    %cst_27 = arith.constant 0.000000e+00 : f32
    %215 = vector.shape_cast %18 : vector<1x256xi1> to vector<1x256xi1>
    %216 = vector.broadcast %215 : vector<1x256xi1> to vector<2x256xi1>
    %217 = vector.broadcast %cst_27 : f32 to vector<2x256xf32>
    %218 = arith.select %216, %214, %217 : vector<2x256xi1>, vector<2x256xf32>
    %c128 = arith.constant 128 : index
    %219 = memref.load %arg2[%c128] : memref<144xf32, #tpu.memory_space<smem>>
    %220 = vector.broadcast %219 : f32 to vector<2x256xf32>
    %221 = arith.mulf %220, %218 : vector<2x256xf32>
    %222 = arith.addf %199, %221 : vector<2x256xf32>
    %c129 = arith.constant 129 : index
    %223 = memref.load %arg2[%c129] : memref<144xf32, #tpu.memory_space<smem>>
    %224 = vector.broadcast %223 : f32 to vector<2x256xf32>
    %225 = arith.mulf %224, %218 : vector<2x256xf32>
    %226 = arith.addf %203, %225 : vector<2x256xf32>
    %c130 = arith.constant 130 : index
    %227 = memref.load %arg2[%c130] : memref<144xf32, #tpu.memory_space<smem>>
    %228 = vector.broadcast %227 : f32 to vector<2x256xf32>
    %229 = arith.mulf %228, %218 : vector<2x256xf32>
    %230 = arith.addf %207, %229 : vector<2x256xf32>
    %c131 = arith.constant 131 : index
    %231 = memref.load %arg2[%c131] : memref<144xf32, #tpu.memory_space<smem>>
    %232 = vector.broadcast %231 : f32 to vector<2x256xf32>
    %233 = arith.mulf %232, %218 : vector<2x256xf32>
    %234 = arith.addf %211, %233 : vector<2x256xf32>
    %cst_28 = arith.constant 0.000000e+00 : f32
    %235 = vector.broadcast %cst_28 : f32 to vector<2x17xf32>
    %236 = vector.extract_strided_slice %24 {offsets = [0, 0], sizes = [2, 239], strides = [1, 1]} : vector<2x256xf32> to vector<2x239xf32>
    %237 = tpu.concatenate %235, %236 in 1 : vector<2x17xf32>, vector<2x239xf32> -> vector<2x256xf32>
    %cst_29 = arith.constant 0.000000e+00 : f32
    %238 = vector.shape_cast %20 : vector<1x256xi1> to vector<1x256xi1>
    %239 = vector.broadcast %238 : vector<1x256xi1> to vector<2x256xi1>
    %240 = vector.broadcast %cst_29 : f32 to vector<2x256xf32>
    %241 = arith.select %239, %237, %240 : vector<2x256xi1>, vector<2x256xf32>
    %c4 = arith.constant 4 : index
    %242 = memref.load %arg2[%c4] : memref<144xf32, #tpu.memory_space<smem>>
    %243 = vector.broadcast %242 : f32 to vector<2x256xf32>
    %244 = arith.mulf %243, %241 : vector<2x256xf32>
    %245 = arith.addf %222, %244 : vector<2x256xf32>
    %c5 = arith.constant 5 : index
    %246 = memref.load %arg2[%c5] : memref<144xf32, #tpu.memory_space<smem>>
    %247 = vector.broadcast %246 : f32 to vector<2x256xf32>
    %248 = arith.mulf %247, %241 : vector<2x256xf32>
    %249 = arith.addf %226, %248 : vector<2x256xf32>
    %c6 = arith.constant 6 : index
    %250 = memref.load %arg2[%c6] : memref<144xf32, #tpu.memory_space<smem>>
    %251 = vector.broadcast %250 : f32 to vector<2x256xf32>
    %252 = arith.mulf %251, %241 : vector<2x256xf32>
    %253 = arith.addf %230, %252 : vector<2x256xf32>
    %c7 = arith.constant 7 : index
    %254 = memref.load %arg2[%c7] : memref<144xf32, #tpu.memory_space<smem>>
    %255 = vector.broadcast %254 : f32 to vector<2x256xf32>
    %256 = arith.mulf %255, %241 : vector<2x256xf32>
    %257 = arith.addf %234, %256 : vector<2x256xf32>
    %cst_30 = arith.constant 0.000000e+00 : f32
    %258 = vector.broadcast %cst_30 : f32 to vector<2x16xf32>
    %259 = vector.extract_strided_slice %24 {offsets = [0, 0], sizes = [2, 240], strides = [1, 1]} : vector<2x256xf32> to vector<2x240xf32>
    %260 = tpu.concatenate %258, %259 in 1 : vector<2x16xf32>, vector<2x240xf32> -> vector<2x256xf32>
    %c20 = arith.constant 20 : index
    %261 = memref.load %arg2[%c20] : memref<144xf32, #tpu.memory_space<smem>>
    %262 = vector.broadcast %261 : f32 to vector<2x256xf32>
    %263 = arith.mulf %262, %260 : vector<2x256xf32>
    %264 = arith.addf %245, %263 : vector<2x256xf32>
    %c21 = arith.constant 21 : index
    %265 = memref.load %arg2[%c21] : memref<144xf32, #tpu.memory_space<smem>>
    %266 = vector.broadcast %265 : f32 to vector<2x256xf32>
    %267 = arith.mulf %266, %260 : vector<2x256xf32>
    %268 = arith.addf %249, %267 : vector<2x256xf32>
    %c22 = arith.constant 22 : index
    %269 = memref.load %arg2[%c22] : memref<144xf32, #tpu.memory_space<smem>>
    %270 = vector.broadcast %269 : f32 to vector<2x256xf32>
    %271 = arith.mulf %270, %260 : vector<2x256xf32>
    %272 = arith.addf %253, %271 : vector<2x256xf32>
    %c23 = arith.constant 23 : index
    %273 = memref.load %arg2[%c23] : memref<144xf32, #tpu.memory_space<smem>>
    %274 = vector.broadcast %273 : f32 to vector<2x256xf32>
    %275 = arith.mulf %274, %260 : vector<2x256xf32>
    %276 = arith.addf %257, %275 : vector<2x256xf32>
    %cst_31 = arith.constant 0.000000e+00 : f32
    %277 = vector.broadcast %cst_31 : f32 to vector<2x15xf32>
    %278 = vector.extract_strided_slice %24 {offsets = [0, 0], sizes = [2, 241], strides = [1, 1]} : vector<2x256xf32> to vector<2x241xf32>
    %279 = tpu.concatenate %277, %278 in 1 : vector<2x15xf32>, vector<2x241xf32> -> vector<2x256xf32>
    %cst_32 = arith.constant 0.000000e+00 : f32
    %280 = vector.shape_cast %18 : vector<1x256xi1> to vector<1x256xi1>
    %281 = vector.broadcast %280 : vector<1x256xi1> to vector<2x256xi1>
    %282 = vector.broadcast %cst_32 : f32 to vector<2x256xf32>
    %283 = arith.select %281, %279, %282 : vector<2x256xi1>, vector<2x256xf32>
    %c36 = arith.constant 36 : index
    %284 = memref.load %arg2[%c36] : memref<144xf32, #tpu.memory_space<smem>>
    %285 = vector.broadcast %284 : f32 to vector<2x256xf32>
    %286 = arith.mulf %285, %283 : vector<2x256xf32>
    %287 = arith.addf %264, %286 : vector<2x256xf32>
    %c37 = arith.constant 37 : index
    %288 = memref.load %arg2[%c37] : memref<144xf32, #tpu.memory_space<smem>>
    %289 = vector.broadcast %288 : f32 to vector<2x256xf32>
    %290 = arith.mulf %289, %283 : vector<2x256xf32>
    %291 = arith.addf %268, %290 : vector<2x256xf32>
    %c38 = arith.constant 38 : index
    %292 = memref.load %arg2[%c38] : memref<144xf32, #tpu.memory_space<smem>>
    %293 = vector.broadcast %292 : f32 to vector<2x256xf32>
    %294 = arith.mulf %293, %283 : vector<2x256xf32>
    %295 = arith.addf %272, %294 : vector<2x256xf32>
    %c39 = arith.constant 39 : index
    %296 = memref.load %arg2[%c39] : memref<144xf32, #tpu.memory_space<smem>>
    %297 = vector.broadcast %296 : f32 to vector<2x256xf32>
    %298 = arith.mulf %297, %283 : vector<2x256xf32>
    %299 = arith.addf %276, %298 : vector<2x256xf32>
    %cst_33 = arith.constant 0.000000e+00 : f32
    %300 = vector.broadcast %cst_33 : f32 to vector<2x1xf32>
    %301 = vector.extract_strided_slice %24 {offsets = [0, 0], sizes = [2, 255], strides = [1, 1]} : vector<2x256xf32> to vector<2x255xf32>
    %302 = tpu.concatenate %300, %301 in 1 : vector<2x1xf32>, vector<2x255xf32> -> vector<2x256xf32>
    %cst_34 = arith.constant 0.000000e+00 : f32
    %303 = vector.shape_cast %20 : vector<1x256xi1> to vector<1x256xi1>
    %304 = vector.broadcast %303 : vector<1x256xi1> to vector<2x256xi1>
    %305 = vector.broadcast %cst_34 : f32 to vector<2x256xf32>
    %306 = arith.select %304, %302, %305 : vector<2x256xi1>, vector<2x256xf32>
    %c52 = arith.constant 52 : index
    %307 = memref.load %arg2[%c52] : memref<144xf32, #tpu.memory_space<smem>>
    %308 = vector.broadcast %307 : f32 to vector<2x256xf32>
    %309 = arith.mulf %308, %306 : vector<2x256xf32>
    %310 = arith.addf %287, %309 : vector<2x256xf32>
    %c53 = arith.constant 53 : index
    %311 = memref.load %arg2[%c53] : memref<144xf32, #tpu.memory_space<smem>>
    %312 = vector.broadcast %311 : f32 to vector<2x256xf32>
    %313 = arith.mulf %312, %306 : vector<2x256xf32>
    %314 = arith.addf %291, %313 : vector<2x256xf32>
    %c54 = arith.constant 54 : index
    %315 = memref.load %arg2[%c54] : memref<144xf32, #tpu.memory_space<smem>>
    %316 = vector.broadcast %315 : f32 to vector<2x256xf32>
    %317 = arith.mulf %316, %306 : vector<2x256xf32>
    %318 = arith.addf %295, %317 : vector<2x256xf32>
    %c55 = arith.constant 55 : index
    %319 = memref.load %arg2[%c55] : memref<144xf32, #tpu.memory_space<smem>>
    %320 = vector.broadcast %319 : f32 to vector<2x256xf32>
    %321 = arith.mulf %320, %306 : vector<2x256xf32>
    %322 = arith.addf %299, %321 : vector<2x256xf32>
    %c68 = arith.constant 68 : index
    %323 = memref.load %arg2[%c68] : memref<144xf32, #tpu.memory_space<smem>>
    %324 = vector.broadcast %323 : f32 to vector<2x256xf32>
    %325 = arith.mulf %324, %24 : vector<2x256xf32>
    %326 = arith.addf %310, %325 : vector<2x256xf32>
    %c69 = arith.constant 69 : index
    %327 = memref.load %arg2[%c69] : memref<144xf32, #tpu.memory_space<smem>>
    %328 = vector.broadcast %327 : f32 to vector<2x256xf32>
    %329 = arith.mulf %328, %24 : vector<2x256xf32>
    %330 = arith.addf %314, %329 : vector<2x256xf32>
    %c70 = arith.constant 70 : index
    %331 = memref.load %arg2[%c70] : memref<144xf32, #tpu.memory_space<smem>>
    %332 = vector.broadcast %331 : f32 to vector<2x256xf32>
    %333 = arith.mulf %332, %24 : vector<2x256xf32>
    %334 = arith.addf %318, %333 : vector<2x256xf32>
    %c71 = arith.constant 71 : index
    %335 = memref.load %arg2[%c71] : memref<144xf32, #tpu.memory_space<smem>>
    %336 = vector.broadcast %335 : f32 to vector<2x256xf32>
    %337 = arith.mulf %336, %24 : vector<2x256xf32>
    %338 = arith.addf %322, %337 : vector<2x256xf32>
    %339 = vector.extract_strided_slice %24 {offsets = [0, 1], sizes = [2, 255], strides = [1, 1]} : vector<2x256xf32> to vector<2x255xf32>
    %cst_35 = arith.constant 0.000000e+00 : f32
    %340 = vector.broadcast %cst_35 : f32 to vector<2x1xf32>
    %341 = tpu.concatenate %339, %340 in 1 : vector<2x255xf32>, vector<2x1xf32> -> vector<2x256xf32>
    %cst_36 = arith.constant 0.000000e+00 : f32
    %342 = vector.shape_cast %18 : vector<1x256xi1> to vector<1x256xi1>
    %343 = vector.broadcast %342 : vector<1x256xi1> to vector<2x256xi1>
    %344 = vector.broadcast %cst_36 : f32 to vector<2x256xf32>
    %345 = arith.select %343, %341, %344 : vector<2x256xi1>, vector<2x256xf32>
    %c84 = arith.constant 84 : index
    %346 = memref.load %arg2[%c84] : memref<144xf32, #tpu.memory_space<smem>>
    %347 = vector.broadcast %346 : f32 to vector<2x256xf32>
    %348 = arith.mulf %347, %345 : vector<2x256xf32>
    %349 = arith.addf %326, %348 : vector<2x256xf32>
    %c85 = arith.constant 85 : index
    %350 = memref.load %arg2[%c85] : memref<144xf32, #tpu.memory_space<smem>>
    %351 = vector.broadcast %350 : f32 to vector<2x256xf32>
    %352 = arith.mulf %351, %345 : vector<2x256xf32>
    %353 = arith.addf %330, %352 : vector<2x256xf32>
    %c86 = arith.constant 86 : index
    %354 = memref.load %arg2[%c86] : memref<144xf32, #tpu.memory_space<smem>>
    %355 = vector.broadcast %354 : f32 to vector<2x256xf32>
    %356 = arith.mulf %355, %345 : vector<2x256xf32>
    %357 = arith.addf %334, %356 : vector<2x256xf32>
    %c87 = arith.constant 87 : index
    %358 = memref.load %arg2[%c87] : memref<144xf32, #tpu.memory_space<smem>>
    %359 = vector.broadcast %358 : f32 to vector<2x256xf32>
    %360 = arith.mulf %359, %345 : vector<2x256xf32>
    %361 = arith.addf %338, %360 : vector<2x256xf32>
    %362 = vector.extract_strided_slice %24 {offsets = [0, 15], sizes = [2, 241], strides = [1, 1]} : vector<2x256xf32> to vector<2x241xf32>
    %cst_37 = arith.constant 0.000000e+00 : f32
    %363 = vector.broadcast %cst_37 : f32 to vector<2x15xf32>
    %364 = tpu.concatenate %362, %363 in 1 : vector<2x241xf32>, vector<2x15xf32> -> vector<2x256xf32>
    %cst_38 = arith.constant 0.000000e+00 : f32
    %365 = vector.shape_cast %20 : vector<1x256xi1> to vector<1x256xi1>
    %366 = vector.broadcast %365 : vector<1x256xi1> to vector<2x256xi1>
    %367 = vector.broadcast %cst_38 : f32 to vector<2x256xf32>
    %368 = arith.select %366, %364, %367 : vector<2x256xi1>, vector<2x256xf32>
    %c100 = arith.constant 100 : index
    %369 = memref.load %arg2[%c100] : memref<144xf32, #tpu.memory_space<smem>>
    %370 = vector.broadcast %369 : f32 to vector<2x256xf32>
    %371 = arith.mulf %370, %368 : vector<2x256xf32>
    %372 = arith.addf %349, %371 : vector<2x256xf32>
    %c101 = arith.constant 101 : index
    %373 = memref.load %arg2[%c101] : memref<144xf32, #tpu.memory_space<smem>>
    %374 = vector.broadcast %373 : f32 to vector<2x256xf32>
    %375 = arith.mulf %374, %368 : vector<2x256xf32>
    %376 = arith.addf %353, %375 : vector<2x256xf32>
    %c102 = arith.constant 102 : index
    %377 = memref.load %arg2[%c102] : memref<144xf32, #tpu.memory_space<smem>>
    %378 = vector.broadcast %377 : f32 to vector<2x256xf32>
    %379 = arith.mulf %378, %368 : vector<2x256xf32>
    %380 = arith.addf %357, %379 : vector<2x256xf32>
    %c103 = arith.constant 103 : index
    %381 = memref.load %arg2[%c103] : memref<144xf32, #tpu.memory_space<smem>>
    %382 = vector.broadcast %381 : f32 to vector<2x256xf32>
    %383 = arith.mulf %382, %368 : vector<2x256xf32>
    %384 = arith.addf %361, %383 : vector<2x256xf32>
    %385 = vector.extract_strided_slice %24 {offsets = [0, 16], sizes = [2, 240], strides = [1, 1]} : vector<2x256xf32> to vector<2x240xf32>
    %cst_39 = arith.constant 0.000000e+00 : f32
    %386 = vector.broadcast %cst_39 : f32 to vector<2x16xf32>
    %387 = tpu.concatenate %385, %386 in 1 : vector<2x240xf32>, vector<2x16xf32> -> vector<2x256xf32>
    %c116 = arith.constant 116 : index
    %388 = memref.load %arg2[%c116] : memref<144xf32, #tpu.memory_space<smem>>
    %389 = vector.broadcast %388 : f32 to vector<2x256xf32>
    %390 = arith.mulf %389, %387 : vector<2x256xf32>
    %391 = arith.addf %372, %390 : vector<2x256xf32>
    %c117 = arith.constant 117 : index
    %392 = memref.load %arg2[%c117] : memref<144xf32, #tpu.memory_space<smem>>
    %393 = vector.broadcast %392 : f32 to vector<2x256xf32>
    %394 = arith.mulf %393, %387 : vector<2x256xf32>
    %395 = arith.addf %376, %394 : vector<2x256xf32>
    %c118 = arith.constant 118 : index
    %396 = memref.load %arg2[%c118] : memref<144xf32, #tpu.memory_space<smem>>
    %397 = vector.broadcast %396 : f32 to vector<2x256xf32>
    %398 = arith.mulf %397, %387 : vector<2x256xf32>
    %399 = arith.addf %380, %398 : vector<2x256xf32>
    %c119 = arith.constant 119 : index
    %400 = memref.load %arg2[%c119] : memref<144xf32, #tpu.memory_space<smem>>
    %401 = vector.broadcast %400 : f32 to vector<2x256xf32>
    %402 = arith.mulf %401, %387 : vector<2x256xf32>
    %403 = arith.addf %384, %402 : vector<2x256xf32>
    %404 = vector.extract_strided_slice %24 {offsets = [0, 17], sizes = [2, 239], strides = [1, 1]} : vector<2x256xf32> to vector<2x239xf32>
    %cst_40 = arith.constant 0.000000e+00 : f32
    %405 = vector.broadcast %cst_40 : f32 to vector<2x17xf32>
    %406 = tpu.concatenate %404, %405 in 1 : vector<2x239xf32>, vector<2x17xf32> -> vector<2x256xf32>
    %cst_41 = arith.constant 0.000000e+00 : f32
    %407 = vector.shape_cast %18 : vector<1x256xi1> to vector<1x256xi1>
    %408 = vector.broadcast %407 : vector<1x256xi1> to vector<2x256xi1>
    %409 = vector.broadcast %cst_41 : f32 to vector<2x256xf32>
    %410 = arith.select %408, %406, %409 : vector<2x256xi1>, vector<2x256xf32>
    %c132 = arith.constant 132 : index
    %411 = memref.load %arg2[%c132] : memref<144xf32, #tpu.memory_space<smem>>
    %412 = vector.broadcast %411 : f32 to vector<2x256xf32>
    %413 = arith.mulf %412, %410 : vector<2x256xf32>
    %414 = arith.addf %391, %413 : vector<2x256xf32>
    %c133 = arith.constant 133 : index
    %415 = memref.load %arg2[%c133] : memref<144xf32, #tpu.memory_space<smem>>
    %416 = vector.broadcast %415 : f32 to vector<2x256xf32>
    %417 = arith.mulf %416, %410 : vector<2x256xf32>
    %418 = arith.addf %395, %417 : vector<2x256xf32>
    %c134 = arith.constant 134 : index
    %419 = memref.load %arg2[%c134] : memref<144xf32, #tpu.memory_space<smem>>
    %420 = vector.broadcast %419 : f32 to vector<2x256xf32>
    %421 = arith.mulf %420, %410 : vector<2x256xf32>
    %422 = arith.addf %399, %421 : vector<2x256xf32>
    %c135 = arith.constant 135 : index
    %423 = memref.load %arg2[%c135] : memref<144xf32, #tpu.memory_space<smem>>
    %424 = vector.broadcast %423 : f32 to vector<2x256xf32>
    %425 = arith.mulf %424, %410 : vector<2x256xf32>
    %426 = arith.addf %403, %425 : vector<2x256xf32>
    %cst_42 = arith.constant 0.000000e+00 : f32
    %427 = vector.broadcast %cst_42 : f32 to vector<2x17xf32>
    %428 = vector.extract_strided_slice %25 {offsets = [0, 0], sizes = [2, 239], strides = [1, 1]} : vector<2x256xf32> to vector<2x239xf32>
    %429 = tpu.concatenate %427, %428 in 1 : vector<2x17xf32>, vector<2x239xf32> -> vector<2x256xf32>
    %cst_43 = arith.constant 0.000000e+00 : f32
    %430 = vector.shape_cast %20 : vector<1x256xi1> to vector<1x256xi1>
    %431 = vector.broadcast %430 : vector<1x256xi1> to vector<2x256xi1>
    %432 = vector.broadcast %cst_43 : f32 to vector<2x256xf32>
    %433 = arith.select %431, %429, %432 : vector<2x256xi1>, vector<2x256xf32>
    %c8 = arith.constant 8 : index
    %434 = memref.load %arg2[%c8] : memref<144xf32, #tpu.memory_space<smem>>
    %435 = vector.broadcast %434 : f32 to vector<2x256xf32>
    %436 = arith.mulf %435, %433 : vector<2x256xf32>
    %437 = arith.addf %414, %436 : vector<2x256xf32>
    %c9 = arith.constant 9 : index
    %438 = memref.load %arg2[%c9] : memref<144xf32, #tpu.memory_space<smem>>
    %439 = vector.broadcast %438 : f32 to vector<2x256xf32>
    %440 = arith.mulf %439, %433 : vector<2x256xf32>
    %441 = arith.addf %418, %440 : vector<2x256xf32>
    %c10 = arith.constant 10 : index
    %442 = memref.load %arg2[%c10] : memref<144xf32, #tpu.memory_space<smem>>
    %443 = vector.broadcast %442 : f32 to vector<2x256xf32>
    %444 = arith.mulf %443, %433 : vector<2x256xf32>
    %445 = arith.addf %422, %444 : vector<2x256xf32>
    %c11 = arith.constant 11 : index
    %446 = memref.load %arg2[%c11] : memref<144xf32, #tpu.memory_space<smem>>
    %447 = vector.broadcast %446 : f32 to vector<2x256xf32>
    %448 = arith.mulf %447, %433 : vector<2x256xf32>
    %449 = arith.addf %426, %448 : vector<2x256xf32>
    %cst_44 = arith.constant 0.000000e+00 : f32
    %450 = vector.broadcast %cst_44 : f32 to vector<2x16xf32>
    %451 = vector.extract_strided_slice %25 {offsets = [0, 0], sizes = [2, 240], strides = [1, 1]} : vector<2x256xf32> to vector<2x240xf32>
    %452 = tpu.concatenate %450, %451 in 1 : vector<2x16xf32>, vector<2x240xf32> -> vector<2x256xf32>
    %c24 = arith.constant 24 : index
    %453 = memref.load %arg2[%c24] : memref<144xf32, #tpu.memory_space<smem>>
    %454 = vector.broadcast %453 : f32 to vector<2x256xf32>
    %455 = arith.mulf %454, %452 : vector<2x256xf32>
    %456 = arith.addf %437, %455 : vector<2x256xf32>
    %c25 = arith.constant 25 : index
    %457 = memref.load %arg2[%c25] : memref<144xf32, #tpu.memory_space<smem>>
    %458 = vector.broadcast %457 : f32 to vector<2x256xf32>
    %459 = arith.mulf %458, %452 : vector<2x256xf32>
    %460 = arith.addf %441, %459 : vector<2x256xf32>
    %c26 = arith.constant 26 : index
    %461 = memref.load %arg2[%c26] : memref<144xf32, #tpu.memory_space<smem>>
    %462 = vector.broadcast %461 : f32 to vector<2x256xf32>
    %463 = arith.mulf %462, %452 : vector<2x256xf32>
    %464 = arith.addf %445, %463 : vector<2x256xf32>
    %c27 = arith.constant 27 : index
    %465 = memref.load %arg2[%c27] : memref<144xf32, #tpu.memory_space<smem>>
    %466 = vector.broadcast %465 : f32 to vector<2x256xf32>
    %467 = arith.mulf %466, %452 : vector<2x256xf32>
    %468 = arith.addf %449, %467 : vector<2x256xf32>
    %cst_45 = arith.constant 0.000000e+00 : f32
    %469 = vector.broadcast %cst_45 : f32 to vector<2x15xf32>
    %470 = vector.extract_strided_slice %25 {offsets = [0, 0], sizes = [2, 241], strides = [1, 1]} : vector<2x256xf32> to vector<2x241xf32>
    %471 = tpu.concatenate %469, %470 in 1 : vector<2x15xf32>, vector<2x241xf32> -> vector<2x256xf32>
    %cst_46 = arith.constant 0.000000e+00 : f32
    %472 = vector.shape_cast %18 : vector<1x256xi1> to vector<1x256xi1>
    %473 = vector.broadcast %472 : vector<1x256xi1> to vector<2x256xi1>
    %474 = vector.broadcast %cst_46 : f32 to vector<2x256xf32>
    %475 = arith.select %473, %471, %474 : vector<2x256xi1>, vector<2x256xf32>
    %c40 = arith.constant 40 : index
    %476 = memref.load %arg2[%c40] : memref<144xf32, #tpu.memory_space<smem>>
    %477 = vector.broadcast %476 : f32 to vector<2x256xf32>
    %478 = arith.mulf %477, %475 : vector<2x256xf32>
    %479 = arith.addf %456, %478 : vector<2x256xf32>
    %c41 = arith.constant 41 : index
    %480 = memref.load %arg2[%c41] : memref<144xf32, #tpu.memory_space<smem>>
    %481 = vector.broadcast %480 : f32 to vector<2x256xf32>
    %482 = arith.mulf %481, %475 : vector<2x256xf32>
    %483 = arith.addf %460, %482 : vector<2x256xf32>
    %c42 = arith.constant 42 : index
    %484 = memref.load %arg2[%c42] : memref<144xf32, #tpu.memory_space<smem>>
    %485 = vector.broadcast %484 : f32 to vector<2x256xf32>
    %486 = arith.mulf %485, %475 : vector<2x256xf32>
    %487 = arith.addf %464, %486 : vector<2x256xf32>
    %c43 = arith.constant 43 : index
    %488 = memref.load %arg2[%c43] : memref<144xf32, #tpu.memory_space<smem>>
    %489 = vector.broadcast %488 : f32 to vector<2x256xf32>
    %490 = arith.mulf %489, %475 : vector<2x256xf32>
    %491 = arith.addf %468, %490 : vector<2x256xf32>
    %cst_47 = arith.constant 0.000000e+00 : f32
    %492 = vector.broadcast %cst_47 : f32 to vector<2x1xf32>
    %493 = vector.extract_strided_slice %25 {offsets = [0, 0], sizes = [2, 255], strides = [1, 1]} : vector<2x256xf32> to vector<2x255xf32>
    %494 = tpu.concatenate %492, %493 in 1 : vector<2x1xf32>, vector<2x255xf32> -> vector<2x256xf32>
    %cst_48 = arith.constant 0.000000e+00 : f32
    %495 = vector.shape_cast %20 : vector<1x256xi1> to vector<1x256xi1>
    %496 = vector.broadcast %495 : vector<1x256xi1> to vector<2x256xi1>
    %497 = vector.broadcast %cst_48 : f32 to vector<2x256xf32>
    %498 = arith.select %496, %494, %497 : vector<2x256xi1>, vector<2x256xf32>
    %c56 = arith.constant 56 : index
    %499 = memref.load %arg2[%c56] : memref<144xf32, #tpu.memory_space<smem>>
    %500 = vector.broadcast %499 : f32 to vector<2x256xf32>
    %501 = arith.mulf %500, %498 : vector<2x256xf32>
    %502 = arith.addf %479, %501 : vector<2x256xf32>
    %c57 = arith.constant 57 : index
    %503 = memref.load %arg2[%c57] : memref<144xf32, #tpu.memory_space<smem>>
    %504 = vector.broadcast %503 : f32 to vector<2x256xf32>
    %505 = arith.mulf %504, %498 : vector<2x256xf32>
    %506 = arith.addf %483, %505 : vector<2x256xf32>
    %c58 = arith.constant 58 : index
    %507 = memref.load %arg2[%c58] : memref<144xf32, #tpu.memory_space<smem>>
    %508 = vector.broadcast %507 : f32 to vector<2x256xf32>
    %509 = arith.mulf %508, %498 : vector<2x256xf32>
    %510 = arith.addf %487, %509 : vector<2x256xf32>
    %c59 = arith.constant 59 : index
    %511 = memref.load %arg2[%c59] : memref<144xf32, #tpu.memory_space<smem>>
    %512 = vector.broadcast %511 : f32 to vector<2x256xf32>
    %513 = arith.mulf %512, %498 : vector<2x256xf32>
    %514 = arith.addf %491, %513 : vector<2x256xf32>
    %c72 = arith.constant 72 : index
    %515 = memref.load %arg2[%c72] : memref<144xf32, #tpu.memory_space<smem>>
    %516 = vector.broadcast %515 : f32 to vector<2x256xf32>
    %517 = arith.mulf %516, %25 : vector<2x256xf32>
    %518 = arith.addf %502, %517 : vector<2x256xf32>
    %c73 = arith.constant 73 : index
    %519 = memref.load %arg2[%c73] : memref<144xf32, #tpu.memory_space<smem>>
    %520 = vector.broadcast %519 : f32 to vector<2x256xf32>
    %521 = arith.mulf %520, %25 : vector<2x256xf32>
    %522 = arith.addf %506, %521 : vector<2x256xf32>
    %c74 = arith.constant 74 : index
    %523 = memref.load %arg2[%c74] : memref<144xf32, #tpu.memory_space<smem>>
    %524 = vector.broadcast %523 : f32 to vector<2x256xf32>
    %525 = arith.mulf %524, %25 : vector<2x256xf32>
    %526 = arith.addf %510, %525 : vector<2x256xf32>
    %c75 = arith.constant 75 : index
    %527 = memref.load %arg2[%c75] : memref<144xf32, #tpu.memory_space<smem>>
    %528 = vector.broadcast %527 : f32 to vector<2x256xf32>
    %529 = arith.mulf %528, %25 : vector<2x256xf32>
    %530 = arith.addf %514, %529 : vector<2x256xf32>
    %531 = vector.extract_strided_slice %25 {offsets = [0, 1], sizes = [2, 255], strides = [1, 1]} : vector<2x256xf32> to vector<2x255xf32>
    %cst_49 = arith.constant 0.000000e+00 : f32
    %532 = vector.broadcast %cst_49 : f32 to vector<2x1xf32>
    %533 = tpu.concatenate %531, %532 in 1 : vector<2x255xf32>, vector<2x1xf32> -> vector<2x256xf32>
    %cst_50 = arith.constant 0.000000e+00 : f32
    %534 = vector.shape_cast %18 : vector<1x256xi1> to vector<1x256xi1>
    %535 = vector.broadcast %534 : vector<1x256xi1> to vector<2x256xi1>
    %536 = vector.broadcast %cst_50 : f32 to vector<2x256xf32>
    %537 = arith.select %535, %533, %536 : vector<2x256xi1>, vector<2x256xf32>
    %c88 = arith.constant 88 : index
    %538 = memref.load %arg2[%c88] : memref<144xf32, #tpu.memory_space<smem>>
    %539 = vector.broadcast %538 : f32 to vector<2x256xf32>
    %540 = arith.mulf %539, %537 : vector<2x256xf32>
    %541 = arith.addf %518, %540 : vector<2x256xf32>
    %c89 = arith.constant 89 : index
    %542 = memref.load %arg2[%c89] : memref<144xf32, #tpu.memory_space<smem>>
    %543 = vector.broadcast %542 : f32 to vector<2x256xf32>
    %544 = arith.mulf %543, %537 : vector<2x256xf32>
    %545 = arith.addf %522, %544 : vector<2x256xf32>
    %c90 = arith.constant 90 : index
    %546 = memref.load %arg2[%c90] : memref<144xf32, #tpu.memory_space<smem>>
    %547 = vector.broadcast %546 : f32 to vector<2x256xf32>
    %548 = arith.mulf %547, %537 : vector<2x256xf32>
    %549 = arith.addf %526, %548 : vector<2x256xf32>
    %c91 = arith.constant 91 : index
    %550 = memref.load %arg2[%c91] : memref<144xf32, #tpu.memory_space<smem>>
    %551 = vector.broadcast %550 : f32 to vector<2x256xf32>
    %552 = arith.mulf %551, %537 : vector<2x256xf32>
    %553 = arith.addf %530, %552 : vector<2x256xf32>
    %554 = vector.extract_strided_slice %25 {offsets = [0, 15], sizes = [2, 241], strides = [1, 1]} : vector<2x256xf32> to vector<2x241xf32>
    %cst_51 = arith.constant 0.000000e+00 : f32
    %555 = vector.broadcast %cst_51 : f32 to vector<2x15xf32>
    %556 = tpu.concatenate %554, %555 in 1 : vector<2x241xf32>, vector<2x15xf32> -> vector<2x256xf32>
    %cst_52 = arith.constant 0.000000e+00 : f32
    %557 = vector.shape_cast %20 : vector<1x256xi1> to vector<1x256xi1>
    %558 = vector.broadcast %557 : vector<1x256xi1> to vector<2x256xi1>
    %559 = vector.broadcast %cst_52 : f32 to vector<2x256xf32>
    %560 = arith.select %558, %556, %559 : vector<2x256xi1>, vector<2x256xf32>
    %c104 = arith.constant 104 : index
    %561 = memref.load %arg2[%c104] : memref<144xf32, #tpu.memory_space<smem>>
    %562 = vector.broadcast %561 : f32 to vector<2x256xf32>
    %563 = arith.mulf %562, %560 : vector<2x256xf32>
    %564 = arith.addf %541, %563 : vector<2x256xf32>
    %c105 = arith.constant 105 : index
    %565 = memref.load %arg2[%c105] : memref<144xf32, #tpu.memory_space<smem>>
    %566 = vector.broadcast %565 : f32 to vector<2x256xf32>
    %567 = arith.mulf %566, %560 : vector<2x256xf32>
    %568 = arith.addf %545, %567 : vector<2x256xf32>
    %c106 = arith.constant 106 : index
    %569 = memref.load %arg2[%c106] : memref<144xf32, #tpu.memory_space<smem>>
    %570 = vector.broadcast %569 : f32 to vector<2x256xf32>
    %571 = arith.mulf %570, %560 : vector<2x256xf32>
    %572 = arith.addf %549, %571 : vector<2x256xf32>
    %c107 = arith.constant 107 : index
    %573 = memref.load %arg2[%c107] : memref<144xf32, #tpu.memory_space<smem>>
    %574 = vector.broadcast %573 : f32 to vector<2x256xf32>
    %575 = arith.mulf %574, %560 : vector<2x256xf32>
    %576 = arith.addf %553, %575 : vector<2x256xf32>
    %577 = vector.extract_strided_slice %25 {offsets = [0, 16], sizes = [2, 240], strides = [1, 1]} : vector<2x256xf32> to vector<2x240xf32>
    %cst_53 = arith.constant 0.000000e+00 : f32
    %578 = vector.broadcast %cst_53 : f32 to vector<2x16xf32>
    %579 = tpu.concatenate %577, %578 in 1 : vector<2x240xf32>, vector<2x16xf32> -> vector<2x256xf32>
    %c120 = arith.constant 120 : index
    %580 = memref.load %arg2[%c120] : memref<144xf32, #tpu.memory_space<smem>>
    %581 = vector.broadcast %580 : f32 to vector<2x256xf32>
    %582 = arith.mulf %581, %579 : vector<2x256xf32>
    %583 = arith.addf %564, %582 : vector<2x256xf32>
    %c121 = arith.constant 121 : index
    %584 = memref.load %arg2[%c121] : memref<144xf32, #tpu.memory_space<smem>>
    %585 = vector.broadcast %584 : f32 to vector<2x256xf32>
    %586 = arith.mulf %585, %579 : vector<2x256xf32>
    %587 = arith.addf %568, %586 : vector<2x256xf32>
    %c122 = arith.constant 122 : index
    %588 = memref.load %arg2[%c122] : memref<144xf32, #tpu.memory_space<smem>>
    %589 = vector.broadcast %588 : f32 to vector<2x256xf32>
    %590 = arith.mulf %589, %579 : vector<2x256xf32>
    %591 = arith.addf %572, %590 : vector<2x256xf32>
    %c123 = arith.constant 123 : index
    %592 = memref.load %arg2[%c123] : memref<144xf32, #tpu.memory_space<smem>>
    %593 = vector.broadcast %592 : f32 to vector<2x256xf32>
    %594 = arith.mulf %593, %579 : vector<2x256xf32>
    %595 = arith.addf %576, %594 : vector<2x256xf32>
    %596 = vector.extract_strided_slice %25 {offsets = [0, 17], sizes = [2, 239], strides = [1, 1]} : vector<2x256xf32> to vector<2x239xf32>
    %cst_54 = arith.constant 0.000000e+00 : f32
    %597 = vector.broadcast %cst_54 : f32 to vector<2x17xf32>
    %598 = tpu.concatenate %596, %597 in 1 : vector<2x239xf32>, vector<2x17xf32> -> vector<2x256xf32>
    %cst_55 = arith.constant 0.000000e+00 : f32
    %599 = vector.shape_cast %18 : vector<1x256xi1> to vector<1x256xi1>
    %600 = vector.broadcast %599 : vector<1x256xi1> to vector<2x256xi1>
    %601 = vector.broadcast %cst_55 : f32 to vector<2x256xf32>
    %602 = arith.select %600, %598, %601 : vector<2x256xi1>, vector<2x256xf32>
    %c136 = arith.constant 136 : index
    %603 = memref.load %arg2[%c136] : memref<144xf32, #tpu.memory_space<smem>>
    %604 = vector.broadcast %603 : f32 to vector<2x256xf32>
    %605 = arith.mulf %604, %602 : vector<2x256xf32>
    %606 = arith.addf %583, %605 : vector<2x256xf32>
    %c137 = arith.constant 137 : index
    %607 = memref.load %arg2[%c137] : memref<144xf32, #tpu.memory_space<smem>>
    %608 = vector.broadcast %607 : f32 to vector<2x256xf32>
    %609 = arith.mulf %608, %602 : vector<2x256xf32>
    %610 = arith.addf %587, %609 : vector<2x256xf32>
    %c138 = arith.constant 138 : index
    %611 = memref.load %arg2[%c138] : memref<144xf32, #tpu.memory_space<smem>>
    %612 = vector.broadcast %611 : f32 to vector<2x256xf32>
    %613 = arith.mulf %612, %602 : vector<2x256xf32>
    %614 = arith.addf %591, %613 : vector<2x256xf32>
    %c139 = arith.constant 139 : index
    %615 = memref.load %arg2[%c139] : memref<144xf32, #tpu.memory_space<smem>>
    %616 = vector.broadcast %615 : f32 to vector<2x256xf32>
    %617 = arith.mulf %616, %602 : vector<2x256xf32>
    %618 = arith.addf %595, %617 : vector<2x256xf32>
    %cst_56 = arith.constant 0.000000e+00 : f32
    %619 = vector.broadcast %cst_56 : f32 to vector<2x17xf32>
    %620 = vector.extract_strided_slice %26 {offsets = [0, 0], sizes = [2, 239], strides = [1, 1]} : vector<2x256xf32> to vector<2x239xf32>
    %621 = tpu.concatenate %619, %620 in 1 : vector<2x17xf32>, vector<2x239xf32> -> vector<2x256xf32>
    %cst_57 = arith.constant 0.000000e+00 : f32
    %622 = vector.shape_cast %20 : vector<1x256xi1> to vector<1x256xi1>
    %623 = vector.broadcast %622 : vector<1x256xi1> to vector<2x256xi1>
    %624 = vector.broadcast %cst_57 : f32 to vector<2x256xf32>
    %625 = arith.select %623, %621, %624 : vector<2x256xi1>, vector<2x256xf32>
    %c12 = arith.constant 12 : index
    %626 = memref.load %arg2[%c12] : memref<144xf32, #tpu.memory_space<smem>>
    %627 = vector.broadcast %626 : f32 to vector<2x256xf32>
    %628 = arith.mulf %627, %625 : vector<2x256xf32>
    %629 = arith.addf %606, %628 : vector<2x256xf32>
    %c13 = arith.constant 13 : index
    %630 = memref.load %arg2[%c13] : memref<144xf32, #tpu.memory_space<smem>>
    %631 = vector.broadcast %630 : f32 to vector<2x256xf32>
    %632 = arith.mulf %631, %625 : vector<2x256xf32>
    %633 = arith.addf %610, %632 : vector<2x256xf32>
    %c14 = arith.constant 14 : index
    %634 = memref.load %arg2[%c14] : memref<144xf32, #tpu.memory_space<smem>>
    %635 = vector.broadcast %634 : f32 to vector<2x256xf32>
    %636 = arith.mulf %635, %625 : vector<2x256xf32>
    %637 = arith.addf %614, %636 : vector<2x256xf32>
    %c15 = arith.constant 15 : index
    %638 = memref.load %arg2[%c15] : memref<144xf32, #tpu.memory_space<smem>>
    %639 = vector.broadcast %638 : f32 to vector<2x256xf32>
    %640 = arith.mulf %639, %625 : vector<2x256xf32>
    %641 = arith.addf %618, %640 : vector<2x256xf32>
    %cst_58 = arith.constant 0.000000e+00 : f32
    %642 = vector.broadcast %cst_58 : f32 to vector<2x16xf32>
    %643 = vector.extract_strided_slice %26 {offsets = [0, 0], sizes = [2, 240], strides = [1, 1]} : vector<2x256xf32> to vector<2x240xf32>
    %644 = tpu.concatenate %642, %643 in 1 : vector<2x16xf32>, vector<2x240xf32> -> vector<2x256xf32>
    %c28 = arith.constant 28 : index
    %645 = memref.load %arg2[%c28] : memref<144xf32, #tpu.memory_space<smem>>
    %646 = vector.broadcast %645 : f32 to vector<2x256xf32>
    %647 = arith.mulf %646, %644 : vector<2x256xf32>
    %648 = arith.addf %629, %647 : vector<2x256xf32>
    %c29 = arith.constant 29 : index
    %649 = memref.load %arg2[%c29] : memref<144xf32, #tpu.memory_space<smem>>
    %650 = vector.broadcast %649 : f32 to vector<2x256xf32>
    %651 = arith.mulf %650, %644 : vector<2x256xf32>
    %652 = arith.addf %633, %651 : vector<2x256xf32>
    %c30 = arith.constant 30 : index
    %653 = memref.load %arg2[%c30] : memref<144xf32, #tpu.memory_space<smem>>
    %654 = vector.broadcast %653 : f32 to vector<2x256xf32>
    %655 = arith.mulf %654, %644 : vector<2x256xf32>
    %656 = arith.addf %637, %655 : vector<2x256xf32>
    %c31 = arith.constant 31 : index
    %657 = memref.load %arg2[%c31] : memref<144xf32, #tpu.memory_space<smem>>
    %658 = vector.broadcast %657 : f32 to vector<2x256xf32>
    %659 = arith.mulf %658, %644 : vector<2x256xf32>
    %660 = arith.addf %641, %659 : vector<2x256xf32>
    %cst_59 = arith.constant 0.000000e+00 : f32
    %661 = vector.broadcast %cst_59 : f32 to vector<2x15xf32>
    %662 = vector.extract_strided_slice %26 {offsets = [0, 0], sizes = [2, 241], strides = [1, 1]} : vector<2x256xf32> to vector<2x241xf32>
    %663 = tpu.concatenate %661, %662 in 1 : vector<2x15xf32>, vector<2x241xf32> -> vector<2x256xf32>
    %cst_60 = arith.constant 0.000000e+00 : f32
    %664 = vector.shape_cast %18 : vector<1x256xi1> to vector<1x256xi1>
    %665 = vector.broadcast %664 : vector<1x256xi1> to vector<2x256xi1>
    %666 = vector.broadcast %cst_60 : f32 to vector<2x256xf32>
    %667 = arith.select %665, %663, %666 : vector<2x256xi1>, vector<2x256xf32>
    %c44 = arith.constant 44 : index
    %668 = memref.load %arg2[%c44] : memref<144xf32, #tpu.memory_space<smem>>
    %669 = vector.broadcast %668 : f32 to vector<2x256xf32>
    %670 = arith.mulf %669, %667 : vector<2x256xf32>
    %671 = arith.addf %648, %670 : vector<2x256xf32>
    %c45 = arith.constant 45 : index
    %672 = memref.load %arg2[%c45] : memref<144xf32, #tpu.memory_space<smem>>
    %673 = vector.broadcast %672 : f32 to vector<2x256xf32>
    %674 = arith.mulf %673, %667 : vector<2x256xf32>
    %675 = arith.addf %652, %674 : vector<2x256xf32>
    %c46 = arith.constant 46 : index
    %676 = memref.load %arg2[%c46] : memref<144xf32, #tpu.memory_space<smem>>
    %677 = vector.broadcast %676 : f32 to vector<2x256xf32>
    %678 = arith.mulf %677, %667 : vector<2x256xf32>
    %679 = arith.addf %656, %678 : vector<2x256xf32>
    %c47 = arith.constant 47 : index
    %680 = memref.load %arg2[%c47] : memref<144xf32, #tpu.memory_space<smem>>
    %681 = vector.broadcast %680 : f32 to vector<2x256xf32>
    %682 = arith.mulf %681, %667 : vector<2x256xf32>
    %683 = arith.addf %660, %682 : vector<2x256xf32>
    %cst_61 = arith.constant 0.000000e+00 : f32
    %684 = vector.broadcast %cst_61 : f32 to vector<2x1xf32>
    %685 = vector.extract_strided_slice %26 {offsets = [0, 0], sizes = [2, 255], strides = [1, 1]} : vector<2x256xf32> to vector<2x255xf32>
    %686 = tpu.concatenate %684, %685 in 1 : vector<2x1xf32>, vector<2x255xf32> -> vector<2x256xf32>
    %cst_62 = arith.constant 0.000000e+00 : f32
    %687 = vector.shape_cast %20 : vector<1x256xi1> to vector<1x256xi1>
    %688 = vector.broadcast %687 : vector<1x256xi1> to vector<2x256xi1>
    %689 = vector.broadcast %cst_62 : f32 to vector<2x256xf32>
    %690 = arith.select %688, %686, %689 : vector<2x256xi1>, vector<2x256xf32>
    %c60 = arith.constant 60 : index
    %691 = memref.load %arg2[%c60] : memref<144xf32, #tpu.memory_space<smem>>
    %692 = vector.broadcast %691 : f32 to vector<2x256xf32>
    %693 = arith.mulf %692, %690 : vector<2x256xf32>
    %694 = arith.addf %671, %693 : vector<2x256xf32>
    %c61 = arith.constant 61 : index
    %695 = memref.load %arg2[%c61] : memref<144xf32, #tpu.memory_space<smem>>
    %696 = vector.broadcast %695 : f32 to vector<2x256xf32>
    %697 = arith.mulf %696, %690 : vector<2x256xf32>
    %698 = arith.addf %675, %697 : vector<2x256xf32>
    %c62 = arith.constant 62 : index
    %699 = memref.load %arg2[%c62] : memref<144xf32, #tpu.memory_space<smem>>
    %700 = vector.broadcast %699 : f32 to vector<2x256xf32>
    %701 = arith.mulf %700, %690 : vector<2x256xf32>
    %702 = arith.addf %679, %701 : vector<2x256xf32>
    %c63 = arith.constant 63 : index
    %703 = memref.load %arg2[%c63] : memref<144xf32, #tpu.memory_space<smem>>
    %704 = vector.broadcast %703 : f32 to vector<2x256xf32>
    %705 = arith.mulf %704, %690 : vector<2x256xf32>
    %706 = arith.addf %683, %705 : vector<2x256xf32>
    %c76 = arith.constant 76 : index
    %707 = memref.load %arg2[%c76] : memref<144xf32, #tpu.memory_space<smem>>
    %708 = vector.broadcast %707 : f32 to vector<2x256xf32>
    %709 = arith.mulf %708, %26 : vector<2x256xf32>
    %710 = arith.addf %694, %709 : vector<2x256xf32>
    %c77 = arith.constant 77 : index
    %711 = memref.load %arg2[%c77] : memref<144xf32, #tpu.memory_space<smem>>
    %712 = vector.broadcast %711 : f32 to vector<2x256xf32>
    %713 = arith.mulf %712, %26 : vector<2x256xf32>
    %714 = arith.addf %698, %713 : vector<2x256xf32>
    %c78 = arith.constant 78 : index
    %715 = memref.load %arg2[%c78] : memref<144xf32, #tpu.memory_space<smem>>
    %716 = vector.broadcast %715 : f32 to vector<2x256xf32>
    %717 = arith.mulf %716, %26 : vector<2x256xf32>
    %718 = arith.addf %702, %717 : vector<2x256xf32>
    %c79 = arith.constant 79 : index
    %719 = memref.load %arg2[%c79] : memref<144xf32, #tpu.memory_space<smem>>
    %720 = vector.broadcast %719 : f32 to vector<2x256xf32>
    %721 = arith.mulf %720, %26 : vector<2x256xf32>
    %722 = arith.addf %706, %721 : vector<2x256xf32>
    %723 = vector.extract_strided_slice %26 {offsets = [0, 1], sizes = [2, 255], strides = [1, 1]} : vector<2x256xf32> to vector<2x255xf32>
    %cst_63 = arith.constant 0.000000e+00 : f32
    %724 = vector.broadcast %cst_63 : f32 to vector<2x1xf32>
    %725 = tpu.concatenate %723, %724 in 1 : vector<2x255xf32>, vector<2x1xf32> -> vector<2x256xf32>
    %cst_64 = arith.constant 0.000000e+00 : f32
    %726 = vector.shape_cast %18 : vector<1x256xi1> to vector<1x256xi1>
    %727 = vector.broadcast %726 : vector<1x256xi1> to vector<2x256xi1>
    %728 = vector.broadcast %cst_64 : f32 to vector<2x256xf32>
    %729 = arith.select %727, %725, %728 : vector<2x256xi1>, vector<2x256xf32>
    %c92 = arith.constant 92 : index
    %730 = memref.load %arg2[%c92] : memref<144xf32, #tpu.memory_space<smem>>
    %731 = vector.broadcast %730 : f32 to vector<2x256xf32>
    %732 = arith.mulf %731, %729 : vector<2x256xf32>
    %733 = arith.addf %710, %732 : vector<2x256xf32>
    %c93 = arith.constant 93 : index
    %734 = memref.load %arg2[%c93] : memref<144xf32, #tpu.memory_space<smem>>
    %735 = vector.broadcast %734 : f32 to vector<2x256xf32>
    %736 = arith.mulf %735, %729 : vector<2x256xf32>
    %737 = arith.addf %714, %736 : vector<2x256xf32>
    %c94 = arith.constant 94 : index
    %738 = memref.load %arg2[%c94] : memref<144xf32, #tpu.memory_space<smem>>
    %739 = vector.broadcast %738 : f32 to vector<2x256xf32>
    %740 = arith.mulf %739, %729 : vector<2x256xf32>
    %741 = arith.addf %718, %740 : vector<2x256xf32>
    %c95 = arith.constant 95 : index
    %742 = memref.load %arg2[%c95] : memref<144xf32, #tpu.memory_space<smem>>
    %743 = vector.broadcast %742 : f32 to vector<2x256xf32>
    %744 = arith.mulf %743, %729 : vector<2x256xf32>
    %745 = arith.addf %722, %744 : vector<2x256xf32>
    %746 = vector.extract_strided_slice %26 {offsets = [0, 15], sizes = [2, 241], strides = [1, 1]} : vector<2x256xf32> to vector<2x241xf32>
    %cst_65 = arith.constant 0.000000e+00 : f32
    %747 = vector.broadcast %cst_65 : f32 to vector<2x15xf32>
    %748 = tpu.concatenate %746, %747 in 1 : vector<2x241xf32>, vector<2x15xf32> -> vector<2x256xf32>
    %cst_66 = arith.constant 0.000000e+00 : f32
    %749 = vector.shape_cast %20 : vector<1x256xi1> to vector<1x256xi1>
    %750 = vector.broadcast %749 : vector<1x256xi1> to vector<2x256xi1>
    %751 = vector.broadcast %cst_66 : f32 to vector<2x256xf32>
    %752 = arith.select %750, %748, %751 : vector<2x256xi1>, vector<2x256xf32>
    %c108 = arith.constant 108 : index
    %753 = memref.load %arg2[%c108] : memref<144xf32, #tpu.memory_space<smem>>
    %754 = vector.broadcast %753 : f32 to vector<2x256xf32>
    %755 = arith.mulf %754, %752 : vector<2x256xf32>
    %756 = arith.addf %733, %755 : vector<2x256xf32>
    %c109 = arith.constant 109 : index
    %757 = memref.load %arg2[%c109] : memref<144xf32, #tpu.memory_space<smem>>
    %758 = vector.broadcast %757 : f32 to vector<2x256xf32>
    %759 = arith.mulf %758, %752 : vector<2x256xf32>
    %760 = arith.addf %737, %759 : vector<2x256xf32>
    %c110 = arith.constant 110 : index
    %761 = memref.load %arg2[%c110] : memref<144xf32, #tpu.memory_space<smem>>
    %762 = vector.broadcast %761 : f32 to vector<2x256xf32>
    %763 = arith.mulf %762, %752 : vector<2x256xf32>
    %764 = arith.addf %741, %763 : vector<2x256xf32>
    %c111 = arith.constant 111 : index
    %765 = memref.load %arg2[%c111] : memref<144xf32, #tpu.memory_space<smem>>
    %766 = vector.broadcast %765 : f32 to vector<2x256xf32>
    %767 = arith.mulf %766, %752 : vector<2x256xf32>
    %768 = arith.addf %745, %767 : vector<2x256xf32>
    %769 = vector.extract_strided_slice %26 {offsets = [0, 16], sizes = [2, 240], strides = [1, 1]} : vector<2x256xf32> to vector<2x240xf32>
    %cst_67 = arith.constant 0.000000e+00 : f32
    %770 = vector.broadcast %cst_67 : f32 to vector<2x16xf32>
    %771 = tpu.concatenate %769, %770 in 1 : vector<2x240xf32>, vector<2x16xf32> -> vector<2x256xf32>
    %c124 = arith.constant 124 : index
    %772 = memref.load %arg2[%c124] : memref<144xf32, #tpu.memory_space<smem>>
    %773 = vector.broadcast %772 : f32 to vector<2x256xf32>
    %774 = arith.mulf %773, %771 : vector<2x256xf32>
    %775 = arith.addf %756, %774 : vector<2x256xf32>
    %c125 = arith.constant 125 : index
    %776 = memref.load %arg2[%c125] : memref<144xf32, #tpu.memory_space<smem>>
    %777 = vector.broadcast %776 : f32 to vector<2x256xf32>
    %778 = arith.mulf %777, %771 : vector<2x256xf32>
    %779 = arith.addf %760, %778 : vector<2x256xf32>
    %c126 = arith.constant 126 : index
    %780 = memref.load %arg2[%c126] : memref<144xf32, #tpu.memory_space<smem>>
    %781 = vector.broadcast %780 : f32 to vector<2x256xf32>
    %782 = arith.mulf %781, %771 : vector<2x256xf32>
    %783 = arith.addf %764, %782 : vector<2x256xf32>
    %c127 = arith.constant 127 : index
    %784 = memref.load %arg2[%c127] : memref<144xf32, #tpu.memory_space<smem>>
    %785 = vector.broadcast %784 : f32 to vector<2x256xf32>
    %786 = arith.mulf %785, %771 : vector<2x256xf32>
    %787 = arith.addf %768, %786 : vector<2x256xf32>
    %788 = vector.extract_strided_slice %26 {offsets = [0, 17], sizes = [2, 239], strides = [1, 1]} : vector<2x256xf32> to vector<2x239xf32>
    %cst_68 = arith.constant 0.000000e+00 : f32
    %789 = vector.broadcast %cst_68 : f32 to vector<2x17xf32>
    %790 = tpu.concatenate %788, %789 in 1 : vector<2x239xf32>, vector<2x17xf32> -> vector<2x256xf32>
    %cst_69 = arith.constant 0.000000e+00 : f32
    %791 = vector.shape_cast %18 : vector<1x256xi1> to vector<1x256xi1>
    %792 = vector.broadcast %791 : vector<1x256xi1> to vector<2x256xi1>
    %793 = vector.broadcast %cst_69 : f32 to vector<2x256xf32>
    %794 = arith.select %792, %790, %793 : vector<2x256xi1>, vector<2x256xf32>
    %c140 = arith.constant 140 : index
    %795 = memref.load %arg2[%c140] : memref<144xf32, #tpu.memory_space<smem>>
    %796 = vector.broadcast %795 : f32 to vector<2x256xf32>
    %797 = arith.mulf %796, %794 : vector<2x256xf32>
    %798 = arith.addf %775, %797 : vector<2x256xf32>
    %c141 = arith.constant 141 : index
    %799 = memref.load %arg2[%c141] : memref<144xf32, #tpu.memory_space<smem>>
    %800 = vector.broadcast %799 : f32 to vector<2x256xf32>
    %801 = arith.mulf %800, %794 : vector<2x256xf32>
    %802 = arith.addf %779, %801 : vector<2x256xf32>
    %c142 = arith.constant 142 : index
    %803 = memref.load %arg2[%c142] : memref<144xf32, #tpu.memory_space<smem>>
    %804 = vector.broadcast %803 : f32 to vector<2x256xf32>
    %805 = arith.mulf %804, %794 : vector<2x256xf32>
    %806 = arith.addf %783, %805 : vector<2x256xf32>
    %c143 = arith.constant 143 : index
    %807 = memref.load %arg2[%c143] : memref<144xf32, #tpu.memory_space<smem>>
    %808 = vector.broadcast %807 : f32 to vector<2x256xf32>
    %809 = arith.mulf %808, %794 : vector<2x256xf32>
    %810 = arith.addf %787, %809 : vector<2x256xf32>
    %cst_70 = arith.constant 0.000000e+00 : f32
    %811 = vector.broadcast %cst_70 : f32 to vector<2x256xf32>
    %812 = arith.maximumf %798, %811 : vector<2x256xf32>
    %cst_71 = arith.constant 0.000000e+00 : f32
    %813 = vector.broadcast %cst_71 : f32 to vector<2x256xf32>
    %814 = arith.maximumf %802, %813 : vector<2x256xf32>
    %cst_72 = arith.constant 0.000000e+00 : f32
    %815 = vector.broadcast %cst_72 : f32 to vector<2x256xf32>
    %816 = arith.maximumf %806, %815 : vector<2x256xf32>
    %cst_73 = arith.constant 0.000000e+00 : f32
    %817 = vector.broadcast %cst_73 : f32 to vector<2x256xf32>
    %818 = arith.maximumf %810, %817 : vector<2x256xf32>
    %cst_74 = arith.constant 0.000000e+00 : f32
    %819 = vector.broadcast %cst_74 : f32 to vector<2x256xf32>
    %c0_75 = arith.constant 0 : index
    %820 = memref.load %arg5[%c0_75] : memref<4xf32, #tpu.memory_space<smem>>
    %821 = vector.broadcast %820 : f32 to vector<2x256xf32>
    %822 = arith.addf %819, %821 : vector<2x256xf32>
    %cst_76 = arith.constant 0.000000e+00 : f32
    %823 = vector.broadcast %cst_76 : f32 to vector<2x256xf32>
    %c1_77 = arith.constant 1 : index
    %824 = memref.load %arg5[%c1_77] : memref<4xf32, #tpu.memory_space<smem>>
    %825 = vector.broadcast %824 : f32 to vector<2x256xf32>
    %826 = arith.addf %823, %825 : vector<2x256xf32>
    %cst_78 = arith.constant 0.000000e+00 : f32
    %827 = vector.broadcast %cst_78 : f32 to vector<2x256xf32>
    %c2_79 = arith.constant 2 : index
    %828 = memref.load %arg5[%c2_79] : memref<4xf32, #tpu.memory_space<smem>>
    %829 = vector.broadcast %828 : f32 to vector<2x256xf32>
    %830 = arith.addf %827, %829 : vector<2x256xf32>
    %cst_80 = arith.constant 0.000000e+00 : f32
    %831 = vector.broadcast %cst_80 : f32 to vector<2x256xf32>
    %c3_81 = arith.constant 3 : index
    %832 = memref.load %arg5[%c3_81] : memref<4xf32, #tpu.memory_space<smem>>
    %833 = vector.broadcast %832 : f32 to vector<2x256xf32>
    %834 = arith.addf %831, %833 : vector<2x256xf32>
    %cst_82 = arith.constant 0.000000e+00 : f32
    %835 = vector.broadcast %cst_82 : f32 to vector<2x17xf32>
    %836 = vector.extract_strided_slice %812 {offsets = [0, 0], sizes = [2, 239], strides = [1, 1]} : vector<2x256xf32> to vector<2x239xf32>
    %837 = tpu.concatenate %835, %836 in 1 : vector<2x17xf32>, vector<2x239xf32> -> vector<2x256xf32>
    %cst_83 = arith.constant 0.000000e+00 : f32
    %838 = vector.shape_cast %20 : vector<1x256xi1> to vector<1x256xi1>
    %839 = vector.broadcast %838 : vector<1x256xi1> to vector<2x256xi1>
    %840 = vector.broadcast %cst_83 : f32 to vector<2x256xf32>
    %841 = arith.select %839, %837, %840 : vector<2x256xi1>, vector<2x256xf32>
    %c0_84 = arith.constant 0 : index
    %842 = memref.load %arg4[%c0_84] : memref<144xf32, #tpu.memory_space<smem>>
    %843 = vector.broadcast %842 : f32 to vector<2x256xf32>
    %844 = arith.mulf %843, %841 : vector<2x256xf32>
    %845 = arith.addf %822, %844 : vector<2x256xf32>
    %c1_85 = arith.constant 1 : index
    %846 = memref.load %arg4[%c1_85] : memref<144xf32, #tpu.memory_space<smem>>
    %847 = vector.broadcast %846 : f32 to vector<2x256xf32>
    %848 = arith.mulf %847, %841 : vector<2x256xf32>
    %849 = arith.addf %826, %848 : vector<2x256xf32>
    %c2_86 = arith.constant 2 : index
    %850 = memref.load %arg4[%c2_86] : memref<144xf32, #tpu.memory_space<smem>>
    %851 = vector.broadcast %850 : f32 to vector<2x256xf32>
    %852 = arith.mulf %851, %841 : vector<2x256xf32>
    %853 = arith.addf %830, %852 : vector<2x256xf32>
    %c3_87 = arith.constant 3 : index
    %854 = memref.load %arg4[%c3_87] : memref<144xf32, #tpu.memory_space<smem>>
    %855 = vector.broadcast %854 : f32 to vector<2x256xf32>
    %856 = arith.mulf %855, %841 : vector<2x256xf32>
    %857 = arith.addf %834, %856 : vector<2x256xf32>
    %cst_88 = arith.constant 0.000000e+00 : f32
    %858 = vector.broadcast %cst_88 : f32 to vector<2x16xf32>
    %859 = vector.extract_strided_slice %812 {offsets = [0, 0], sizes = [2, 240], strides = [1, 1]} : vector<2x256xf32> to vector<2x240xf32>
    %860 = tpu.concatenate %858, %859 in 1 : vector<2x16xf32>, vector<2x240xf32> -> vector<2x256xf32>
    %c16_89 = arith.constant 16 : index
    %861 = memref.load %arg4[%c16_89] : memref<144xf32, #tpu.memory_space<smem>>
    %862 = vector.broadcast %861 : f32 to vector<2x256xf32>
    %863 = arith.mulf %862, %860 : vector<2x256xf32>
    %864 = arith.addf %845, %863 : vector<2x256xf32>
    %c17_90 = arith.constant 17 : index
    %865 = memref.load %arg4[%c17_90] : memref<144xf32, #tpu.memory_space<smem>>
    %866 = vector.broadcast %865 : f32 to vector<2x256xf32>
    %867 = arith.mulf %866, %860 : vector<2x256xf32>
    %868 = arith.addf %849, %867 : vector<2x256xf32>
    %c18_91 = arith.constant 18 : index
    %869 = memref.load %arg4[%c18_91] : memref<144xf32, #tpu.memory_space<smem>>
    %870 = vector.broadcast %869 : f32 to vector<2x256xf32>
    %871 = arith.mulf %870, %860 : vector<2x256xf32>
    %872 = arith.addf %853, %871 : vector<2x256xf32>
    %c19_92 = arith.constant 19 : index
    %873 = memref.load %arg4[%c19_92] : memref<144xf32, #tpu.memory_space<smem>>
    %874 = vector.broadcast %873 : f32 to vector<2x256xf32>
    %875 = arith.mulf %874, %860 : vector<2x256xf32>
    %876 = arith.addf %857, %875 : vector<2x256xf32>
    %cst_93 = arith.constant 0.000000e+00 : f32
    %877 = vector.broadcast %cst_93 : f32 to vector<2x15xf32>
    %878 = vector.extract_strided_slice %812 {offsets = [0, 0], sizes = [2, 241], strides = [1, 1]} : vector<2x256xf32> to vector<2x241xf32>
    %879 = tpu.concatenate %877, %878 in 1 : vector<2x15xf32>, vector<2x241xf32> -> vector<2x256xf32>
    %cst_94 = arith.constant 0.000000e+00 : f32
    %880 = vector.shape_cast %18 : vector<1x256xi1> to vector<1x256xi1>
    %881 = vector.broadcast %880 : vector<1x256xi1> to vector<2x256xi1>
    %882 = vector.broadcast %cst_94 : f32 to vector<2x256xf32>
    %883 = arith.select %881, %879, %882 : vector<2x256xi1>, vector<2x256xf32>
    %c32_95 = arith.constant 32 : index
    %884 = memref.load %arg4[%c32_95] : memref<144xf32, #tpu.memory_space<smem>>
    %885 = vector.broadcast %884 : f32 to vector<2x256xf32>
    %886 = arith.mulf %885, %883 : vector<2x256xf32>
    %887 = arith.addf %864, %886 : vector<2x256xf32>
    %c33_96 = arith.constant 33 : index
    %888 = memref.load %arg4[%c33_96] : memref<144xf32, #tpu.memory_space<smem>>
    %889 = vector.broadcast %888 : f32 to vector<2x256xf32>
    %890 = arith.mulf %889, %883 : vector<2x256xf32>
    %891 = arith.addf %868, %890 : vector<2x256xf32>
    %c34_97 = arith.constant 34 : index
    %892 = memref.load %arg4[%c34_97] : memref<144xf32, #tpu.memory_space<smem>>
    %893 = vector.broadcast %892 : f32 to vector<2x256xf32>
    %894 = arith.mulf %893, %883 : vector<2x256xf32>
    %895 = arith.addf %872, %894 : vector<2x256xf32>
    %c35_98 = arith.constant 35 : index
    %896 = memref.load %arg4[%c35_98] : memref<144xf32, #tpu.memory_space<smem>>
    %897 = vector.broadcast %896 : f32 to vector<2x256xf32>
    %898 = arith.mulf %897, %883 : vector<2x256xf32>
    %899 = arith.addf %876, %898 : vector<2x256xf32>
    %cst_99 = arith.constant 0.000000e+00 : f32
    %900 = vector.broadcast %cst_99 : f32 to vector<2x1xf32>
    %901 = vector.extract_strided_slice %812 {offsets = [0, 0], sizes = [2, 255], strides = [1, 1]} : vector<2x256xf32> to vector<2x255xf32>
    %902 = tpu.concatenate %900, %901 in 1 : vector<2x1xf32>, vector<2x255xf32> -> vector<2x256xf32>
    %cst_100 = arith.constant 0.000000e+00 : f32
    %903 = vector.shape_cast %20 : vector<1x256xi1> to vector<1x256xi1>
    %904 = vector.broadcast %903 : vector<1x256xi1> to vector<2x256xi1>
    %905 = vector.broadcast %cst_100 : f32 to vector<2x256xf32>
    %906 = arith.select %904, %902, %905 : vector<2x256xi1>, vector<2x256xf32>
    %c48_101 = arith.constant 48 : index
    %907 = memref.load %arg4[%c48_101] : memref<144xf32, #tpu.memory_space<smem>>
    %908 = vector.broadcast %907 : f32 to vector<2x256xf32>
    %909 = arith.mulf %908, %906 : vector<2x256xf32>
    %910 = arith.addf %887, %909 : vector<2x256xf32>
    %c49_102 = arith.constant 49 : index
    %911 = memref.load %arg4[%c49_102] : memref<144xf32, #tpu.memory_space<smem>>
    %912 = vector.broadcast %911 : f32 to vector<2x256xf32>
    %913 = arith.mulf %912, %906 : vector<2x256xf32>
    %914 = arith.addf %891, %913 : vector<2x256xf32>
    %c50_103 = arith.constant 50 : index
    %915 = memref.load %arg4[%c50_103] : memref<144xf32, #tpu.memory_space<smem>>
    %916 = vector.broadcast %915 : f32 to vector<2x256xf32>
    %917 = arith.mulf %916, %906 : vector<2x256xf32>
    %918 = arith.addf %895, %917 : vector<2x256xf32>
    %c51_104 = arith.constant 51 : index
    %919 = memref.load %arg4[%c51_104] : memref<144xf32, #tpu.memory_space<smem>>
    %920 = vector.broadcast %919 : f32 to vector<2x256xf32>
    %921 = arith.mulf %920, %906 : vector<2x256xf32>
    %922 = arith.addf %899, %921 : vector<2x256xf32>
    %c64_105 = arith.constant 64 : index
    %923 = memref.load %arg4[%c64_105] : memref<144xf32, #tpu.memory_space<smem>>
    %924 = vector.broadcast %923 : f32 to vector<2x256xf32>
    %925 = arith.mulf %924, %812 : vector<2x256xf32>
    %926 = arith.addf %910, %925 : vector<2x256xf32>
    %c65_106 = arith.constant 65 : index
    %927 = memref.load %arg4[%c65_106] : memref<144xf32, #tpu.memory_space<smem>>
    %928 = vector.broadcast %927 : f32 to vector<2x256xf32>
    %929 = arith.mulf %928, %812 : vector<2x256xf32>
    %930 = arith.addf %914, %929 : vector<2x256xf32>
    %c66_107 = arith.constant 66 : index
    %931 = memref.load %arg4[%c66_107] : memref<144xf32, #tpu.memory_space<smem>>
    %932 = vector.broadcast %931 : f32 to vector<2x256xf32>
    %933 = arith.mulf %932, %812 : vector<2x256xf32>
    %934 = arith.addf %918, %933 : vector<2x256xf32>
    %c67_108 = arith.constant 67 : index
    %935 = memref.load %arg4[%c67_108] : memref<144xf32, #tpu.memory_space<smem>>
    %936 = vector.broadcast %935 : f32 to vector<2x256xf32>
    %937 = arith.mulf %936, %812 : vector<2x256xf32>
    %938 = arith.addf %922, %937 : vector<2x256xf32>
    %939 = vector.extract_strided_slice %812 {offsets = [0, 1], sizes = [2, 255], strides = [1, 1]} : vector<2x256xf32> to vector<2x255xf32>
    %cst_109 = arith.constant 0.000000e+00 : f32
    %940 = vector.broadcast %cst_109 : f32 to vector<2x1xf32>
    %941 = tpu.concatenate %939, %940 in 1 : vector<2x255xf32>, vector<2x1xf32> -> vector<2x256xf32>
    %cst_110 = arith.constant 0.000000e+00 : f32
    %942 = vector.shape_cast %18 : vector<1x256xi1> to vector<1x256xi1>
    %943 = vector.broadcast %942 : vector<1x256xi1> to vector<2x256xi1>
    %944 = vector.broadcast %cst_110 : f32 to vector<2x256xf32>
    %945 = arith.select %943, %941, %944 : vector<2x256xi1>, vector<2x256xf32>
    %c80_111 = arith.constant 80 : index
    %946 = memref.load %arg4[%c80_111] : memref<144xf32, #tpu.memory_space<smem>>
    %947 = vector.broadcast %946 : f32 to vector<2x256xf32>
    %948 = arith.mulf %947, %945 : vector<2x256xf32>
    %949 = arith.addf %926, %948 : vector<2x256xf32>
    %c81_112 = arith.constant 81 : index
    %950 = memref.load %arg4[%c81_112] : memref<144xf32, #tpu.memory_space<smem>>
    %951 = vector.broadcast %950 : f32 to vector<2x256xf32>
    %952 = arith.mulf %951, %945 : vector<2x256xf32>
    %953 = arith.addf %930, %952 : vector<2x256xf32>
    %c82_113 = arith.constant 82 : index
    %954 = memref.load %arg4[%c82_113] : memref<144xf32, #tpu.memory_space<smem>>
    %955 = vector.broadcast %954 : f32 to vector<2x256xf32>
    %956 = arith.mulf %955, %945 : vector<2x256xf32>
    %957 = arith.addf %934, %956 : vector<2x256xf32>
    %c83_114 = arith.constant 83 : index
    %958 = memref.load %arg4[%c83_114] : memref<144xf32, #tpu.memory_space<smem>>
    %959 = vector.broadcast %958 : f32 to vector<2x256xf32>
    %960 = arith.mulf %959, %945 : vector<2x256xf32>
    %961 = arith.addf %938, %960 : vector<2x256xf32>
    %962 = vector.extract_strided_slice %812 {offsets = [0, 15], sizes = [2, 241], strides = [1, 1]} : vector<2x256xf32> to vector<2x241xf32>
    %cst_115 = arith.constant 0.000000e+00 : f32
    %963 = vector.broadcast %cst_115 : f32 to vector<2x15xf32>
    %964 = tpu.concatenate %962, %963 in 1 : vector<2x241xf32>, vector<2x15xf32> -> vector<2x256xf32>
    %cst_116 = arith.constant 0.000000e+00 : f32
    %965 = vector.shape_cast %20 : vector<1x256xi1> to vector<1x256xi1>
    %966 = vector.broadcast %965 : vector<1x256xi1> to vector<2x256xi1>
    %967 = vector.broadcast %cst_116 : f32 to vector<2x256xf32>
    %968 = arith.select %966, %964, %967 : vector<2x256xi1>, vector<2x256xf32>
    %c96_117 = arith.constant 96 : index
    %969 = memref.load %arg4[%c96_117] : memref<144xf32, #tpu.memory_space<smem>>
    %970 = vector.broadcast %969 : f32 to vector<2x256xf32>
    %971 = arith.mulf %970, %968 : vector<2x256xf32>
    %972 = arith.addf %949, %971 : vector<2x256xf32>
    %c97_118 = arith.constant 97 : index
    %973 = memref.load %arg4[%c97_118] : memref<144xf32, #tpu.memory_space<smem>>
    %974 = vector.broadcast %973 : f32 to vector<2x256xf32>
    %975 = arith.mulf %974, %968 : vector<2x256xf32>
    %976 = arith.addf %953, %975 : vector<2x256xf32>
    %c98_119 = arith.constant 98 : index
    %977 = memref.load %arg4[%c98_119] : memref<144xf32, #tpu.memory_space<smem>>
    %978 = vector.broadcast %977 : f32 to vector<2x256xf32>
    %979 = arith.mulf %978, %968 : vector<2x256xf32>
    %980 = arith.addf %957, %979 : vector<2x256xf32>
    %c99_120 = arith.constant 99 : index
    %981 = memref.load %arg4[%c99_120] : memref<144xf32, #tpu.memory_space<smem>>
    %982 = vector.broadcast %981 : f32 to vector<2x256xf32>
    %983 = arith.mulf %982, %968 : vector<2x256xf32>
    %984 = arith.addf %961, %983 : vector<2x256xf32>
    %985 = vector.extract_strided_slice %812 {offsets = [0, 16], sizes = [2, 240], strides = [1, 1]} : vector<2x256xf32> to vector<2x240xf32>
    %cst_121 = arith.constant 0.000000e+00 : f32
    %986 = vector.broadcast %cst_121 : f32 to vector<2x16xf32>
    %987 = tpu.concatenate %985, %986 in 1 : vector<2x240xf32>, vector<2x16xf32> -> vector<2x256xf32>
    %c112_122 = arith.constant 112 : index
    %988 = memref.load %arg4[%c112_122] : memref<144xf32, #tpu.memory_space<smem>>
    %989 = vector.broadcast %988 : f32 to vector<2x256xf32>
    %990 = arith.mulf %989, %987 : vector<2x256xf32>
    %991 = arith.addf %972, %990 : vector<2x256xf32>
    %c113_123 = arith.constant 113 : index
    %992 = memref.load %arg4[%c113_123] : memref<144xf32, #tpu.memory_space<smem>>
    %993 = vector.broadcast %992 : f32 to vector<2x256xf32>
    %994 = arith.mulf %993, %987 : vector<2x256xf32>
    %995 = arith.addf %976, %994 : vector<2x256xf32>
    %c114_124 = arith.constant 114 : index
    %996 = memref.load %arg4[%c114_124] : memref<144xf32, #tpu.memory_space<smem>>
    %997 = vector.broadcast %996 : f32 to vector<2x256xf32>
    %998 = arith.mulf %997, %987 : vector<2x256xf32>
    %999 = arith.addf %980, %998 : vector<2x256xf32>
    %c115_125 = arith.constant 115 : index
    %1000 = memref.load %arg4[%c115_125] : memref<144xf32, #tpu.memory_space<smem>>
    %1001 = vector.broadcast %1000 : f32 to vector<2x256xf32>
    %1002 = arith.mulf %1001, %987 : vector<2x256xf32>
    %1003 = arith.addf %984, %1002 : vector<2x256xf32>
    %1004 = vector.extract_strided_slice %812 {offsets = [0, 17], sizes = [2, 239], strides = [1, 1]} : vector<2x256xf32> to vector<2x239xf32>
    %cst_126 = arith.constant 0.000000e+00 : f32
    %1005 = vector.broadcast %cst_126 : f32 to vector<2x17xf32>
    %1006 = tpu.concatenate %1004, %1005 in 1 : vector<2x239xf32>, vector<2x17xf32> -> vector<2x256xf32>
    %cst_127 = arith.constant 0.000000e+00 : f32
    %1007 = vector.shape_cast %18 : vector<1x256xi1> to vector<1x256xi1>
    %1008 = vector.broadcast %1007 : vector<1x256xi1> to vector<2x256xi1>
    %1009 = vector.broadcast %cst_127 : f32 to vector<2x256xf32>
    %1010 = arith.select %1008, %1006, %1009 : vector<2x256xi1>, vector<2x256xf32>
    %c128_128 = arith.constant 128 : index
    %1011 = memref.load %arg4[%c128_128] : memref<144xf32, #tpu.memory_space<smem>>
    %1012 = vector.broadcast %1011 : f32 to vector<2x256xf32>
    %1013 = arith.mulf %1012, %1010 : vector<2x256xf32>
    %1014 = arith.addf %991, %1013 : vector<2x256xf32>
    %c129_129 = arith.constant 129 : index
    %1015 = memref.load %arg4[%c129_129] : memref<144xf32, #tpu.memory_space<smem>>
    %1016 = vector.broadcast %1015 : f32 to vector<2x256xf32>
    %1017 = arith.mulf %1016, %1010 : vector<2x256xf32>
    %1018 = arith.addf %995, %1017 : vector<2x256xf32>
    %c130_130 = arith.constant 130 : index
    %1019 = memref.load %arg4[%c130_130] : memref<144xf32, #tpu.memory_space<smem>>
    %1020 = vector.broadcast %1019 : f32 to vector<2x256xf32>
    %1021 = arith.mulf %1020, %1010 : vector<2x256xf32>
    %1022 = arith.addf %999, %1021 : vector<2x256xf32>
    %c131_131 = arith.constant 131 : index
    %1023 = memref.load %arg4[%c131_131] : memref<144xf32, #tpu.memory_space<smem>>
    %1024 = vector.broadcast %1023 : f32 to vector<2x256xf32>
    %1025 = arith.mulf %1024, %1010 : vector<2x256xf32>
    %1026 = arith.addf %1003, %1025 : vector<2x256xf32>
    %cst_132 = arith.constant 0.000000e+00 : f32
    %1027 = vector.broadcast %cst_132 : f32 to vector<2x17xf32>
    %1028 = vector.extract_strided_slice %814 {offsets = [0, 0], sizes = [2, 239], strides = [1, 1]} : vector<2x256xf32> to vector<2x239xf32>
    %1029 = tpu.concatenate %1027, %1028 in 1 : vector<2x17xf32>, vector<2x239xf32> -> vector<2x256xf32>
    %cst_133 = arith.constant 0.000000e+00 : f32
    %1030 = vector.shape_cast %20 : vector<1x256xi1> to vector<1x256xi1>
    %1031 = vector.broadcast %1030 : vector<1x256xi1> to vector<2x256xi1>
    %1032 = vector.broadcast %cst_133 : f32 to vector<2x256xf32>
    %1033 = arith.select %1031, %1029, %1032 : vector<2x256xi1>, vector<2x256xf32>
    %c4_134 = arith.constant 4 : index
    %1034 = memref.load %arg4[%c4_134] : memref<144xf32, #tpu.memory_space<smem>>
    %1035 = vector.broadcast %1034 : f32 to vector<2x256xf32>
    %1036 = arith.mulf %1035, %1033 : vector<2x256xf32>
    %1037 = arith.addf %1014, %1036 : vector<2x256xf32>
    %c5_135 = arith.constant 5 : index
    %1038 = memref.load %arg4[%c5_135] : memref<144xf32, #tpu.memory_space<smem>>
    %1039 = vector.broadcast %1038 : f32 to vector<2x256xf32>
    %1040 = arith.mulf %1039, %1033 : vector<2x256xf32>
    %1041 = arith.addf %1018, %1040 : vector<2x256xf32>
    %c6_136 = arith.constant 6 : index
    %1042 = memref.load %arg4[%c6_136] : memref<144xf32, #tpu.memory_space<smem>>
    %1043 = vector.broadcast %1042 : f32 to vector<2x256xf32>
    %1044 = arith.mulf %1043, %1033 : vector<2x256xf32>
    %1045 = arith.addf %1022, %1044 : vector<2x256xf32>
    %c7_137 = arith.constant 7 : index
    %1046 = memref.load %arg4[%c7_137] : memref<144xf32, #tpu.memory_space<smem>>
    %1047 = vector.broadcast %1046 : f32 to vector<2x256xf32>
    %1048 = arith.mulf %1047, %1033 : vector<2x256xf32>
    %1049 = arith.addf %1026, %1048 : vector<2x256xf32>
    %cst_138 = arith.constant 0.000000e+00 : f32
    %1050 = vector.broadcast %cst_138 : f32 to vector<2x16xf32>
    %1051 = vector.extract_strided_slice %814 {offsets = [0, 0], sizes = [2, 240], strides = [1, 1]} : vector<2x256xf32> to vector<2x240xf32>
    %1052 = tpu.concatenate %1050, %1051 in 1 : vector<2x16xf32>, vector<2x240xf32> -> vector<2x256xf32>
    %c20_139 = arith.constant 20 : index
    %1053 = memref.load %arg4[%c20_139] : memref<144xf32, #tpu.memory_space<smem>>
    %1054 = vector.broadcast %1053 : f32 to vector<2x256xf32>
    %1055 = arith.mulf %1054, %1052 : vector<2x256xf32>
    %1056 = arith.addf %1037, %1055 : vector<2x256xf32>
    %c21_140 = arith.constant 21 : index
    %1057 = memref.load %arg4[%c21_140] : memref<144xf32, #tpu.memory_space<smem>>
    %1058 = vector.broadcast %1057 : f32 to vector<2x256xf32>
    %1059 = arith.mulf %1058, %1052 : vector<2x256xf32>
    %1060 = arith.addf %1041, %1059 : vector<2x256xf32>
    %c22_141 = arith.constant 22 : index
    %1061 = memref.load %arg4[%c22_141] : memref<144xf32, #tpu.memory_space<smem>>
    %1062 = vector.broadcast %1061 : f32 to vector<2x256xf32>
    %1063 = arith.mulf %1062, %1052 : vector<2x256xf32>
    %1064 = arith.addf %1045, %1063 : vector<2x256xf32>
    %c23_142 = arith.constant 23 : index
    %1065 = memref.load %arg4[%c23_142] : memref<144xf32, #tpu.memory_space<smem>>
    %1066 = vector.broadcast %1065 : f32 to vector<2x256xf32>
    %1067 = arith.mulf %1066, %1052 : vector<2x256xf32>
    %1068 = arith.addf %1049, %1067 : vector<2x256xf32>
    %cst_143 = arith.constant 0.000000e+00 : f32
    %1069 = vector.broadcast %cst_143 : f32 to vector<2x15xf32>
    %1070 = vector.extract_strided_slice %814 {offsets = [0, 0], sizes = [2, 241], strides = [1, 1]} : vector<2x256xf32> to vector<2x241xf32>
    %1071 = tpu.concatenate %1069, %1070 in 1 : vector<2x15xf32>, vector<2x241xf32> -> vector<2x256xf32>
    %cst_144 = arith.constant 0.000000e+00 : f32
    %1072 = vector.shape_cast %18 : vector<1x256xi1> to vector<1x256xi1>
    %1073 = vector.broadcast %1072 : vector<1x256xi1> to vector<2x256xi1>
    %1074 = vector.broadcast %cst_144 : f32 to vector<2x256xf32>
    %1075 = arith.select %1073, %1071, %1074 : vector<2x256xi1>, vector<2x256xf32>
    %c36_145 = arith.constant 36 : index
    %1076 = memref.load %arg4[%c36_145] : memref<144xf32, #tpu.memory_space<smem>>
    %1077 = vector.broadcast %1076 : f32 to vector<2x256xf32>
    %1078 = arith.mulf %1077, %1075 : vector<2x256xf32>
    %1079 = arith.addf %1056, %1078 : vector<2x256xf32>
    %c37_146 = arith.constant 37 : index
    %1080 = memref.load %arg4[%c37_146] : memref<144xf32, #tpu.memory_space<smem>>
    %1081 = vector.broadcast %1080 : f32 to vector<2x256xf32>
    %1082 = arith.mulf %1081, %1075 : vector<2x256xf32>
    %1083 = arith.addf %1060, %1082 : vector<2x256xf32>
    %c38_147 = arith.constant 38 : index
    %1084 = memref.load %arg4[%c38_147] : memref<144xf32, #tpu.memory_space<smem>>
    %1085 = vector.broadcast %1084 : f32 to vector<2x256xf32>
    %1086 = arith.mulf %1085, %1075 : vector<2x256xf32>
    %1087 = arith.addf %1064, %1086 : vector<2x256xf32>
    %c39_148 = arith.constant 39 : index
    %1088 = memref.load %arg4[%c39_148] : memref<144xf32, #tpu.memory_space<smem>>
    %1089 = vector.broadcast %1088 : f32 to vector<2x256xf32>
    %1090 = arith.mulf %1089, %1075 : vector<2x256xf32>
    %1091 = arith.addf %1068, %1090 : vector<2x256xf32>
    %cst_149 = arith.constant 0.000000e+00 : f32
    %1092 = vector.broadcast %cst_149 : f32 to vector<2x1xf32>
    %1093 = vector.extract_strided_slice %814 {offsets = [0, 0], sizes = [2, 255], strides = [1, 1]} : vector<2x256xf32> to vector<2x255xf32>
    %1094 = tpu.concatenate %1092, %1093 in 1 : vector<2x1xf32>, vector<2x255xf32> -> vector<2x256xf32>
    %cst_150 = arith.constant 0.000000e+00 : f32
    %1095 = vector.shape_cast %20 : vector<1x256xi1> to vector<1x256xi1>
    %1096 = vector.broadcast %1095 : vector<1x256xi1> to vector<2x256xi1>
    %1097 = vector.broadcast %cst_150 : f32 to vector<2x256xf32>
    %1098 = arith.select %1096, %1094, %1097 : vector<2x256xi1>, vector<2x256xf32>
    %c52_151 = arith.constant 52 : index
    %1099 = memref.load %arg4[%c52_151] : memref<144xf32, #tpu.memory_space<smem>>
    %1100 = vector.broadcast %1099 : f32 to vector<2x256xf32>
    %1101 = arith.mulf %1100, %1098 : vector<2x256xf32>
    %1102 = arith.addf %1079, %1101 : vector<2x256xf32>
    %c53_152 = arith.constant 53 : index
    %1103 = memref.load %arg4[%c53_152] : memref<144xf32, #tpu.memory_space<smem>>
    %1104 = vector.broadcast %1103 : f32 to vector<2x256xf32>
    %1105 = arith.mulf %1104, %1098 : vector<2x256xf32>
    %1106 = arith.addf %1083, %1105 : vector<2x256xf32>
    %c54_153 = arith.constant 54 : index
    %1107 = memref.load %arg4[%c54_153] : memref<144xf32, #tpu.memory_space<smem>>
    %1108 = vector.broadcast %1107 : f32 to vector<2x256xf32>
    %1109 = arith.mulf %1108, %1098 : vector<2x256xf32>
    %1110 = arith.addf %1087, %1109 : vector<2x256xf32>
    %c55_154 = arith.constant 55 : index
    %1111 = memref.load %arg4[%c55_154] : memref<144xf32, #tpu.memory_space<smem>>
    %1112 = vector.broadcast %1111 : f32 to vector<2x256xf32>
    %1113 = arith.mulf %1112, %1098 : vector<2x256xf32>
    %1114 = arith.addf %1091, %1113 : vector<2x256xf32>
    %c68_155 = arith.constant 68 : index
    %1115 = memref.load %arg4[%c68_155] : memref<144xf32, #tpu.memory_space<smem>>
    %1116 = vector.broadcast %1115 : f32 to vector<2x256xf32>
    %1117 = arith.mulf %1116, %814 : vector<2x256xf32>
    %1118 = arith.addf %1102, %1117 : vector<2x256xf32>
    %c69_156 = arith.constant 69 : index
    %1119 = memref.load %arg4[%c69_156] : memref<144xf32, #tpu.memory_space<smem>>
    %1120 = vector.broadcast %1119 : f32 to vector<2x256xf32>
    %1121 = arith.mulf %1120, %814 : vector<2x256xf32>
    %1122 = arith.addf %1106, %1121 : vector<2x256xf32>
    %c70_157 = arith.constant 70 : index
    %1123 = memref.load %arg4[%c70_157] : memref<144xf32, #tpu.memory_space<smem>>
    %1124 = vector.broadcast %1123 : f32 to vector<2x256xf32>
    %1125 = arith.mulf %1124, %814 : vector<2x256xf32>
    %1126 = arith.addf %1110, %1125 : vector<2x256xf32>
    %c71_158 = arith.constant 71 : index
    %1127 = memref.load %arg4[%c71_158] : memref<144xf32, #tpu.memory_space<smem>>
    %1128 = vector.broadcast %1127 : f32 to vector<2x256xf32>
    %1129 = arith.mulf %1128, %814 : vector<2x256xf32>
    %1130 = arith.addf %1114, %1129 : vector<2x256xf32>
    %1131 = vector.extract_strided_slice %814 {offsets = [0, 1], sizes = [2, 255], strides = [1, 1]} : vector<2x256xf32> to vector<2x255xf32>
    %cst_159 = arith.constant 0.000000e+00 : f32
    %1132 = vector.broadcast %cst_159 : f32 to vector<2x1xf32>
    %1133 = tpu.concatenate %1131, %1132 in 1 : vector<2x255xf32>, vector<2x1xf32> -> vector<2x256xf32>
    %cst_160 = arith.constant 0.000000e+00 : f32
    %1134 = vector.shape_cast %18 : vector<1x256xi1> to vector<1x256xi1>
    %1135 = vector.broadcast %1134 : vector<1x256xi1> to vector<2x256xi1>
    %1136 = vector.broadcast %cst_160 : f32 to vector<2x256xf32>
    %1137 = arith.select %1135, %1133, %1136 : vector<2x256xi1>, vector<2x256xf32>
    %c84_161 = arith.constant 84 : index
    %1138 = memref.load %arg4[%c84_161] : memref<144xf32, #tpu.memory_space<smem>>
    %1139 = vector.broadcast %1138 : f32 to vector<2x256xf32>
    %1140 = arith.mulf %1139, %1137 : vector<2x256xf32>
    %1141 = arith.addf %1118, %1140 : vector<2x256xf32>
    %c85_162 = arith.constant 85 : index
    %1142 = memref.load %arg4[%c85_162] : memref<144xf32, #tpu.memory_space<smem>>
    %1143 = vector.broadcast %1142 : f32 to vector<2x256xf32>
    %1144 = arith.mulf %1143, %1137 : vector<2x256xf32>
    %1145 = arith.addf %1122, %1144 : vector<2x256xf32>
    %c86_163 = arith.constant 86 : index
    %1146 = memref.load %arg4[%c86_163] : memref<144xf32, #tpu.memory_space<smem>>
    %1147 = vector.broadcast %1146 : f32 to vector<2x256xf32>
    %1148 = arith.mulf %1147, %1137 : vector<2x256xf32>
    %1149 = arith.addf %1126, %1148 : vector<2x256xf32>
    %c87_164 = arith.constant 87 : index
    %1150 = memref.load %arg4[%c87_164] : memref<144xf32, #tpu.memory_space<smem>>
    %1151 = vector.broadcast %1150 : f32 to vector<2x256xf32>
    %1152 = arith.mulf %1151, %1137 : vector<2x256xf32>
    %1153 = arith.addf %1130, %1152 : vector<2x256xf32>
    %1154 = vector.extract_strided_slice %814 {offsets = [0, 15], sizes = [2, 241], strides = [1, 1]} : vector<2x256xf32> to vector<2x241xf32>
    %cst_165 = arith.constant 0.000000e+00 : f32
    %1155 = vector.broadcast %cst_165 : f32 to vector<2x15xf32>
    %1156 = tpu.concatenate %1154, %1155 in 1 : vector<2x241xf32>, vector<2x15xf32> -> vector<2x256xf32>
    %cst_166 = arith.constant 0.000000e+00 : f32
    %1157 = vector.shape_cast %20 : vector<1x256xi1> to vector<1x256xi1>
    %1158 = vector.broadcast %1157 : vector<1x256xi1> to vector<2x256xi1>
    %1159 = vector.broadcast %cst_166 : f32 to vector<2x256xf32>
    %1160 = arith.select %1158, %1156, %1159 : vector<2x256xi1>, vector<2x256xf32>
    %c100_167 = arith.constant 100 : index
    %1161 = memref.load %arg4[%c100_167] : memref<144xf32, #tpu.memory_space<smem>>
    %1162 = vector.broadcast %1161 : f32 to vector<2x256xf32>
    %1163 = arith.mulf %1162, %1160 : vector<2x256xf32>
    %1164 = arith.addf %1141, %1163 : vector<2x256xf32>
    %c101_168 = arith.constant 101 : index
    %1165 = memref.load %arg4[%c101_168] : memref<144xf32, #tpu.memory_space<smem>>
    %1166 = vector.broadcast %1165 : f32 to vector<2x256xf32>
    %1167 = arith.mulf %1166, %1160 : vector<2x256xf32>
    %1168 = arith.addf %1145, %1167 : vector<2x256xf32>
    %c102_169 = arith.constant 102 : index
    %1169 = memref.load %arg4[%c102_169] : memref<144xf32, #tpu.memory_space<smem>>
    %1170 = vector.broadcast %1169 : f32 to vector<2x256xf32>
    %1171 = arith.mulf %1170, %1160 : vector<2x256xf32>
    %1172 = arith.addf %1149, %1171 : vector<2x256xf32>
    %c103_170 = arith.constant 103 : index
    %1173 = memref.load %arg4[%c103_170] : memref<144xf32, #tpu.memory_space<smem>>
    %1174 = vector.broadcast %1173 : f32 to vector<2x256xf32>
    %1175 = arith.mulf %1174, %1160 : vector<2x256xf32>
    %1176 = arith.addf %1153, %1175 : vector<2x256xf32>
    %1177 = vector.extract_strided_slice %814 {offsets = [0, 16], sizes = [2, 240], strides = [1, 1]} : vector<2x256xf32> to vector<2x240xf32>
    %cst_171 = arith.constant 0.000000e+00 : f32
    %1178 = vector.broadcast %cst_171 : f32 to vector<2x16xf32>
    %1179 = tpu.concatenate %1177, %1178 in 1 : vector<2x240xf32>, vector<2x16xf32> -> vector<2x256xf32>
    %c116_172 = arith.constant 116 : index
    %1180 = memref.load %arg4[%c116_172] : memref<144xf32, #tpu.memory_space<smem>>
    %1181 = vector.broadcast %1180 : f32 to vector<2x256xf32>
    %1182 = arith.mulf %1181, %1179 : vector<2x256xf32>
    %1183 = arith.addf %1164, %1182 : vector<2x256xf32>
    %c117_173 = arith.constant 117 : index
    %1184 = memref.load %arg4[%c117_173] : memref<144xf32, #tpu.memory_space<smem>>
    %1185 = vector.broadcast %1184 : f32 to vector<2x256xf32>
    %1186 = arith.mulf %1185, %1179 : vector<2x256xf32>
    %1187 = arith.addf %1168, %1186 : vector<2x256xf32>
    %c118_174 = arith.constant 118 : index
    %1188 = memref.load %arg4[%c118_174] : memref<144xf32, #tpu.memory_space<smem>>
    %1189 = vector.broadcast %1188 : f32 to vector<2x256xf32>
    %1190 = arith.mulf %1189, %1179 : vector<2x256xf32>
    %1191 = arith.addf %1172, %1190 : vector<2x256xf32>
    %c119_175 = arith.constant 119 : index
    %1192 = memref.load %arg4[%c119_175] : memref<144xf32, #tpu.memory_space<smem>>
    %1193 = vector.broadcast %1192 : f32 to vector<2x256xf32>
    %1194 = arith.mulf %1193, %1179 : vector<2x256xf32>
    %1195 = arith.addf %1176, %1194 : vector<2x256xf32>
    %1196 = vector.extract_strided_slice %814 {offsets = [0, 17], sizes = [2, 239], strides = [1, 1]} : vector<2x256xf32> to vector<2x239xf32>
    %cst_176 = arith.constant 0.000000e+00 : f32
    %1197 = vector.broadcast %cst_176 : f32 to vector<2x17xf32>
    %1198 = tpu.concatenate %1196, %1197 in 1 : vector<2x239xf32>, vector<2x17xf32> -> vector<2x256xf32>
    %cst_177 = arith.constant 0.000000e+00 : f32
    %1199 = vector.shape_cast %18 : vector<1x256xi1> to vector<1x256xi1>
    %1200 = vector.broadcast %1199 : vector<1x256xi1> to vector<2x256xi1>
    %1201 = vector.broadcast %cst_177 : f32 to vector<2x256xf32>
    %1202 = arith.select %1200, %1198, %1201 : vector<2x256xi1>, vector<2x256xf32>
    %c132_178 = arith.constant 132 : index
    %1203 = memref.load %arg4[%c132_178] : memref<144xf32, #tpu.memory_space<smem>>
    %1204 = vector.broadcast %1203 : f32 to vector<2x256xf32>
    %1205 = arith.mulf %1204, %1202 : vector<2x256xf32>
    %1206 = arith.addf %1183, %1205 : vector<2x256xf32>
    %c133_179 = arith.constant 133 : index
    %1207 = memref.load %arg4[%c133_179] : memref<144xf32, #tpu.memory_space<smem>>
    %1208 = vector.broadcast %1207 : f32 to vector<2x256xf32>
    %1209 = arith.mulf %1208, %1202 : vector<2x256xf32>
    %1210 = arith.addf %1187, %1209 : vector<2x256xf32>
    %c134_180 = arith.constant 134 : index
    %1211 = memref.load %arg4[%c134_180] : memref<144xf32, #tpu.memory_space<smem>>
    %1212 = vector.broadcast %1211 : f32 to vector<2x256xf32>
    %1213 = arith.mulf %1212, %1202 : vector<2x256xf32>
    %1214 = arith.addf %1191, %1213 : vector<2x256xf32>
    %c135_181 = arith.constant 135 : index
    %1215 = memref.load %arg4[%c135_181] : memref<144xf32, #tpu.memory_space<smem>>
    %1216 = vector.broadcast %1215 : f32 to vector<2x256xf32>
    %1217 = arith.mulf %1216, %1202 : vector<2x256xf32>
    %1218 = arith.addf %1195, %1217 : vector<2x256xf32>
    %cst_182 = arith.constant 0.000000e+00 : f32
    %1219 = vector.broadcast %cst_182 : f32 to vector<2x17xf32>
    %1220 = vector.extract_strided_slice %816 {offsets = [0, 0], sizes = [2, 239], strides = [1, 1]} : vector<2x256xf32> to vector<2x239xf32>
    %1221 = tpu.concatenate %1219, %1220 in 1 : vector<2x17xf32>, vector<2x239xf32> -> vector<2x256xf32>
    %cst_183 = arith.constant 0.000000e+00 : f32
    %1222 = vector.shape_cast %20 : vector<1x256xi1> to vector<1x256xi1>
    %1223 = vector.broadcast %1222 : vector<1x256xi1> to vector<2x256xi1>
    %1224 = vector.broadcast %cst_183 : f32 to vector<2x256xf32>
    %1225 = arith.select %1223, %1221, %1224 : vector<2x256xi1>, vector<2x256xf32>
    %c8_184 = arith.constant 8 : index
    %1226 = memref.load %arg4[%c8_184] : memref<144xf32, #tpu.memory_space<smem>>
    %1227 = vector.broadcast %1226 : f32 to vector<2x256xf32>
    %1228 = arith.mulf %1227, %1225 : vector<2x256xf32>
    %1229 = arith.addf %1206, %1228 : vector<2x256xf32>
    %c9_185 = arith.constant 9 : index
    %1230 = memref.load %arg4[%c9_185] : memref<144xf32, #tpu.memory_space<smem>>
    %1231 = vector.broadcast %1230 : f32 to vector<2x256xf32>
    %1232 = arith.mulf %1231, %1225 : vector<2x256xf32>
    %1233 = arith.addf %1210, %1232 : vector<2x256xf32>
    %c10_186 = arith.constant 10 : index
    %1234 = memref.load %arg4[%c10_186] : memref<144xf32, #tpu.memory_space<smem>>
    %1235 = vector.broadcast %1234 : f32 to vector<2x256xf32>
    %1236 = arith.mulf %1235, %1225 : vector<2x256xf32>
    %1237 = arith.addf %1214, %1236 : vector<2x256xf32>
    %c11_187 = arith.constant 11 : index
    %1238 = memref.load %arg4[%c11_187] : memref<144xf32, #tpu.memory_space<smem>>
    %1239 = vector.broadcast %1238 : f32 to vector<2x256xf32>
    %1240 = arith.mulf %1239, %1225 : vector<2x256xf32>
    %1241 = arith.addf %1218, %1240 : vector<2x256xf32>
    %cst_188 = arith.constant 0.000000e+00 : f32
    %1242 = vector.broadcast %cst_188 : f32 to vector<2x16xf32>
    %1243 = vector.extract_strided_slice %816 {offsets = [0, 0], sizes = [2, 240], strides = [1, 1]} : vector<2x256xf32> to vector<2x240xf32>
    %1244 = tpu.concatenate %1242, %1243 in 1 : vector<2x16xf32>, vector<2x240xf32> -> vector<2x256xf32>
    %c24_189 = arith.constant 24 : index
    %1245 = memref.load %arg4[%c24_189] : memref<144xf32, #tpu.memory_space<smem>>
    %1246 = vector.broadcast %1245 : f32 to vector<2x256xf32>
    %1247 = arith.mulf %1246, %1244 : vector<2x256xf32>
    %1248 = arith.addf %1229, %1247 : vector<2x256xf32>
    %c25_190 = arith.constant 25 : index
    %1249 = memref.load %arg4[%c25_190] : memref<144xf32, #tpu.memory_space<smem>>
    %1250 = vector.broadcast %1249 : f32 to vector<2x256xf32>
    %1251 = arith.mulf %1250, %1244 : vector<2x256xf32>
    %1252 = arith.addf %1233, %1251 : vector<2x256xf32>
    %c26_191 = arith.constant 26 : index
    %1253 = memref.load %arg4[%c26_191] : memref<144xf32, #tpu.memory_space<smem>>
    %1254 = vector.broadcast %1253 : f32 to vector<2x256xf32>
    %1255 = arith.mulf %1254, %1244 : vector<2x256xf32>
    %1256 = arith.addf %1237, %1255 : vector<2x256xf32>
    %c27_192 = arith.constant 27 : index
    %1257 = memref.load %arg4[%c27_192] : memref<144xf32, #tpu.memory_space<smem>>
    %1258 = vector.broadcast %1257 : f32 to vector<2x256xf32>
    %1259 = arith.mulf %1258, %1244 : vector<2x256xf32>
    %1260 = arith.addf %1241, %1259 : vector<2x256xf32>
    %cst_193 = arith.constant 0.000000e+00 : f32
    %1261 = vector.broadcast %cst_193 : f32 to vector<2x15xf32>
    %1262 = vector.extract_strided_slice %816 {offsets = [0, 0], sizes = [2, 241], strides = [1, 1]} : vector<2x256xf32> to vector<2x241xf32>
    %1263 = tpu.concatenate %1261, %1262 in 1 : vector<2x15xf32>, vector<2x241xf32> -> vector<2x256xf32>
    %cst_194 = arith.constant 0.000000e+00 : f32
    %1264 = vector.shape_cast %18 : vector<1x256xi1> to vector<1x256xi1>
    %1265 = vector.broadcast %1264 : vector<1x256xi1> to vector<2x256xi1>
    %1266 = vector.broadcast %cst_194 : f32 to vector<2x256xf32>
    %1267 = arith.select %1265, %1263, %1266 : vector<2x256xi1>, vector<2x256xf32>
    %c40_195 = arith.constant 40 : index
    %1268 = memref.load %arg4[%c40_195] : memref<144xf32, #tpu.memory_space<smem>>
    %1269 = vector.broadcast %1268 : f32 to vector<2x256xf32>
    %1270 = arith.mulf %1269, %1267 : vector<2x256xf32>
    %1271 = arith.addf %1248, %1270 : vector<2x256xf32>
    %c41_196 = arith.constant 41 : index
    %1272 = memref.load %arg4[%c41_196] : memref<144xf32, #tpu.memory_space<smem>>
    %1273 = vector.broadcast %1272 : f32 to vector<2x256xf32>
    %1274 = arith.mulf %1273, %1267 : vector<2x256xf32>
    %1275 = arith.addf %1252, %1274 : vector<2x256xf32>
    %c42_197 = arith.constant 42 : index
    %1276 = memref.load %arg4[%c42_197] : memref<144xf32, #tpu.memory_space<smem>>
    %1277 = vector.broadcast %1276 : f32 to vector<2x256xf32>
    %1278 = arith.mulf %1277, %1267 : vector<2x256xf32>
    %1279 = arith.addf %1256, %1278 : vector<2x256xf32>
    %c43_198 = arith.constant 43 : index
    %1280 = memref.load %arg4[%c43_198] : memref<144xf32, #tpu.memory_space<smem>>
    %1281 = vector.broadcast %1280 : f32 to vector<2x256xf32>
    %1282 = arith.mulf %1281, %1267 : vector<2x256xf32>
    %1283 = arith.addf %1260, %1282 : vector<2x256xf32>
    %cst_199 = arith.constant 0.000000e+00 : f32
    %1284 = vector.broadcast %cst_199 : f32 to vector<2x1xf32>
    %1285 = vector.extract_strided_slice %816 {offsets = [0, 0], sizes = [2, 255], strides = [1, 1]} : vector<2x256xf32> to vector<2x255xf32>
    %1286 = tpu.concatenate %1284, %1285 in 1 : vector<2x1xf32>, vector<2x255xf32> -> vector<2x256xf32>
    %cst_200 = arith.constant 0.000000e+00 : f32
    %1287 = vector.shape_cast %20 : vector<1x256xi1> to vector<1x256xi1>
    %1288 = vector.broadcast %1287 : vector<1x256xi1> to vector<2x256xi1>
    %1289 = vector.broadcast %cst_200 : f32 to vector<2x256xf32>
    %1290 = arith.select %1288, %1286, %1289 : vector<2x256xi1>, vector<2x256xf32>
    %c56_201 = arith.constant 56 : index
    %1291 = memref.load %arg4[%c56_201] : memref<144xf32, #tpu.memory_space<smem>>
    %1292 = vector.broadcast %1291 : f32 to vector<2x256xf32>
    %1293 = arith.mulf %1292, %1290 : vector<2x256xf32>
    %1294 = arith.addf %1271, %1293 : vector<2x256xf32>
    %c57_202 = arith.constant 57 : index
    %1295 = memref.load %arg4[%c57_202] : memref<144xf32, #tpu.memory_space<smem>>
    %1296 = vector.broadcast %1295 : f32 to vector<2x256xf32>
    %1297 = arith.mulf %1296, %1290 : vector<2x256xf32>
    %1298 = arith.addf %1275, %1297 : vector<2x256xf32>
    %c58_203 = arith.constant 58 : index
    %1299 = memref.load %arg4[%c58_203] : memref<144xf32, #tpu.memory_space<smem>>
    %1300 = vector.broadcast %1299 : f32 to vector<2x256xf32>
    %1301 = arith.mulf %1300, %1290 : vector<2x256xf32>
    %1302 = arith.addf %1279, %1301 : vector<2x256xf32>
    %c59_204 = arith.constant 59 : index
    %1303 = memref.load %arg4[%c59_204] : memref<144xf32, #tpu.memory_space<smem>>
    %1304 = vector.broadcast %1303 : f32 to vector<2x256xf32>
    %1305 = arith.mulf %1304, %1290 : vector<2x256xf32>
    %1306 = arith.addf %1283, %1305 : vector<2x256xf32>
    %c72_205 = arith.constant 72 : index
    %1307 = memref.load %arg4[%c72_205] : memref<144xf32, #tpu.memory_space<smem>>
    %1308 = vector.broadcast %1307 : f32 to vector<2x256xf32>
    %1309 = arith.mulf %1308, %816 : vector<2x256xf32>
    %1310 = arith.addf %1294, %1309 : vector<2x256xf32>
    %c73_206 = arith.constant 73 : index
    %1311 = memref.load %arg4[%c73_206] : memref<144xf32, #tpu.memory_space<smem>>
    %1312 = vector.broadcast %1311 : f32 to vector<2x256xf32>
    %1313 = arith.mulf %1312, %816 : vector<2x256xf32>
    %1314 = arith.addf %1298, %1313 : vector<2x256xf32>
    %c74_207 = arith.constant 74 : index
    %1315 = memref.load %arg4[%c74_207] : memref<144xf32, #tpu.memory_space<smem>>
    %1316 = vector.broadcast %1315 : f32 to vector<2x256xf32>
    %1317 = arith.mulf %1316, %816 : vector<2x256xf32>
    %1318 = arith.addf %1302, %1317 : vector<2x256xf32>
    %c75_208 = arith.constant 75 : index
    %1319 = memref.load %arg4[%c75_208] : memref<144xf32, #tpu.memory_space<smem>>
    %1320 = vector.broadcast %1319 : f32 to vector<2x256xf32>
    %1321 = arith.mulf %1320, %816 : vector<2x256xf32>
    %1322 = arith.addf %1306, %1321 : vector<2x256xf32>
    %1323 = vector.extract_strided_slice %816 {offsets = [0, 1], sizes = [2, 255], strides = [1, 1]} : vector<2x256xf32> to vector<2x255xf32>
    %cst_209 = arith.constant 0.000000e+00 : f32
    %1324 = vector.broadcast %cst_209 : f32 to vector<2x1xf32>
    %1325 = tpu.concatenate %1323, %1324 in 1 : vector<2x255xf32>, vector<2x1xf32> -> vector<2x256xf32>
    %cst_210 = arith.constant 0.000000e+00 : f32
    %1326 = vector.shape_cast %18 : vector<1x256xi1> to vector<1x256xi1>
    %1327 = vector.broadcast %1326 : vector<1x256xi1> to vector<2x256xi1>
    %1328 = vector.broadcast %cst_210 : f32 to vector<2x256xf32>
    %1329 = arith.select %1327, %1325, %1328 : vector<2x256xi1>, vector<2x256xf32>
    %c88_211 = arith.constant 88 : index
    %1330 = memref.load %arg4[%c88_211] : memref<144xf32, #tpu.memory_space<smem>>
    %1331 = vector.broadcast %1330 : f32 to vector<2x256xf32>
    %1332 = arith.mulf %1331, %1329 : vector<2x256xf32>
    %1333 = arith.addf %1310, %1332 : vector<2x256xf32>
    %c89_212 = arith.constant 89 : index
    %1334 = memref.load %arg4[%c89_212] : memref<144xf32, #tpu.memory_space<smem>>
    %1335 = vector.broadcast %1334 : f32 to vector<2x256xf32>
    %1336 = arith.mulf %1335, %1329 : vector<2x256xf32>
    %1337 = arith.addf %1314, %1336 : vector<2x256xf32>
    %c90_213 = arith.constant 90 : index
    %1338 = memref.load %arg4[%c90_213] : memref<144xf32, #tpu.memory_space<smem>>
    %1339 = vector.broadcast %1338 : f32 to vector<2x256xf32>
    %1340 = arith.mulf %1339, %1329 : vector<2x256xf32>
    %1341 = arith.addf %1318, %1340 : vector<2x256xf32>
    %c91_214 = arith.constant 91 : index
    %1342 = memref.load %arg4[%c91_214] : memref<144xf32, #tpu.memory_space<smem>>
    %1343 = vector.broadcast %1342 : f32 to vector<2x256xf32>
    %1344 = arith.mulf %1343, %1329 : vector<2x256xf32>
    %1345 = arith.addf %1322, %1344 : vector<2x256xf32>
    %1346 = vector.extract_strided_slice %816 {offsets = [0, 15], sizes = [2, 241], strides = [1, 1]} : vector<2x256xf32> to vector<2x241xf32>
    %cst_215 = arith.constant 0.000000e+00 : f32
    %1347 = vector.broadcast %cst_215 : f32 to vector<2x15xf32>
    %1348 = tpu.concatenate %1346, %1347 in 1 : vector<2x241xf32>, vector<2x15xf32> -> vector<2x256xf32>
    %cst_216 = arith.constant 0.000000e+00 : f32
    %1349 = vector.shape_cast %20 : vector<1x256xi1> to vector<1x256xi1>
    %1350 = vector.broadcast %1349 : vector<1x256xi1> to vector<2x256xi1>
    %1351 = vector.broadcast %cst_216 : f32 to vector<2x256xf32>
    %1352 = arith.select %1350, %1348, %1351 : vector<2x256xi1>, vector<2x256xf32>
    %c104_217 = arith.constant 104 : index
    %1353 = memref.load %arg4[%c104_217] : memref<144xf32, #tpu.memory_space<smem>>
    %1354 = vector.broadcast %1353 : f32 to vector<2x256xf32>
    %1355 = arith.mulf %1354, %1352 : vector<2x256xf32>
    %1356 = arith.addf %1333, %1355 : vector<2x256xf32>
    %c105_218 = arith.constant 105 : index
    %1357 = memref.load %arg4[%c105_218] : memref<144xf32, #tpu.memory_space<smem>>
    %1358 = vector.broadcast %1357 : f32 to vector<2x256xf32>
    %1359 = arith.mulf %1358, %1352 : vector<2x256xf32>
    %1360 = arith.addf %1337, %1359 : vector<2x256xf32>
    %c106_219 = arith.constant 106 : index
    %1361 = memref.load %arg4[%c106_219] : memref<144xf32, #tpu.memory_space<smem>>
    %1362 = vector.broadcast %1361 : f32 to vector<2x256xf32>
    %1363 = arith.mulf %1362, %1352 : vector<2x256xf32>
    %1364 = arith.addf %1341, %1363 : vector<2x256xf32>
    %c107_220 = arith.constant 107 : index
    %1365 = memref.load %arg4[%c107_220] : memref<144xf32, #tpu.memory_space<smem>>
    %1366 = vector.broadcast %1365 : f32 to vector<2x256xf32>
    %1367 = arith.mulf %1366, %1352 : vector<2x256xf32>
    %1368 = arith.addf %1345, %1367 : vector<2x256xf32>
    %1369 = vector.extract_strided_slice %816 {offsets = [0, 16], sizes = [2, 240], strides = [1, 1]} : vector<2x256xf32> to vector<2x240xf32>
    %cst_221 = arith.constant 0.000000e+00 : f32
    %1370 = vector.broadcast %cst_221 : f32 to vector<2x16xf32>
    %1371 = tpu.concatenate %1369, %1370 in 1 : vector<2x240xf32>, vector<2x16xf32> -> vector<2x256xf32>
    %c120_222 = arith.constant 120 : index
    %1372 = memref.load %arg4[%c120_222] : memref<144xf32, #tpu.memory_space<smem>>
    %1373 = vector.broadcast %1372 : f32 to vector<2x256xf32>
    %1374 = arith.mulf %1373, %1371 : vector<2x256xf32>
    %1375 = arith.addf %1356, %1374 : vector<2x256xf32>
    %c121_223 = arith.constant 121 : index
    %1376 = memref.load %arg4[%c121_223] : memref<144xf32, #tpu.memory_space<smem>>
    %1377 = vector.broadcast %1376 : f32 to vector<2x256xf32>
    %1378 = arith.mulf %1377, %1371 : vector<2x256xf32>
    %1379 = arith.addf %1360, %1378 : vector<2x256xf32>
    %c122_224 = arith.constant 122 : index
    %1380 = memref.load %arg4[%c122_224] : memref<144xf32, #tpu.memory_space<smem>>
    %1381 = vector.broadcast %1380 : f32 to vector<2x256xf32>
    %1382 = arith.mulf %1381, %1371 : vector<2x256xf32>
    %1383 = arith.addf %1364, %1382 : vector<2x256xf32>
    %c123_225 = arith.constant 123 : index
    %1384 = memref.load %arg4[%c123_225] : memref<144xf32, #tpu.memory_space<smem>>
    %1385 = vector.broadcast %1384 : f32 to vector<2x256xf32>
    %1386 = arith.mulf %1385, %1371 : vector<2x256xf32>
    %1387 = arith.addf %1368, %1386 : vector<2x256xf32>
    %1388 = vector.extract_strided_slice %816 {offsets = [0, 17], sizes = [2, 239], strides = [1, 1]} : vector<2x256xf32> to vector<2x239xf32>
    %cst_226 = arith.constant 0.000000e+00 : f32
    %1389 = vector.broadcast %cst_226 : f32 to vector<2x17xf32>
    %1390 = tpu.concatenate %1388, %1389 in 1 : vector<2x239xf32>, vector<2x17xf32> -> vector<2x256xf32>
    %cst_227 = arith.constant 0.000000e+00 : f32
    %1391 = vector.shape_cast %18 : vector<1x256xi1> to vector<1x256xi1>
    %1392 = vector.broadcast %1391 : vector<1x256xi1> to vector<2x256xi1>
    %1393 = vector.broadcast %cst_227 : f32 to vector<2x256xf32>
    %1394 = arith.select %1392, %1390, %1393 : vector<2x256xi1>, vector<2x256xf32>
    %c136_228 = arith.constant 136 : index
    %1395 = memref.load %arg4[%c136_228] : memref<144xf32, #tpu.memory_space<smem>>
    %1396 = vector.broadcast %1395 : f32 to vector<2x256xf32>
    %1397 = arith.mulf %1396, %1394 : vector<2x256xf32>
    %1398 = arith.addf %1375, %1397 : vector<2x256xf32>
    %c137_229 = arith.constant 137 : index
    %1399 = memref.load %arg4[%c137_229] : memref<144xf32, #tpu.memory_space<smem>>
    %1400 = vector.broadcast %1399 : f32 to vector<2x256xf32>
    %1401 = arith.mulf %1400, %1394 : vector<2x256xf32>
    %1402 = arith.addf %1379, %1401 : vector<2x256xf32>
    %c138_230 = arith.constant 138 : index
    %1403 = memref.load %arg4[%c138_230] : memref<144xf32, #tpu.memory_space<smem>>
    %1404 = vector.broadcast %1403 : f32 to vector<2x256xf32>
    %1405 = arith.mulf %1404, %1394 : vector<2x256xf32>
    %1406 = arith.addf %1383, %1405 : vector<2x256xf32>
    %c139_231 = arith.constant 139 : index
    %1407 = memref.load %arg4[%c139_231] : memref<144xf32, #tpu.memory_space<smem>>
    %1408 = vector.broadcast %1407 : f32 to vector<2x256xf32>
    %1409 = arith.mulf %1408, %1394 : vector<2x256xf32>
    %1410 = arith.addf %1387, %1409 : vector<2x256xf32>
    %cst_232 = arith.constant 0.000000e+00 : f32
    %1411 = vector.broadcast %cst_232 : f32 to vector<2x17xf32>
    %1412 = vector.extract_strided_slice %818 {offsets = [0, 0], sizes = [2, 239], strides = [1, 1]} : vector<2x256xf32> to vector<2x239xf32>
    %1413 = tpu.concatenate %1411, %1412 in 1 : vector<2x17xf32>, vector<2x239xf32> -> vector<2x256xf32>
    %cst_233 = arith.constant 0.000000e+00 : f32
    %1414 = vector.shape_cast %20 : vector<1x256xi1> to vector<1x256xi1>
    %1415 = vector.broadcast %1414 : vector<1x256xi1> to vector<2x256xi1>
    %1416 = vector.broadcast %cst_233 : f32 to vector<2x256xf32>
    %1417 = arith.select %1415, %1413, %1416 : vector<2x256xi1>, vector<2x256xf32>
    %c12_234 = arith.constant 12 : index
    %1418 = memref.load %arg4[%c12_234] : memref<144xf32, #tpu.memory_space<smem>>
    %1419 = vector.broadcast %1418 : f32 to vector<2x256xf32>
    %1420 = arith.mulf %1419, %1417 : vector<2x256xf32>
    %1421 = arith.addf %1398, %1420 : vector<2x256xf32>
    %c13_235 = arith.constant 13 : index
    %1422 = memref.load %arg4[%c13_235] : memref<144xf32, #tpu.memory_space<smem>>
    %1423 = vector.broadcast %1422 : f32 to vector<2x256xf32>
    %1424 = arith.mulf %1423, %1417 : vector<2x256xf32>
    %1425 = arith.addf %1402, %1424 : vector<2x256xf32>
    %c14_236 = arith.constant 14 : index
    %1426 = memref.load %arg4[%c14_236] : memref<144xf32, #tpu.memory_space<smem>>
    %1427 = vector.broadcast %1426 : f32 to vector<2x256xf32>
    %1428 = arith.mulf %1427, %1417 : vector<2x256xf32>
    %1429 = arith.addf %1406, %1428 : vector<2x256xf32>
    %c15_237 = arith.constant 15 : index
    %1430 = memref.load %arg4[%c15_237] : memref<144xf32, #tpu.memory_space<smem>>
    %1431 = vector.broadcast %1430 : f32 to vector<2x256xf32>
    %1432 = arith.mulf %1431, %1417 : vector<2x256xf32>
    %1433 = arith.addf %1410, %1432 : vector<2x256xf32>
    %cst_238 = arith.constant 0.000000e+00 : f32
    %1434 = vector.broadcast %cst_238 : f32 to vector<2x16xf32>
    %1435 = vector.extract_strided_slice %818 {offsets = [0, 0], sizes = [2, 240], strides = [1, 1]} : vector<2x256xf32> to vector<2x240xf32>
    %1436 = tpu.concatenate %1434, %1435 in 1 : vector<2x16xf32>, vector<2x240xf32> -> vector<2x256xf32>
    %c28_239 = arith.constant 28 : index
    %1437 = memref.load %arg4[%c28_239] : memref<144xf32, #tpu.memory_space<smem>>
    %1438 = vector.broadcast %1437 : f32 to vector<2x256xf32>
    %1439 = arith.mulf %1438, %1436 : vector<2x256xf32>
    %1440 = arith.addf %1421, %1439 : vector<2x256xf32>
    %c29_240 = arith.constant 29 : index
    %1441 = memref.load %arg4[%c29_240] : memref<144xf32, #tpu.memory_space<smem>>
    %1442 = vector.broadcast %1441 : f32 to vector<2x256xf32>
    %1443 = arith.mulf %1442, %1436 : vector<2x256xf32>
    %1444 = arith.addf %1425, %1443 : vector<2x256xf32>
    %c30_241 = arith.constant 30 : index
    %1445 = memref.load %arg4[%c30_241] : memref<144xf32, #tpu.memory_space<smem>>
    %1446 = vector.broadcast %1445 : f32 to vector<2x256xf32>
    %1447 = arith.mulf %1446, %1436 : vector<2x256xf32>
    %1448 = arith.addf %1429, %1447 : vector<2x256xf32>
    %c31_242 = arith.constant 31 : index
    %1449 = memref.load %arg4[%c31_242] : memref<144xf32, #tpu.memory_space<smem>>
    %1450 = vector.broadcast %1449 : f32 to vector<2x256xf32>
    %1451 = arith.mulf %1450, %1436 : vector<2x256xf32>
    %1452 = arith.addf %1433, %1451 : vector<2x256xf32>
    %cst_243 = arith.constant 0.000000e+00 : f32
    %1453 = vector.broadcast %cst_243 : f32 to vector<2x15xf32>
    %1454 = vector.extract_strided_slice %818 {offsets = [0, 0], sizes = [2, 241], strides = [1, 1]} : vector<2x256xf32> to vector<2x241xf32>
    %1455 = tpu.concatenate %1453, %1454 in 1 : vector<2x15xf32>, vector<2x241xf32> -> vector<2x256xf32>
    %cst_244 = arith.constant 0.000000e+00 : f32
    %1456 = vector.shape_cast %18 : vector<1x256xi1> to vector<1x256xi1>
    %1457 = vector.broadcast %1456 : vector<1x256xi1> to vector<2x256xi1>
    %1458 = vector.broadcast %cst_244 : f32 to vector<2x256xf32>
    %1459 = arith.select %1457, %1455, %1458 : vector<2x256xi1>, vector<2x256xf32>
    %c44_245 = arith.constant 44 : index
    %1460 = memref.load %arg4[%c44_245] : memref<144xf32, #tpu.memory_space<smem>>
    %1461 = vector.broadcast %1460 : f32 to vector<2x256xf32>
    %1462 = arith.mulf %1461, %1459 : vector<2x256xf32>
    %1463 = arith.addf %1440, %1462 : vector<2x256xf32>
    %c45_246 = arith.constant 45 : index
    %1464 = memref.load %arg4[%c45_246] : memref<144xf32, #tpu.memory_space<smem>>
    %1465 = vector.broadcast %1464 : f32 to vector<2x256xf32>
    %1466 = arith.mulf %1465, %1459 : vector<2x256xf32>
    %1467 = arith.addf %1444, %1466 : vector<2x256xf32>
    %c46_247 = arith.constant 46 : index
    %1468 = memref.load %arg4[%c46_247] : memref<144xf32, #tpu.memory_space<smem>>
    %1469 = vector.broadcast %1468 : f32 to vector<2x256xf32>
    %1470 = arith.mulf %1469, %1459 : vector<2x256xf32>
    %1471 = arith.addf %1448, %1470 : vector<2x256xf32>
    %c47_248 = arith.constant 47 : index
    %1472 = memref.load %arg4[%c47_248] : memref<144xf32, #tpu.memory_space<smem>>
    %1473 = vector.broadcast %1472 : f32 to vector<2x256xf32>
    %1474 = arith.mulf %1473, %1459 : vector<2x256xf32>
    %1475 = arith.addf %1452, %1474 : vector<2x256xf32>
    %cst_249 = arith.constant 0.000000e+00 : f32
    %1476 = vector.broadcast %cst_249 : f32 to vector<2x1xf32>
    %1477 = vector.extract_strided_slice %818 {offsets = [0, 0], sizes = [2, 255], strides = [1, 1]} : vector<2x256xf32> to vector<2x255xf32>
    %1478 = tpu.concatenate %1476, %1477 in 1 : vector<2x1xf32>, vector<2x255xf32> -> vector<2x256xf32>
    %cst_250 = arith.constant 0.000000e+00 : f32
    %1479 = vector.shape_cast %20 : vector<1x256xi1> to vector<1x256xi1>
    %1480 = vector.broadcast %1479 : vector<1x256xi1> to vector<2x256xi1>
    %1481 = vector.broadcast %cst_250 : f32 to vector<2x256xf32>
    %1482 = arith.select %1480, %1478, %1481 : vector<2x256xi1>, vector<2x256xf32>
    %c60_251 = arith.constant 60 : index
    %1483 = memref.load %arg4[%c60_251] : memref<144xf32, #tpu.memory_space<smem>>
    %1484 = vector.broadcast %1483 : f32 to vector<2x256xf32>
    %1485 = arith.mulf %1484, %1482 : vector<2x256xf32>
    %1486 = arith.addf %1463, %1485 : vector<2x256xf32>
    %c61_252 = arith.constant 61 : index
    %1487 = memref.load %arg4[%c61_252] : memref<144xf32, #tpu.memory_space<smem>>
    %1488 = vector.broadcast %1487 : f32 to vector<2x256xf32>
    %1489 = arith.mulf %1488, %1482 : vector<2x256xf32>
    %1490 = arith.addf %1467, %1489 : vector<2x256xf32>
    %c62_253 = arith.constant 62 : index
    %1491 = memref.load %arg4[%c62_253] : memref<144xf32, #tpu.memory_space<smem>>
    %1492 = vector.broadcast %1491 : f32 to vector<2x256xf32>
    %1493 = arith.mulf %1492, %1482 : vector<2x256xf32>
    %1494 = arith.addf %1471, %1493 : vector<2x256xf32>
    %c63_254 = arith.constant 63 : index
    %1495 = memref.load %arg4[%c63_254] : memref<144xf32, #tpu.memory_space<smem>>
    %1496 = vector.broadcast %1495 : f32 to vector<2x256xf32>
    %1497 = arith.mulf %1496, %1482 : vector<2x256xf32>
    %1498 = arith.addf %1475, %1497 : vector<2x256xf32>
    %c76_255 = arith.constant 76 : index
    %1499 = memref.load %arg4[%c76_255] : memref<144xf32, #tpu.memory_space<smem>>
    %1500 = vector.broadcast %1499 : f32 to vector<2x256xf32>
    %1501 = arith.mulf %1500, %818 : vector<2x256xf32>
    %1502 = arith.addf %1486, %1501 : vector<2x256xf32>
    %c77_256 = arith.constant 77 : index
    %1503 = memref.load %arg4[%c77_256] : memref<144xf32, #tpu.memory_space<smem>>
    %1504 = vector.broadcast %1503 : f32 to vector<2x256xf32>
    %1505 = arith.mulf %1504, %818 : vector<2x256xf32>
    %1506 = arith.addf %1490, %1505 : vector<2x256xf32>
    %c78_257 = arith.constant 78 : index
    %1507 = memref.load %arg4[%c78_257] : memref<144xf32, #tpu.memory_space<smem>>
    %1508 = vector.broadcast %1507 : f32 to vector<2x256xf32>
    %1509 = arith.mulf %1508, %818 : vector<2x256xf32>
    %1510 = arith.addf %1494, %1509 : vector<2x256xf32>
    %c79_258 = arith.constant 79 : index
    %1511 = memref.load %arg4[%c79_258] : memref<144xf32, #tpu.memory_space<smem>>
    %1512 = vector.broadcast %1511 : f32 to vector<2x256xf32>
    %1513 = arith.mulf %1512, %818 : vector<2x256xf32>
    %1514 = arith.addf %1498, %1513 : vector<2x256xf32>
    %1515 = vector.extract_strided_slice %818 {offsets = [0, 1], sizes = [2, 255], strides = [1, 1]} : vector<2x256xf32> to vector<2x255xf32>
    %cst_259 = arith.constant 0.000000e+00 : f32
    %1516 = vector.broadcast %cst_259 : f32 to vector<2x1xf32>
    %1517 = tpu.concatenate %1515, %1516 in 1 : vector<2x255xf32>, vector<2x1xf32> -> vector<2x256xf32>
    %cst_260 = arith.constant 0.000000e+00 : f32
    %1518 = vector.shape_cast %18 : vector<1x256xi1> to vector<1x256xi1>
    %1519 = vector.broadcast %1518 : vector<1x256xi1> to vector<2x256xi1>
    %1520 = vector.broadcast %cst_260 : f32 to vector<2x256xf32>
    %1521 = arith.select %1519, %1517, %1520 : vector<2x256xi1>, vector<2x256xf32>
    %c92_261 = arith.constant 92 : index
    %1522 = memref.load %arg4[%c92_261] : memref<144xf32, #tpu.memory_space<smem>>
    %1523 = vector.broadcast %1522 : f32 to vector<2x256xf32>
    %1524 = arith.mulf %1523, %1521 : vector<2x256xf32>
    %1525 = arith.addf %1502, %1524 : vector<2x256xf32>
    %c93_262 = arith.constant 93 : index
    %1526 = memref.load %arg4[%c93_262] : memref<144xf32, #tpu.memory_space<smem>>
    %1527 = vector.broadcast %1526 : f32 to vector<2x256xf32>
    %1528 = arith.mulf %1527, %1521 : vector<2x256xf32>
    %1529 = arith.addf %1506, %1528 : vector<2x256xf32>
    %c94_263 = arith.constant 94 : index
    %1530 = memref.load %arg4[%c94_263] : memref<144xf32, #tpu.memory_space<smem>>
    %1531 = vector.broadcast %1530 : f32 to vector<2x256xf32>
    %1532 = arith.mulf %1531, %1521 : vector<2x256xf32>
    %1533 = arith.addf %1510, %1532 : vector<2x256xf32>
    %c95_264 = arith.constant 95 : index
    %1534 = memref.load %arg4[%c95_264] : memref<144xf32, #tpu.memory_space<smem>>
    %1535 = vector.broadcast %1534 : f32 to vector<2x256xf32>
    %1536 = arith.mulf %1535, %1521 : vector<2x256xf32>
    %1537 = arith.addf %1514, %1536 : vector<2x256xf32>
    %1538 = vector.extract_strided_slice %818 {offsets = [0, 15], sizes = [2, 241], strides = [1, 1]} : vector<2x256xf32> to vector<2x241xf32>
    %cst_265 = arith.constant 0.000000e+00 : f32
    %1539 = vector.broadcast %cst_265 : f32 to vector<2x15xf32>
    %1540 = tpu.concatenate %1538, %1539 in 1 : vector<2x241xf32>, vector<2x15xf32> -> vector<2x256xf32>
    %cst_266 = arith.constant 0.000000e+00 : f32
    %1541 = vector.shape_cast %20 : vector<1x256xi1> to vector<1x256xi1>
    %1542 = vector.broadcast %1541 : vector<1x256xi1> to vector<2x256xi1>
    %1543 = vector.broadcast %cst_266 : f32 to vector<2x256xf32>
    %1544 = arith.select %1542, %1540, %1543 : vector<2x256xi1>, vector<2x256xf32>
    %c108_267 = arith.constant 108 : index
    %1545 = memref.load %arg4[%c108_267] : memref<144xf32, #tpu.memory_space<smem>>
    %1546 = vector.broadcast %1545 : f32 to vector<2x256xf32>
    %1547 = arith.mulf %1546, %1544 : vector<2x256xf32>
    %1548 = arith.addf %1525, %1547 : vector<2x256xf32>
    %c109_268 = arith.constant 109 : index
    %1549 = memref.load %arg4[%c109_268] : memref<144xf32, #tpu.memory_space<smem>>
    %1550 = vector.broadcast %1549 : f32 to vector<2x256xf32>
    %1551 = arith.mulf %1550, %1544 : vector<2x256xf32>
    %1552 = arith.addf %1529, %1551 : vector<2x256xf32>
    %c110_269 = arith.constant 110 : index
    %1553 = memref.load %arg4[%c110_269] : memref<144xf32, #tpu.memory_space<smem>>
    %1554 = vector.broadcast %1553 : f32 to vector<2x256xf32>
    %1555 = arith.mulf %1554, %1544 : vector<2x256xf32>
    %1556 = arith.addf %1533, %1555 : vector<2x256xf32>
    %c111_270 = arith.constant 111 : index
    %1557 = memref.load %arg4[%c111_270] : memref<144xf32, #tpu.memory_space<smem>>
    %1558 = vector.broadcast %1557 : f32 to vector<2x256xf32>
    %1559 = arith.mulf %1558, %1544 : vector<2x256xf32>
    %1560 = arith.addf %1537, %1559 : vector<2x256xf32>
    %1561 = vector.extract_strided_slice %818 {offsets = [0, 16], sizes = [2, 240], strides = [1, 1]} : vector<2x256xf32> to vector<2x240xf32>
    %cst_271 = arith.constant 0.000000e+00 : f32
    %1562 = vector.broadcast %cst_271 : f32 to vector<2x16xf32>
    %1563 = tpu.concatenate %1561, %1562 in 1 : vector<2x240xf32>, vector<2x16xf32> -> vector<2x256xf32>
    %c124_272 = arith.constant 124 : index
    %1564 = memref.load %arg4[%c124_272] : memref<144xf32, #tpu.memory_space<smem>>
    %1565 = vector.broadcast %1564 : f32 to vector<2x256xf32>
    %1566 = arith.mulf %1565, %1563 : vector<2x256xf32>
    %1567 = arith.addf %1548, %1566 : vector<2x256xf32>
    %c125_273 = arith.constant 125 : index
    %1568 = memref.load %arg4[%c125_273] : memref<144xf32, #tpu.memory_space<smem>>
    %1569 = vector.broadcast %1568 : f32 to vector<2x256xf32>
    %1570 = arith.mulf %1569, %1563 : vector<2x256xf32>
    %1571 = arith.addf %1552, %1570 : vector<2x256xf32>
    %c126_274 = arith.constant 126 : index
    %1572 = memref.load %arg4[%c126_274] : memref<144xf32, #tpu.memory_space<smem>>
    %1573 = vector.broadcast %1572 : f32 to vector<2x256xf32>
    %1574 = arith.mulf %1573, %1563 : vector<2x256xf32>
    %1575 = arith.addf %1556, %1574 : vector<2x256xf32>
    %c127_275 = arith.constant 127 : index
    %1576 = memref.load %arg4[%c127_275] : memref<144xf32, #tpu.memory_space<smem>>
    %1577 = vector.broadcast %1576 : f32 to vector<2x256xf32>
    %1578 = arith.mulf %1577, %1563 : vector<2x256xf32>
    %1579 = arith.addf %1560, %1578 : vector<2x256xf32>
    %1580 = vector.extract_strided_slice %818 {offsets = [0, 17], sizes = [2, 239], strides = [1, 1]} : vector<2x256xf32> to vector<2x239xf32>
    %cst_276 = arith.constant 0.000000e+00 : f32
    %1581 = vector.broadcast %cst_276 : f32 to vector<2x17xf32>
    %1582 = tpu.concatenate %1580, %1581 in 1 : vector<2x239xf32>, vector<2x17xf32> -> vector<2x256xf32>
    %cst_277 = arith.constant 0.000000e+00 : f32
    %1583 = vector.shape_cast %18 : vector<1x256xi1> to vector<1x256xi1>
    %1584 = vector.broadcast %1583 : vector<1x256xi1> to vector<2x256xi1>
    %1585 = vector.broadcast %cst_277 : f32 to vector<2x256xf32>
    %1586 = arith.select %1584, %1582, %1585 : vector<2x256xi1>, vector<2x256xf32>
    %c140_278 = arith.constant 140 : index
    %1587 = memref.load %arg4[%c140_278] : memref<144xf32, #tpu.memory_space<smem>>
    %1588 = vector.broadcast %1587 : f32 to vector<2x256xf32>
    %1589 = arith.mulf %1588, %1586 : vector<2x256xf32>
    %1590 = arith.addf %1567, %1589 : vector<2x256xf32>
    %c141_279 = arith.constant 141 : index
    %1591 = memref.load %arg4[%c141_279] : memref<144xf32, #tpu.memory_space<smem>>
    %1592 = vector.broadcast %1591 : f32 to vector<2x256xf32>
    %1593 = arith.mulf %1592, %1586 : vector<2x256xf32>
    %1594 = arith.addf %1571, %1593 : vector<2x256xf32>
    %c142_280 = arith.constant 142 : index
    %1595 = memref.load %arg4[%c142_280] : memref<144xf32, #tpu.memory_space<smem>>
    %1596 = vector.broadcast %1595 : f32 to vector<2x256xf32>
    %1597 = arith.mulf %1596, %1586 : vector<2x256xf32>
    %1598 = arith.addf %1575, %1597 : vector<2x256xf32>
    %c143_281 = arith.constant 143 : index
    %1599 = memref.load %arg4[%c143_281] : memref<144xf32, #tpu.memory_space<smem>>
    %1600 = vector.broadcast %1599 : f32 to vector<2x256xf32>
    %1601 = arith.mulf %1600, %1586 : vector<2x256xf32>
    %1602 = arith.addf %1579, %1601 : vector<2x256xf32>
    %1603 = arith.addf %1590, %23 : vector<2x256xf32>
    %cst_282 = arith.constant 0.000000e+00 : f32
    %1604 = vector.broadcast %cst_282 : f32 to vector<2x256xf32>
    %1605 = arith.maximumf %1603, %1604 : vector<2x256xf32>
    %c0_283 = arith.constant 0 : index
    %c0_284 = arith.constant 0 : index
    %c0_285 = arith.constant 0 : index
    %1606 = vector.load %arg6[%c0_283, %c0_284, %c0_285] : memref<1x2x1024xf32, #tpu.memory_space<vmem>>, vector<1x2x256xf32>
    %1607 = vector.shape_cast %1606 : vector<1x2x256xf32> to vector<2x256xf32>
    %1608 = vector.shape_cast %1605 : vector<2x256xf32> to vector<1x2x256xf32>
    tpu.vector_store %arg6[%c0_283, %c0_284, %c0_285], %1608 {strides = array<i32>} : memref<1x2x1024xf32, #tpu.memory_space<vmem>>, vector<1x2x256xf32>,
    %1609 = arith.addf %1594, %24 : vector<2x256xf32>
    %cst_286 = arith.constant 0.000000e+00 : f32
    %1610 = vector.broadcast %cst_286 : f32 to vector<2x256xf32>
    %1611 = arith.maximumf %1609, %1610 : vector<2x256xf32>
    %c0_287 = arith.constant 0 : index
    %c0_288 = arith.constant 0 : index
    %c256 = arith.constant 256 : index
    %1612 = vector.load %arg6[%c0_287, %c0_288, %c256] : memref<1x2x1024xf32, #tpu.memory_space<vmem>>, vector<1x2x256xf32>
    %1613 = vector.shape_cast %1612 : vector<1x2x256xf32> to vector<2x256xf32>
    %1614 = vector.shape_cast %1611 : vector<2x256xf32> to vector<1x2x256xf32>
    tpu.vector_store %arg6[%c0_287, %c0_288, %c256], %1614 {strides = array<i32>} : memref<1x2x1024xf32, #tpu.memory_space<vmem>>, vector<1x2x256xf32>,
    %1615 = arith.addf %1598, %25 : vector<2x256xf32>
    %cst_289 = arith.constant 0.000000e+00 : f32
    %1616 = vector.broadcast %cst_289 : f32 to vector<2x256xf32>
    %1617 = arith.maximumf %1615, %1616 : vector<2x256xf32>
    %c0_290 = arith.constant 0 : index
    %c0_291 = arith.constant 0 : index
    %c512 = arith.constant 512 : index
    %1618 = vector.load %arg6[%c0_290, %c0_291, %c512] : memref<1x2x1024xf32, #tpu.memory_space<vmem>>, vector<1x2x256xf32>
    %1619 = vector.shape_cast %1618 : vector<1x2x256xf32> to vector<2x256xf32>
    %1620 = vector.shape_cast %1617 : vector<2x256xf32> to vector<1x2x256xf32>
    tpu.vector_store %arg6[%c0_290, %c0_291, %c512], %1620 {strides = array<i32>} : memref<1x2x1024xf32, #tpu.memory_space<vmem>>, vector<1x2x256xf32>,
    %1621 = arith.addf %1602, %26 : vector<2x256xf32>
    %cst_292 = arith.constant 0.000000e+00 : f32
    %1622 = vector.broadcast %cst_292 : f32 to vector<2x256xf32>
    %1623 = arith.maximumf %1621, %1622 : vector<2x256xf32>
    %c0_293 = arith.constant 0 : index
    %c0_294 = arith.constant 0 : index
    %c768 = arith.constant 768 : index
    %1624 = vector.load %arg6[%c0_293, %c0_294, %c768] : memref<1x2x1024xf32, #tpu.memory_space<vmem>>, vector<1x2x256xf32>
    %1625 = vector.shape_cast %1624 : vector<1x2x256xf32> to vector<2x256xf32>
    %1626 = vector.shape_cast %1623 : vector<2x256xf32> to vector<1x2x256xf32>
    tpu.vector_store %arg6[%c0_293, %c0_294, %c768], %1626 {strides = array<i32>} : memref<1x2x1024xf32, #tpu.memory_space<vmem>>, vector<1x2x256xf32>,
    return
  }
  func.func @transform_0(%arg0: i32) -> (i32, i32, i32) {
    %c0_i32 = arith.constant 0 : i32
    %c0_i32_0 = arith.constant 0 : i32
    %c0_i32_1 = arith.constant 0 : i32
    return %arg0, %c0_i32, %c0_i32_0 : i32, i32, i32
  }
  func.func @transform_1(%arg0: i32) -> i32 {
    %c0_i32 = arith.constant 0 : i32
    %c0_i32_0 = arith.constant 0 : i32
    return %c0_i32 : i32
  }
  func.func @transform_2(%arg0: i32) -> i32 {
    %c0_i32 = arith.constant 0 : i32
    %c0_i32_0 = arith.constant 0 : i32
    return %c0_i32 : i32
  }
  func.func @transform_3(%arg0: i32) -> i32 {
    %c0_i32 = arith.constant 0 : i32
    %c0_i32_0 = arith.constant 0 : i32
    return %c0_i32 : i32
  }
  func.func @transform_4(%arg0: i32) -> i32 {
    %c0_i32 = arith.constant 0 : i32
    %c0_i32_0 = arith.constant 0 : i32
    return %c0_i32 : i32
  }
  func.func @transform_5(%arg0: i32) -> (i32, i32, i32) {
    %c0_i32 = arith.constant 0 : i32
    %c0_i32_0 = arith.constant 0 : i32
    %c0_i32_1 = arith.constant 0 : i32
    return %arg0, %c0_i32, %c0_i32_0 : i32, i32, i32
  }
}

</mosaic_0001>

<llo_original>
// kernel: tpu_custom_call.1
$region0: #{tpu_custom_call.1}
  #allocation0 [shape = 'u32[]', space=smem, size = 0x4, offset = 0x4, fixed_abs, tag = 'smem constant byte address 0x4 - core index']
  #allocation1 [shape = 'u32[144,128]{1,0:T(1,128)}', space=vmem, size = 0x12000, scoped, tag = 'internal scratch']
  %s0 = inlined_call_operand.hbm [shape: f32[1,2,1024], index: 0, kind: input, shape index: {}]
  %s1 = inlined_call_operand.hbm [shape: f32[144], index: 1, kind: input, shape index: {}]
  %s2 = inlined_call_operand.vmem [shape: f32[4], index: 2, kind: input, shape index: {}]
  %s3 = inlined_call_operand.vmem [shape: f32[144], index: 3, kind: input, shape index: {}]
  %s4 = inlined_call_operand.vmem [shape: f32[4], index: 4, kind: input, shape index: {}]
  %s5 = inlined_call_operand.hbm [shape: f32[1,2,1024], index: 5, kind: output, shape index: {}]
  %s6 = sld [smem:[#allocation0]]
  $region50: #{tpu_custom_call.1} parent=0
    _
  %s8 = ssub.s32 1, %s6
  %s9 = scalar_select 0, %s8, %s6
  $region1: #{tpu_custom_call.1} parent=0
    #allocation2 [shape = 'u8[8192]{0}', space=vmem, size = 0x2000, scoped, tag = 'input window, operand 0, single buffered']
    #allocation3 [shape = 's32[1]{0}', space=sflag, size = 0x4, scoped, tag = 'scoped memory for tpu_custom_call.1']
    #allocation4 [shape = 's32[1]{0}', space=sflag, size = 0x4, scoped, tag = 'scoped memory for tpu_custom_call.1']
    #allocation5 [shape = 's32[1]{0}', space=sflag, size = 0x4, scoped, tag = 'scoped memory for tpu_custom_call.1']
    #allocation6 [shape = 's32[1]{0}', space=sflag, size = 0x4, scoped, tag = 'scoped memory for tpu_custom_call.1']
    #allocation7 [shape = 'u8[1024]{0}', space=smem, size = 0x400, scoped, tag = 'input window, operand 1, single buffered']
    #allocation8 [shape = 'u8[512]{0}', space=smem, size = 0x200, scoped, tag = 'input window, operand 2, single buffered']
    #allocation9 [shape = 'u8[1024]{0}', space=smem, size = 0x400, scoped, tag = 'input window, operand 3, single buffered']
    #allocation10 [shape = 's32[1]{0}', space=sflag, size = 0x4, scoped, tag = 'scoped memory for tpu_custom_call.1']
    #allocation11 [shape = 'u8[512]{0}', space=smem, size = 0x200, scoped, tag = 'input window, operand 4, single buffered']
    #allocation12 [shape = 'u8[8192]{0}', space=vmem, size = 0x2000, scoped, tag = 'output window, operand 0, single buffered']
    %10 = vsyncpa [#allocation3], 0
    %11 = vsyncpa [#allocation5], 0
    %12 = vsyncpa [#allocation6], 0
    %13 = vsyncpa [#allocation10], 0
    %14 = vsyncpa [#allocation4], 0
    // Predicated region
    $region2: #{tpu_custom_call.1} parent=1 // pred_check
      _
    $region3: #{tpu_custom_call.1} parent=1 // pred_check_branch
      %16 = sbr.rel (0) target = $region5
    $region4: #{tpu_custom_call.1} parent=1 // pred_region
      %s18 = ssub.s32 256, 256
      %19 = vsyncadd [#allocation3], %s18
      %s21 = sshll.u32 [#allocation2], 4
      %s22 = int_to_ptr.vmem [resolvable:$true] %s21
      %24 = dma.hbm_to_vmem [thread:$0]  %s0, 256, %s22, [#allocation3]
    $region5: #{tpu_custom_call.1} parent=1 // pred_fallthru
      _
    // Predicated region
    $region6: #{tpu_custom_call.1} parent=1 // pred_check
      _
    $region7: #{tpu_custom_call.1} parent=1 // pred_check_branch
      %26 = sbr.rel (0) target = $region9
    $region8: #{tpu_custom_call.1} parent=1 // pred_region
      %s28 = ssub.s32 32, 32
      %29 = vsyncadd [#allocation5], %s28
      %32 = dma.hbm_to_smem %s1, 32, [#allocation7], [#allocation5]
    $region9: #{tpu_custom_call.1} parent=1 // pred_fallthru
      _
    // Predicated region
    $region10: #{tpu_custom_call.1} parent=1 // pred_check
      _
    $region11: #{tpu_custom_call.1} parent=1 // pred_check_branch
      %34 = sbr.rel (0) target = $region13
    $region12: #{tpu_custom_call.1} parent=1 // pred_region
      %s36 = ssub.s32 16, 16
      %37 = vsyncadd [#allocation6], %s36
      %s39 = sshll.u32 %s2, 4
      %s40 = int_to_ptr.vmem [resolvable:$true] %s39
      %42 = dma.vmem_to_smem %s40, 16, [#allocation8], [#allocation6]
    $region13: #{tpu_custom_call.1} parent=1 // pred_fallthru
      _
    // Predicated region
    $region14: #{tpu_custom_call.1} parent=1 // pred_check
      _
    $region15: #{tpu_custom_call.1} parent=1 // pred_check_branch
      %44 = sbr.rel (0) target = $region17
    $region16: #{tpu_custom_call.1} parent=1 // pred_region
      %s46 = ssub.s32 32, 32
      %47 = vsyncadd [#allocation10], %s46
      %s49 = sshll.u32 %s3, 4
      %s50 = int_to_ptr.vmem [resolvable:$true] %s49
      %52 = dma.vmem_to_smem %s50, 32, [#allocation9], [#allocation10]
    $region17: #{tpu_custom_call.1} parent=1 // pred_fallthru
      _
    // Predicated region
    $region18: #{tpu_custom_call.1} parent=1 // pred_check
      _
    $region19: #{tpu_custom_call.1} parent=1 // pred_check_branch
      %54 = sbr.rel (0) target = $region21
    $region20: #{tpu_custom_call.1} parent=1 // pred_region
      %s56 = ssub.s32 16, 16
      %57 = vsyncadd [#allocation10], %s56
      %s59 = sshll.u32 %s4, 4
      %s60 = int_to_ptr.vmem [resolvable:$true] %s59
      %62 = dma.vmem_to_smem %s60, 16, [#allocation11], [#allocation10]
    $region21: #{tpu_custom_call.1} parent=1 // pred_fallthru
      _
    // Predicated region
    $region22: #{tpu_custom_call.1} parent=1 // pred_check
      _
    $region23: #{tpu_custom_call.1} parent=1 // pred_check_branch
      %64 = sbr.rel (0) target = $region25
    $region24: #{tpu_custom_call.1} parent=1 // pred_region
      %65 = dma.done [#allocation3], 256
    $region25: #{tpu_custom_call.1} parent=1 // pred_fallthru
      _
    // Predicated region
    $region26: #{tpu_custom_call.1} parent=1 // pred_check
      _
    $region27: #{tpu_custom_call.1} parent=1 // pred_check_branch
      %67 = sbr.rel (0) target = $region29
    $region28: #{tpu_custom_call.1} parent=1 // pred_region
      %68 = dma.done [#allocation5], 32
    $region29: #{tpu_custom_call.1} parent=1 // pred_fallthru
      _
    // Predicated region
    $region30: #{tpu_custom_call.1} parent=1 // pred_check
      _
    $region31: #{tpu_custom_call.1} parent=1 // pred_check_branch
      %70 = sbr.rel (0) target = $region33
    $region32: #{tpu_custom_call.1} parent=1 // pred_region
      %71 = dma.done [#allocation6], 16
    $region33: #{tpu_custom_call.1} parent=1 // pred_fallthru
      _
    // Predicated region
    $region34: #{tpu_custom_call.1} parent=1 // pred_check
      _
    $region35: #{tpu_custom_call.1} parent=1 // pred_check_branch
      %73 = sbr.rel (0) target = $region37
    $region36: #{tpu_custom_call.1} parent=1 // pred_region
      %74 = dma.done [#allocation10], 32
    $region37: #{tpu_custom_call.1} parent=1 // pred_fallthru
      _
    // Predicated region
    $region38: #{tpu_custom_call.1} parent=1 // pred_check
      _
    $region39: #{tpu_custom_call.1} parent=1 // pred_check_branch
      %76 = sbr.rel (0) target = $region41
    $region40: #{tpu_custom_call.1} parent=1 // pred_region
      %77 = dma.done [#allocation10], 16
    $region41: #{tpu_custom_call.1} parent=1 // pred_fallthru
      _
    %78 = sfence
    %v79 = vlaneseq
    %v80 = vand.u32 %v79, 127
    %v81 = vadd.s32 %v80, 128
    %vm82 = vcmp.lt.s32.totalorder %v80, 0
    %v83 = vsub.s32 0, %v80
    %v84 = vsel %vm82, %v83, %v80
    %v85 = vshrl.u32 %v84, 4
    %v86 = vand.u32 %v84, 15
    %v87 = vsub.s32 0, %v86
    %v88 = vsel %vm82, %v87, %v86
    %vm89 = vcmp.lt.s32.totalorder %v81, 0
    %v90 = vsub.s32 0, %v81
    %v91 = vsel %vm89, %v90, %v81
    %v92 = vshrl.u32 %v91, 4
    %v93 = vand.u32 %v91, 15
    %v94 = vsub.s32 0, %v93
    %v95 = vsel %vm89, %v94, %v93
    %vm96 = vcmp.ne.s32.totalorder %v88, 0
    %vm97 = vcmp.ne.s32.totalorder %v95, 0
    %vm98 = vcmp.lt.s32.totalorder %v88, 0
    %vm99 = vcmp.lt.s32.totalorder %v95, 0
    %vm100 = vmand %vm98, %vm96
    %vm101 = vmand %vm99, %vm97
    %v102 = vadd.s32 %v88, 16
    %v103 = vadd.s32 %v95, 16
    %v104 = vsel %vm100, %v102, %v88
    %v105 = vsel %vm101, %v103, %v95
    %vm106 = vcmp.lt.s32.totalorder %v104, 15
    %vm107 = vcmp.lt.s32.totalorder %v105, 15
    %vm108 = vcmp.gt.s32.totalorder %v104, 0
    %vm109 = vcmp.gt.s32.totalorder %v105, 0
    %v110 = vld [vmem:[#allocation2] sm:$0xff]
    %v111 = vld [vmem:[#allocation2 + $0x8] sm:$0xff]
    %s112 = sld [smem:[#allocation8]]
    %v113 = vstv %s112
    %v114 = vadd.f32 %v113, 0.0
    %s115 = sld [smem:[#allocation8 + $0x1]]
    %v116 = vstv %s115
    %v117 = vadd.f32 %v116, 0.0
    %s118 = sld [smem:[#allocation8 + $0x2]]
    %v119 = vstv %s118
    %v120 = vadd.f32 %v119, 0.0
    %s121 = sld [smem:[#allocation8 + $0x3]]
    %v122 = vstv %s121
    %v123 = vadd.f32 %v122, 0.0
    %v126 = vunpack.c.l.s4 1983009808
    %v127 = vunpack.c.0.s8 %v126
    %v128 = vlaneseq
    %v129 = vshrl.u32 %v128, 7
    %v130 = vsub.s32 %v127, %v129
    %v131 = vrot.slane %v110, %v130
    %v132 = vcombine.high %v131, %v131
    %133 = vrot.lane.b32.xlu0 %v131, 17
    %v134 = vpop.permute.xlu0 %133
    %135 = vrot.lane.b32.xlu0 %v132, 17
    %v136 = vpop.permute.xlu0 %135
    %vm137 = vcmask 138240
    %v138 = vsel %vm137, %v134, %v136
    %v141 = vsel %vm137, 0.0, %v134
    %v142 = vsel %vm108, 1, 0
    %v143 = vsel %vm109, 1, 0
    %vm144 = vcmp.eq.s32.totalorder %v142, 1
    %vm145 = vcmp.eq.s32.totalorder %v143, 1
    %v146 = vsel %vm144, %v141, 0.0
    %v147 = vsel %vm145, %v138, 0.0
    %s148 = sld [smem:[#allocation7]]
    %v149 = vstv %s148
    %v150 = vmul.f32 %v149, %v146
    %v151 = vmul.f32 %v149, %v147
    %v152 = vadd.f32 %v114, %v150
    %v153 = vadd.f32 %v114, %v151
    %s154 = sld [smem:[#allocation7 + $0x1]]
    %v155 = vstv %s154
    %v156 = vmul.f32 %v155, %v146
    %v157 = vmul.f32 %v155, %v147
    %v158 = vadd.f32 %v117, %v156
    %v159 = vadd.f32 %v117, %v157
    %s160 = sld [smem:[#allocation7 + $0x2]]
    %v161 = vstv %s160
    %v162 = vmul.f32 %v161, %v146
    %v163 = vmul.f32 %v161, %v147
    %v164 = vadd.f32 %v120, %v162
    %v165 = vadd.f32 %v120, %v163
    %s166 = sld [smem:[#allocation7 + $0x3]]
    %v167 = vstv %s166
    %v168 = vmul.f32 %v167, %v146
    %v169 = vmul.f32 %v167, %v147
    %v170 = vadd.f32 %v123, %v168
    %v171 = vadd.f32 %v123, %v169
    %172 = vrot.lane.b32.xlu0 %v131, 16
    %v173 = vpop.permute.xlu0 %172
    %174 = vrot.lane.b32.xlu0 %v132, 16
    %v175 = vpop.permute.xlu0 %174
    %vm176 = vcmask 130048
    %v177 = vsel %vm176, %v173, %v175
    %v180 = vsel %vm176, 0.0, %v173
    %s181 = sld [smem:[#allocation7 + $0x10]]
    %v182 = vstv %s181
    %v183 = vmul.f32 %v182, %v180
    %v184 = vmul.f32 %v182, %v177
    %v185 = vadd.f32 %v152, %v183
    %v186 = vadd.f32 %v153, %v184
    %s187 = sld [smem:[#allocation7 + $0x11]]
    %v188 = vstv %s187
    %v189 = vmul.f32 %v188, %v180
    %v190 = vmul.f32 %v188, %v177
    %v191 = vadd.f32 %v158, %v189
    %v192 = vadd.f32 %v159, %v190
    %s193 = sld [smem:[#allocation7 + $0x12]]
    %v194 = vstv %s193
    %v195 = vmul.f32 %v194, %v180
    %v196 = vmul.f32 %v194, %v177
    %v197 = vadd.f32 %v164, %v195
    %v198 = vadd.f32 %v165, %v196
    %s199 = sld [smem:[#allocation7 + $0x13]]
    %v200 = vstv %s199
    %v201 = vmul.f32 %v200, %v180
    %v202 = vmul.f32 %v200, %v177
    %v203 = vadd.f32 %v170, %v201
    %v204 = vadd.f32 %v171, %v202
    %205 = vrot.lane.b32.xlu0 %v131, 15
    %v206 = vpop.permute.xlu0 %205
    %207 = vrot.lane.b32.xlu0 %v132, 15
    %v208 = vpop.permute.xlu0 %207
    %vm209 = vcmask 121856
    %v210 = vsel %vm209, %v206, %v208
    %v213 = vsel %vm209, 0.0, %v206
    %v214 = vsel %vm106, 1, 0
    %v215 = vsel %vm107, 1, 0
    %vm216 = vcmp.eq.s32.totalorder %v214, 1
    %vm217 = vcmp.eq.s32.totalorder %v215, 1
    %v218 = vsel %vm216, %v213, 0.0
    %v219 = vsel %vm217, %v210, 0.0
    %s220 = sld [smem:[#allocation7 + $0x20]]
    %v221 = vstv %s220
    %v222 = vmul.f32 %v221, %v218
    %v223 = vmul.f32 %v221, %v219
    %v224 = vadd.f32 %v185, %v222
    %v225 = vadd.f32 %v186, %v223
    %s226 = sld [smem:[#allocation7 + $0x21]]
    %v227 = vstv %s226
    %v228 = vmul.f32 %v227, %v218
    %v229 = vmul.f32 %v227, %v219
    %v230 = vadd.f32 %v191, %v228
    %v231 = vadd.f32 %v192, %v229
    %s232 = sld [smem:[#allocation7 + $0x22]]
    %v233 = vstv %s232
    %v234 = vmul.f32 %v233, %v218
    %v235 = vmul.f32 %v233, %v219
    %v236 = vadd.f32 %v197, %v234
    %v237 = vadd.f32 %v198, %v235
    %s238 = sld [smem:[#allocation7 + $0x23]]
    %v239 = vstv %s238
    %v240 = vmul.f32 %v239, %v218
    %v241 = vmul.f32 %v239, %v219
    %v242 = vadd.f32 %v203, %v240
    %v243 = vadd.f32 %v204, %v241
    %244 = vrot.lane.b32.xlu0 %v131, 1
    %v245 = vpop.permute.xlu0 %244
    %246 = vrot.lane.b32.xlu0 %v132, 1
    %v247 = vpop.permute.xlu0 %246
    %vm248 = vcmask 7168
    %v249 = vsel %vm248, %v245, %v247
    %v252 = vsel %vm248, 0.0, %v245
    %v253 = vsel %vm144, %v252, 0.0
    %v254 = vsel %vm145, %v249, 0.0
    %s255 = sld [smem:[#allocation7 + $0x30]]
    %v256 = vstv %s255
    %v257 = vmul.f32 %v256, %v253
    %v258 = vmul.f32 %v256, %v254
    %v259 = vadd.f32 %v224, %v257
    %v260 = vadd.f32 %v225, %v258
    %s261 = sld [smem:[#allocation7 + $0x31]]
    %v262 = vstv %s261
    %v263 = vmul.f32 %v262, %v253
    %v264 = vmul.f32 %v262, %v254
    %v265 = vadd.f32 %v230, %v263
    %v266 = vadd.f32 %v231, %v264
    %s267 = sld [smem:[#allocation7 + $0x32]]
    %v268 = vstv %s267
    %v269 = vmul.f32 %v268, %v253
    %v270 = vmul.f32 %v268, %v254
    %v271 = vadd.f32 %v236, %v269
    %v272 = vadd.f32 %v237, %v270
    %s273 = sld [smem:[#allocation7 + $0x33]]
    %v274 = vstv %s273
    %v275 = vmul.f32 %v274, %v253
    %v276 = vmul.f32 %v274, %v254
    %v277 = vadd.f32 %v242, %v275
    %v278 = vadd.f32 %v243, %v276
    %s279 = sld [smem:[#allocation7 + $0x40]]
    %v280 = vstv %s279
    %v281 = vmul.f32 %v280, %v110
    %v284 = vunpack.c.l.s4 1983009808
    %v285 = vunpack.c.0.s8 %v284
    %v286 = vlaneseq
    %v287 = vshrl.u32 %v286, 7
    %v288 = vsub.s32 %v285, %v287
    %v289 = vrot.slane %v281, %v288
    %v290 = vcombine.high %v289, %v289
    %v293 = vadd.f32 %v259, %v289
    %v294 = vadd.f32 %v260, %v290
    %s295 = sld [smem:[#allocation7 + $0x41]]
    %v296 = vstv %s295
    %v297 = vmul.f32 %v296, %v110
    %v300 = vunpack.c.l.s4 1983009808
    %v301 = vunpack.c.0.s8 %v300
    %v302 = vlaneseq
    %v303 = vshrl.u32 %v302, 7
    %v304 = vsub.s32 %v301, %v303
    %v305 = vrot.slane %v297, %v304
    %v306 = vcombine.high %v305, %v305
    %v309 = vadd.f32 %v265, %v305
    %v310 = vadd.f32 %v266, %v306
    %s311 = sld [smem:[#allocation7 + $0x42]]
    %v312 = vstv %s311
    %v313 = vmul.f32 %v312, %v110
    %v316 = vunpack.c.l.s4 1983009808
    %v317 = vunpack.c.0.s8 %v316
    %v318 = vlaneseq
    %v319 = vshrl.u32 %v318, 7
    %v320 = vsub.s32 %v317, %v319
    %v321 = vrot.slane %v313, %v320
    %v322 = vcombine.high %v321, %v321
    %v325 = vadd.f32 %v271, %v321
    %v326 = vadd.f32 %v272, %v322
    %s327 = sld [smem:[#allocation7 + $0x43]]
    %v328 = vstv %s327
    %v329 = vmul.f32 %v328, %v110
    %v332 = vunpack.c.l.s4 1983009808
    %v333 = vunpack.c.0.s8 %v332
    %v334 = vlaneseq
    %v335 = vshrl.u32 %v334, 7
    %v336 = vsub.s32 %v333, %v335
    %v337 = vrot.slane %v329, %v336
    %v338 = vcombine.high %v337, %v337
    %v341 = vadd.f32 %v277, %v337
    %v342 = vadd.f32 %v278, %v338
    %343 = vrot.lane.b32.xlu0 %v131, 127
    %v344 = vpop.permute.xlu0 %343
    %345 = vrot.lane.b32.xlu0 %v132, 127
    %v346 = vpop.permute.xlu0 %345
    %vm347 = vcmask 1039360
    %v348 = vsel %vm347, %v344, %v346
    %v351 = vsel %vm347, %v346, 0.0
    %v352 = vsel %vm216, %v348, 0.0
    %v353 = vsel %vm217, %v351, 0.0
    %s354 = sld [smem:[#allocation7 + $0x50]]
    %v355 = vstv %s354
    %v356 = vmul.f32 %v355, %v352
    %v357 = vmul.f32 %v355, %v353
    %v358 = vadd.f32 %v293, %v356
    %v359 = vadd.f32 %v294, %v357
    %s360 = sld [smem:[#allocation7 + $0x51]]
    %v361 = vstv %s360
    %v362 = vmul.f32 %v361, %v352
    %v363 = vmul.f32 %v361, %v353
    %v364 = vadd.f32 %v309, %v362
    %v365 = vadd.f32 %v310, %v363
    %s366 = sld [smem:[#allocation7 + $0x52]]
    %v367 = vstv %s366
    %v368 = vmul.f32 %v367, %v352
    %v369 = vmul.f32 %v367, %v353
    %v370 = vadd.f32 %v325, %v368
    %v371 = vadd.f32 %v326, %v369
    %s372 = sld [smem:[#allocation7 + $0x53]]
    %v373 = vstv %s372
    %v374 = vmul.f32 %v373, %v352
    %v375 = vmul.f32 %v373, %v353
    %v376 = vadd.f32 %v341, %v374
    %v377 = vadd.f32 %v342, %v375
    %378 = vrot.lane.b32.xlu0 %v131, 113
    %v379 = vpop.permute.xlu0 %378
    %380 = vrot.lane.b32.xlu0 %v132, 113
    %v381 = vpop.permute.xlu0 %380
    %vm382 = vcmask 924672
    %v383 = vsel %vm382, %v379, %v381
    %v386 = vsel %vm382, %v381, 0.0
    %v387 = vsel %vm144, %v383, 0.0
    %v388 = vsel %vm145, %v386, 0.0
    %s389 = sld [smem:[#allocation7 + $0x60]]
    %v390 = vstv %s389
    %v391 = vmul.f32 %v390, %v387
    %v392 = vmul.f32 %v390, %v388
    %v393 = vadd.f32 %v358, %v391
    %v394 = vadd.f32 %v359, %v392
    %s395 = sld [smem:[#allocation7 + $0x61]]
    %v396 = vstv %s395
    %v397 = vmul.f32 %v396, %v387
    %v398 = vmul.f32 %v396, %v388
    %v399 = vadd.f32 %v364, %v397
    %v400 = vadd.f32 %v365, %v398
    %s401 = sld [smem:[#allocation7 + $0x62]]
    %v402 = vstv %s401
    %v403 = vmul.f32 %v402, %v387
    %v404 = vmul.f32 %v402, %v388
    %v405 = vadd.f32 %v370, %v403
    %v406 = vadd.f32 %v371, %v404
    %s407 = sld [smem:[#allocation7 + $0x63]]
    %v408 = vstv %s407
    %v409 = vmul.f32 %v408, %v387
    %v410 = vmul.f32 %v408, %v388
    %v411 = vadd.f32 %v376, %v409
    %v412 = vadd.f32 %v377, %v410
    %413 = vrot.lane.b32.xlu0 %v131, 112
    %v414 = vpop.permute.xlu0 %413
    %415 = vrot.lane.b32.xlu0 %v132, 112
    %v416 = vpop.permute.xlu0 %415
    %vm417 = vcmask 916480
    %v418 = vsel %vm417, %v414, %v416
    %v421 = vsel %vm417, %v416, 0.0
    %s422 = sld [smem:[#allocation7 + $0x70]]
    %v423 = vstv %s422
    %v424 = vmul.f32 %v423, %v418
    %v425 = vmul.f32 %v423, %v421
    %v426 = vadd.f32 %v393, %v424
    %v427 = vadd.f32 %v394, %v425
    %s428 = sld [smem:[#allocation7 + $0x71]]
    %v429 = vstv %s428
    %v430 = vmul.f32 %v429, %v418
    %v431 = vmul.f32 %v429, %v421
    %v432 = vadd.f32 %v399, %v430
    %v433 = vadd.f32 %v400, %v431
    %s434 = sld [smem:[#allocation7 + $0x72]]
    %v435 = vstv %s434
    %v436 = vmul.f32 %v435, %v418
    %v437 = vmul.f32 %v435, %v421
    %v438 = vadd.f32 %v405, %v436
    %v439 = vadd.f32 %v406, %v437
    %s440 = sld [smem:[#allocation7 + $0x73]]
    %v441 = vstv %s440
    %v442 = vmul.f32 %v441, %v418
    %v443 = vmul.f32 %v441, %v421
    %v444 = vadd.f32 %v411, %v442
    %v445 = vadd.f32 %v412, %v443
    %446 = vrot.lane.b32.xlu0 %v131, 111
    %v447 = vpop.permute.xlu0 %446
    %448 = vrot.lane.b32.xlu0 %v132, 111
    %v449 = vpop.permute.xlu0 %448
    %vm450 = vcmask 908288
    %v451 = vsel %vm450, %v447, %v449
    %v454 = vsel %vm450, %v449, 0.0
    %v455 = vsel %vm216, %v451, 0.0
    %v456 = vsel %vm217, %v454, 0.0
    %s457 = sld [smem:[#allocation7 + $0x80]]
    %v458 = vstv %s457
    %v459 = vmul.f32 %v458, %v455
    %v460 = vmul.f32 %v458, %v456
    %v461 = vadd.f32 %v426, %v459
    %v462 = vadd.f32 %v427, %v460
    %s463 = sld [smem:[#allocation7 + $0x81]]
    %v464 = vstv %s463
    %v465 = vmul.f32 %v464, %v455
    %v466 = vmul.f32 %v464, %v456
    %v467 = vadd.f32 %v432, %v465
    %v468 = vadd.f32 %v433, %v466
    %s469 = sld [smem:[#allocation7 + $0x82]]
    %v470 = vstv %s469
    %v471 = vmul.f32 %v470, %v455
    %v472 = vmul.f32 %v470, %v456
    %v473 = vadd.f32 %v438, %v471
    %v474 = vadd.f32 %v439, %v472
    %s475 = sld [smem:[#allocation7 + $0x83]]
    %v476 = vstv %s475
    %v477 = vmul.f32 %v476, %v455
    %v478 = vmul.f32 %v476, %v456
    %v479 = vadd.f32 %v444, %v477
    %v480 = vadd.f32 %v445, %v478
    %v481 = vcombine.high %v110, %v110
    %v483 = vunpack.c.l.s4 1983009808
    %v484 = vunpack.c.0.s8 %v483
    %v485 = vlaneseq
    %v486 = vshrl.u32 %v485, 7
    %v487 = vsub.s32 %v484, %v486
    %v488 = vrot.slane %v481, %v487
    %v489 = vcombine.high %v488, %v488
    %490 = vrot.lane.b32.xlu0 %v488, 17
    %v491 = vpop.permute.xlu0 %490
    %492 = vrot.lane.b32.xlu0 %v489, 17
    %v493 = vpop.permute.xlu0 %492
    %v494 = vsel %vm137, %v491, %v493
    %v497 = vsel %vm137, 0.0, %v491
    %v498 = vsel %vm144, %v497, 0.0
    %v499 = vsel %vm145, %v494, 0.0
    %s500 = sld [smem:[#allocation7 + $0x4]]
    %v501 = vstv %s500
    %v502 = vmul.f32 %v501, %v498
    %v503 = vmul.f32 %v501, %v499
    %v504 = vadd.f32 %v461, %v502
    %v505 = vadd.f32 %v462, %v503
    %s506 = sld [smem:[#allocation7 + $0x5]]
    %v507 = vstv %s506
    %v508 = vmul.f32 %v507, %v498
    %v509 = vmul.f32 %v507, %v499
    %v510 = vadd.f32 %v467, %v508
    %v511 = vadd.f32 %v468, %v509
    %s512 = sld [smem:[#allocation7 + $0x6]]
    %v513 = vstv %s512
    %v514 = vmul.f32 %v513, %v498
    %v515 = vmul.f32 %v513, %v499
    %v516 = vadd.f32 %v473, %v514
    %v517 = vadd.f32 %v474, %v515
    %s518 = sld [smem:[#allocation7 + $0x7]]
    %v519 = vstv %s518
    %v520 = vmul.f32 %v519, %v498
    %v521 = vmul.f32 %v519, %v499
    %v522 = vadd.f32 %v479, %v520
    %v523 = vadd.f32 %v480, %v521
    %524 = vrot.lane.b32.xlu0 %v488, 16
    %v525 = vpop.permute.xlu0 %524
    %526 = vrot.lane.b32.xlu0 %v489, 16
    %v527 = vpop.permute.xlu0 %526
    %v528 = vsel %vm176, %v525, %v527
    %v531 = vsel %vm176, 0.0, %v525
    %s532 = sld [smem:[#allocation7 + $0x14]]
    %v533 = vstv %s532
    %v534 = vmul.f32 %v533, %v531
    %v535 = vmul.f32 %v533, %v528
    %v536 = vadd.f32 %v504, %v534
    %v537 = vadd.f32 %v505, %v535
    %s538 = sld [smem:[#allocation7 + $0x15]]
    %v539 = vstv %s538
    %v540 = vmul.f32 %v539, %v531
    %v541 = vmul.f32 %v539, %v528
    %v542 = vadd.f32 %v510, %v540
    %v543 = vadd.f32 %v511, %v541
    %s544 = sld [smem:[#allocation7 + $0x16]]
    %v545 = vstv %s544
    %v546 = vmul.f32 %v545, %v531
    %v547 = vmul.f32 %v545, %v528
    %v548 = vadd.f32 %v516, %v546
    %v549 = vadd.f32 %v517, %v547
    %s550 = sld [smem:[#allocation7 + $0x17]]
    %v551 = vstv %s550
    %v552 = vmul.f32 %v551, %v531
    %v553 = vmul.f32 %v551, %v528
    %v554 = vadd.f32 %v522, %v552
    %v555 = vadd.f32 %v523, %v553
    %556 = vrot.lane.b32.xlu0 %v488, 15
    %v557 = vpop.permute.xlu0 %556
    %558 = vrot.lane.b32.xlu0 %v489, 15
    %v559 = vpop.permute.xlu0 %558
    %v560 = vsel %vm209, %v557, %v559
    %v563 = vsel %vm209, 0.0, %v557
    %v564 = vsel %vm216, %v563, 0.0
    %v565 = vsel %vm217, %v560, 0.0
    %s566 = sld [smem:[#allocation7 + $0x24]]
    %v567 = vstv %s566
    %v568 = vmul.f32 %v567, %v564
    %v569 = vmul.f32 %v567, %v565
    %v570 = vadd.f32 %v536, %v568
    %v571 = vadd.f32 %v537, %v569
    %s572 = sld [smem:[#allocation7 + $0x25]]
    %v573 = vstv %s572
    %v574 = vmul.f32 %v573, %v564
    %v575 = vmul.f32 %v573, %v565
    %v576 = vadd.f32 %v542, %v574
    %v577 = vadd.f32 %v543, %v575
    %s578 = sld [smem:[#allocation7 + $0x26]]
    %v579 = vstv %s578
    %v580 = vmul.f32 %v579, %v564
    %v581 = vmul.f32 %v579, %v565
    %v582 = vadd.f32 %v548, %v580
    %v583 = vadd.f32 %v549, %v581
    %s584 = sld [smem:[#allocation7 + $0x27]]
    %v585 = vstv %s584
    %v586 = vmul.f32 %v585, %v564
    %v587 = vmul.f32 %v585, %v565
    %v588 = vadd.f32 %v554, %v586
    %v589 = vadd.f32 %v555, %v587
    %590 = vrot.lane.b32.xlu0 %v488, 1
    %v591 = vpop.permute.xlu0 %590
    %592 = vrot.lane.b32.xlu0 %v489, 1
    %v593 = vpop.permute.xlu0 %592
    %v594 = vsel %vm248, %v591, %v593
    %v597 = vsel %vm248, 0.0, %v591
    %v598 = vsel %vm144, %v597, 0.0
    %v599 = vsel %vm145, %v594, 0.0
    %s600 = sld [smem:[#allocation7 + $0x34]]
    %v601 = vstv %s600
    %v602 = vmul.f32 %v601, %v598
    %v603 = vmul.f32 %v601, %v599
    %v604 = vadd.f32 %v570, %v602
    %v605 = vadd.f32 %v571, %v603
    %s606 = sld [smem:[#allocation7 + $0x35]]
    %v607 = vstv %s606
    %v608 = vmul.f32 %v607, %v598
    %v609 = vmul.f32 %v607, %v599
    %v610 = vadd.f32 %v576, %v608
    %v611 = vadd.f32 %v577, %v609
    %s612 = sld [smem:[#allocation7 + $0x36]]
    %v613 = vstv %s612
    %v614 = vmul.f32 %v613, %v598
    %v615 = vmul.f32 %v613, %v599
    %v616 = vadd.f32 %v582, %v614
    %v617 = vadd.f32 %v583, %v615
    %s618 = sld [smem:[#allocation7 + $0x37]]
    %v619 = vstv %s618
    %v620 = vmul.f32 %v619, %v598
    %v621 = vmul.f32 %v619, %v599
    %v622 = vadd.f32 %v588, %v620
    %v623 = vadd.f32 %v589, %v621
    %s624 = sld [smem:[#allocation7 + $0x44]]
    %v625 = vstv %s624
    %v626 = vrot.slane %v110, 4
    %v628 = vmul.f32 %v625, %v626
    %v631 = vunpack.c.l.s4 1983009808
    %v632 = vunpack.c.0.s8 %v631
    %v633 = vlaneseq
    %v634 = vshrl.u32 %v633, 7
    %v635 = vsub.s32 %v632, %v634
    %v636 = vrot.slane %v628, %v635
    %v637 = vcombine.high %v636, %v636
    %v640 = vadd.f32 %v604, %v636
    %v641 = vadd.f32 %v605, %v637
    %s642 = sld [smem:[#allocation7 + $0x45]]
    %v643 = vstv %s642
    %v644 = vmul.f32 %v643, %v626
    %v647 = vunpack.c.l.s4 1983009808
    %v648 = vunpack.c.0.s8 %v647
    %v649 = vlaneseq
    %v650 = vshrl.u32 %v649, 7
    %v651 = vsub.s32 %v648, %v650
    %v652 = vrot.slane %v644, %v651
    %v653 = vcombine.high %v652, %v652
    %v656 = vadd.f32 %v610, %v652
    %v657 = vadd.f32 %v611, %v653
    %s658 = sld [smem:[#allocation7 + $0x46]]
    %v659 = vstv %s658
    %v660 = vmul.f32 %v659, %v626
    %v663 = vunpack.c.l.s4 1983009808
    %v664 = vunpack.c.0.s8 %v663
    %v665 = vlaneseq
    %v666 = vshrl.u32 %v665, 7
    %v667 = vsub.s32 %v664, %v666
    %v668 = vrot.slane %v660, %v667
    %v669 = vcombine.high %v668, %v668
    %v672 = vadd.f32 %v616, %v668
    %v673 = vadd.f32 %v617, %v669
    %s674 = sld [smem:[#allocation7 + $0x47]]
    %v675 = vstv %s674
    %v676 = vmul.f32 %v675, %v626
    %v679 = vunpack.c.l.s4 1983009808
    %v680 = vunpack.c.0.s8 %v679
    %v681 = vlaneseq
    %v682 = vshrl.u32 %v681, 7
    %v683 = vsub.s32 %v680, %v682
    %v684 = vrot.slane %v676, %v683
    %v685 = vcombine.high %v684, %v684
    %v688 = vadd.f32 %v622, %v684
    %v689 = vadd.f32 %v623, %v685
    %690 = vrot.lane.b32.xlu0 %v488, 127
    %v691 = vpop.permute.xlu0 %690
    %692 = vrot.lane.b32.xlu0 %v489, 127
    %v693 = vpop.permute.xlu0 %692
    %v694 = vsel %vm347, %v691, %v693
    %v697 = vsel %vm347, %v693, 0.0
    %v698 = vsel %vm216, %v694, 0.0
    %v699 = vsel %vm217, %v697, 0.0
    %s700 = sld [smem:[#allocation7 + $0x54]]
    %v701 = vstv %s700
    %v702 = vmul.f32 %v701, %v698
    %v703 = vmul.f32 %v701, %v699
    %v704 = vadd.f32 %v640, %v702
    %v705 = vadd.f32 %v641, %v703
    %s706 = sld [smem:[#allocation7 + $0x55]]
    %v707 = vstv %s706
    %v708 = vmul.f32 %v707, %v698
    %v709 = vmul.f32 %v707, %v699
    %v710 = vadd.f32 %v656, %v708
    %v711 = vadd.f32 %v657, %v709
    %s712 = sld [smem:[#allocation7 + $0x56]]
    %v713 = vstv %s712
    %v714 = vmul.f32 %v713, %v698
    %v715 = vmul.f32 %v713, %v699
    %v716 = vadd.f32 %v672, %v714
    %v717 = vadd.f32 %v673, %v715
    %s718 = sld [smem:[#allocation7 + $0x57]]
    %v719 = vstv %s718
    %v720 = vmul.f32 %v719, %v698
    %v721 = vmul.f32 %v719, %v699
    %v722 = vadd.f32 %v688, %v720
    %v723 = vadd.f32 %v689, %v721
    %724 = vrot.lane.b32.xlu0 %v488, 113
    %v725 = vpop.permute.xlu0 %724
    %726 = vrot.lane.b32.xlu0 %v489, 113
    %v727 = vpop.permute.xlu0 %726
    %v728 = vsel %vm382, %v725, %v727
    %v731 = vsel %vm382, %v727, 0.0
    %v732 = vsel %vm144, %v728, 0.0
    %v733 = vsel %vm145, %v731, 0.0
    %s734 = sld [smem:[#allocation7 + $0x64]]
    %v735 = vstv %s734
    %v736 = vmul.f32 %v735, %v732
    %v737 = vmul.f32 %v735, %v733
    %v738 = vadd.f32 %v704, %v736
    %v739 = vadd.f32 %v705, %v737
    %s740 = sld [smem:[#allocation7 + $0x65]]
    %v741 = vstv %s740
    %v742 = vmul.f32 %v741, %v732
    %v743 = vmul.f32 %v741, %v733
    %v744 = vadd.f32 %v710, %v742
    %v745 = vadd.f32 %v711, %v743
    %s746 = sld [smem:[#allocation7 + $0x66]]
    %v747 = vstv %s746
    %v748 = vmul.f32 %v747, %v732
    %v749 = vmul.f32 %v747, %v733
    %v750 = vadd.f32 %v716, %v748
    %v751 = vadd.f32 %v717, %v749
    %s752 = sld [smem:[#allocation7 + $0x67]]
    %v753 = vstv %s752
    %v754 = vmul.f32 %v753, %v732
    %v755 = vmul.f32 %v753, %v733
    %v756 = vadd.f32 %v722, %v754
    %v757 = vadd.f32 %v723, %v755
    %758 = vrot.lane.b32.xlu0 %v488, 112
    %v759 = vpop.permute.xlu0 %758
    %760 = vrot.lane.b32.xlu0 %v489, 112
    %v761 = vpop.permute.xlu0 %760
    %v762 = vsel %vm417, %v759, %v761
    %v765 = vsel %vm417, %v761, 0.0
    %s766 = sld [smem:[#allocation7 + $0x74]]
    %v767 = vstv %s766
    %v768 = vmul.f32 %v767, %v762
    %v769 = vmul.f32 %v767, %v765
    %v770 = vadd.f32 %v738, %v768
    %v771 = vadd.f32 %v739, %v769
    %s772 = sld [smem:[#allocation7 + $0x75]]
    %v773 = vstv %s772
    %v774 = vmul.f32 %v773, %v762
    %v775 = vmul.f32 %v773, %v765
    %v776 = vadd.f32 %v744, %v774
    %v777 = vadd.f32 %v745, %v775
    %s778 = sld [smem:[#allocation7 + $0x76]]
    %v779 = vstv %s778
    %v780 = vmul.f32 %v779, %v762
    %v781 = vmul.f32 %v779, %v765
    %v782 = vadd.f32 %v750, %v780
    %v783 = vadd.f32 %v751, %v781
    %s784 = sld [smem:[#allocation7 + $0x77]]
    %v785 = vstv %s784
    %v786 = vmul.f32 %v785, %v762
    %v787 = vmul.f32 %v785, %v765
    %v788 = vadd.f32 %v756, %v786
    %v789 = vadd.f32 %v757, %v787
    %790 = vrot.lane.b32.xlu0 %v488, 111
    %v791 = vpop.permute.xlu0 %790
    %792 = vrot.lane.b32.xlu0 %v489, 111
    %v793 = vpop.permute.xlu0 %792
    %v794 = vsel %vm450, %v791, %v793
    %v797 = vsel %vm450, %v793, 0.0
    %v798 = vsel %vm216, %v794, 0.0
    %v799 = vsel %vm217, %v797, 0.0
    %s800 = sld [smem:[#allocation7 + $0x84]]
    %v801 = vstv %s800
    %v802 = vmul.f32 %v801, %v798
    %v803 = vmul.f32 %v801, %v799
    %v804 = vadd.f32 %v770, %v802
    %v805 = vadd.f32 %v771, %v803
    %s806 = sld [smem:[#allocation7 + $0x85]]
    %v807 = vstv %s806
    %v808 = vmul.f32 %v807, %v798
    %v809 = vmul.f32 %v807, %v799
    %v810 = vadd.f32 %v776, %v808
    %v811 = vadd.f32 %v777, %v809
    %s812 = sld [smem:[#allocation7 + $0x86]]
    %v813 = vstv %s812
    %v814 = vmul.f32 %v813, %v798
    %v815 = vmul.f32 %v813, %v799
    %v816 = vadd.f32 %v782, %v814
    %v817 = vadd.f32 %v783, %v815
    %s818 = sld [smem:[#allocation7 + $0x87]]
    %v819 = vstv %s818
    %v820 = vmul.f32 %v819, %v798
    %v821 = vmul.f32 %v819, %v799
    %v822 = vadd.f32 %v788, %v820
    %v823 = vadd.f32 %v789, %v821
    %v826 = vunpack.c.l.s4 1983009808
    %v827 = vunpack.c.0.s8 %v826
    %v828 = vlaneseq
    %v829 = vshrl.u32 %v828, 7
    %v830 = vsub.s32 %v827, %v829
    %v831 = vrot.slane %v111, %v830
    %v832 = vcombine.high %v831, %v831
    %833 = vrot.lane.b32.xlu0 %v831, 17
    %v834 = vpop.permute.xlu0 %833
    %835 = vrot.lane.b32.xlu0 %v832, 17
    %v836 = vpop.permute.xlu0 %835
    %v837 = vsel %vm137, %v834, %v836
    %v840 = vsel %vm137, 0.0, %v834
    %v841 = vsel %vm144, %v840, 0.0
    %v842 = vsel %vm145, %v837, 0.0
    %s843 = sld [smem:[#allocation7 + $0x8]]
    %v844 = vstv %s843
    %v845 = vmul.f32 %v844, %v841
    %v846 = vmul.f32 %v844, %v842
    %v847 = vadd.f32 %v804, %v845
    %v848 = vadd.f32 %v805, %v846
    %s849 = sld [smem:[#allocation7 + $0x9]]
    %v850 = vstv %s849
    %v851 = vmul.f32 %v850, %v841
    %v852 = vmul.f32 %v850, %v842
    %v853 = vadd.f32 %v810, %v851
    %v854 = vadd.f32 %v811, %v852
    %s855 = sld [smem:[#allocation7 + $0xa]]
    %v856 = vstv %s855
    %v857 = vmul.f32 %v856, %v841
    %v858 = vmul.f32 %v856, %v842
    %v859 = vadd.f32 %v816, %v857
    %v860 = vadd.f32 %v817, %v858
    %s861 = sld [smem:[#allocation7 + $0xb]]
    %v862 = vstv %s861
    %v863 = vmul.f32 %v862, %v841
    %v864 = vmul.f32 %v862, %v842
    %v865 = vadd.f32 %v822, %v863
    %v866 = vadd.f32 %v823, %v864
    %867 = vrot.lane.b32.xlu0 %v831, 16
    %v868 = vpop.permute.xlu0 %867
    %869 = vrot.lane.b32.xlu0 %v832, 16
    %v870 = vpop.permute.xlu0 %869
    %v871 = vsel %vm176, %v868, %v870
    %v874 = vsel %vm176, 0.0, %v868
    %s875 = sld [smem:[#allocation7 + $0x18]]
    %v876 = vstv %s875
    %v877 = vmul.f32 %v876, %v874
    %v878 = vmul.f32 %v876, %v871
    %v879 = vadd.f32 %v847, %v877
    %v880 = vadd.f32 %v848, %v878
    %s881 = sld [smem:[#allocation7 + $0x19]]
    %v882 = vstv %s881
    %v883 = vmul.f32 %v882, %v874
    %v884 = vmul.f32 %v882, %v871
    %v885 = vadd.f32 %v853, %v883
    %v886 = vadd.f32 %v854, %v884
    %s887 = sld [smem:[#allocation7 + $0x1a]]
    %v888 = vstv %s887
    %v889 = vmul.f32 %v888, %v874
    %v890 = vmul.f32 %v888, %v871
    %v891 = vadd.f32 %v859, %v889
    %v892 = vadd.f32 %v860, %v890
    %s893 = sld [smem:[#allocation7 + $0x1b]]
    %v894 = vstv %s893
    %v895 = vmul.f32 %v894, %v874
    %v896 = vmul.f32 %v894, %v871
    %v897 = vadd.f32 %v865, %v895
    %v898 = vadd.f32 %v866, %v896
    %899 = vrot.lane.b32.xlu0 %v831, 15
    %v900 = vpop.permute.xlu0 %899
    %901 = vrot.lane.b32.xlu0 %v832, 15
    %v902 = vpop.permute.xlu0 %901
    %v903 = vsel %vm209, %v900, %v902
    %v906 = vsel %vm209, 0.0, %v900
    %v907 = vsel %vm216, %v906, 0.0
    %v908 = vsel %vm217, %v903, 0.0
    %s909 = sld [smem:[#allocation7 + $0x28]]
    %v910 = vstv %s909
    %v911 = vmul.f32 %v910, %v907
    %v912 = vmul.f32 %v910, %v908
    %v913 = vadd.f32 %v879, %v911
    %v914 = vadd.f32 %v880, %v912
    %s915 = sld [smem:[#allocation7 + $0x29]]
    %v916 = vstv %s915
    %v917 = vmul.f32 %v916, %v907
    %v918 = vmul.f32 %v916, %v908
    %v919 = vadd.f32 %v885, %v917
    %v920 = vadd.f32 %v886, %v918
    %s921 = sld [smem:[#allocation7 + $0x2a]]
    %v922 = vstv %s921
    %v923 = vmul.f32 %v922, %v907
    %v924 = vmul.f32 %v922, %v908
    %v925 = vadd.f32 %v891, %v923
    %v926 = vadd.f32 %v892, %v924
    %s927 = sld [smem:[#allocation7 + $0x2b]]
    %v928 = vstv %s927
    %v929 = vmul.f32 %v928, %v907
    %v930 = vmul.f32 %v928, %v908
    %v931 = vadd.f32 %v897, %v929
    %v932 = vadd.f32 %v898, %v930
    %933 = vrot.lane.b32.xlu0 %v831, 1
    %v934 = vpop.permute.xlu0 %933
    %935 = vrot.lane.b32.xlu0 %v832, 1
    %v936 = vpop.permute.xlu0 %935
    %v937 = vsel %vm248, %v934, %v936
    %v940 = vsel %vm248, 0.0, %v934
    %v941 = vsel %vm144, %v940, 0.0
    %v942 = vsel %vm145, %v937, 0.0
    %s943 = sld [smem:[#allocation7 + $0x38]]
    %v944 = vstv %s943
    %v945 = vmul.f32 %v944, %v941
    %v946 = vmul.f32 %v944, %v942
    %v947 = vadd.f32 %v913, %v945
    %v948 = vadd.f32 %v914, %v946
    %s949 = sld [smem:[#allocation7 + $0x39]]
    %v950 = vstv %s949
    %v951 = vmul.f32 %v950, %v941
    %v952 = vmul.f32 %v950, %v942
    %v953 = vadd.f32 %v919, %v951
    %v954 = vadd.f32 %v920, %v952
    %s955 = sld [smem:[#allocation7 + $0x3a]]
    %v956 = vstv %s955
    %v957 = vmul.f32 %v956, %v941
    %v958 = vmul.f32 %v956, %v942
    %v959 = vadd.f32 %v925, %v957
    %v960 = vadd.f32 %v926, %v958
    %s961 = sld [smem:[#allocation7 + $0x3b]]
    %v962 = vstv %s961
    %v963 = vmul.f32 %v962, %v941
    %v964 = vmul.f32 %v962, %v942
    %v965 = vadd.f32 %v931, %v963
    %v966 = vadd.f32 %v932, %v964
    %s967 = sld [smem:[#allocation7 + $0x48]]
    %v968 = vstv %s967
    %v969 = vmul.f32 %v968, %v111
    %v972 = vunpack.c.l.s4 1983009808
    %v973 = vunpack.c.0.s8 %v972
    %v974 = vlaneseq
    %v975 = vshrl.u32 %v974, 7
    %v976 = vsub.s32 %v973, %v975
    %v977 = vrot.slane %v969, %v976
    %v978 = vcombine.high %v977, %v977
    %v981 = vadd.f32 %v947, %v977
    %v982 = vadd.f32 %v948, %v978
    %s983 = sld [smem:[#allocation7 + $0x49]]
    %v984 = vstv %s983
    %v985 = vmul.f32 %v984, %v111
    %v988 = vunpack.c.l.s4 1983009808
    %v989 = vunpack.c.0.s8 %v988
    %v990 = vlaneseq
    %v991 = vshrl.u32 %v990, 7
    %v992 = vsub.s32 %v989, %v991
    %v993 = vrot.slane %v985, %v992
    %v994 = vcombine.high %v993, %v993
    %v997 = vadd.f32 %v953, %v993
    %v998 = vadd.f32 %v954, %v994
    %s999 = sld [smem:[#allocation7 + $0x4a]]
    %v1000 = vstv %s999
    %v1001 = vmul.f32 %v1000, %v111
    %v1004 = vunpack.c.l.s4 1983009808
    %v1005 = vunpack.c.0.s8 %v1004
    %v1006 = vlaneseq
    %v1007 = vshrl.u32 %v1006, 7
    %v1008 = vsub.s32 %v1005, %v1007
    %v1009 = vrot.slane %v1001, %v1008
    %v1010 = vcombine.high %v1009, %v1009
    %v1013 = vadd.f32 %v959, %v1009
    %v1014 = vadd.f32 %v960, %v1010
    %s1015 = sld [smem:[#allocation7 + $0x4b]]
    %v1016 = vstv %s1015
    %v1017 = vmul.f32 %v1016, %v111
    %v1020 = vunpack.c.l.s4 1983009808
    %v1021 = vunpack.c.0.s8 %v1020
    %v1022 = vlaneseq
    %v1023 = vshrl.u32 %v1022, 7
    %v1024 = vsub.s32 %v1021, %v1023
    %v1025 = vrot.slane %v1017, %v1024
    %v1026 = vcombine.high %v1025, %v1025
    %v1029 = vadd.f32 %v965, %v1025
    %v1030 = vadd.f32 %v966, %v1026
    %1031 = vrot.lane.b32.xlu0 %v831, 127
    %v1032 = vpop.permute.xlu0 %1031
    %1033 = vrot.lane.b32.xlu0 %v832, 127
    %v1034 = vpop.permute.xlu0 %1033
    %v1035 = vsel %vm347, %v1032, %v1034
    %v1038 = vsel %vm347, %v1034, 0.0
    %v1039 = vsel %vm216, %v1035, 0.0
    %v1040 = vsel %vm217, %v1038, 0.0
    %s1041 = sld [smem:[#allocation7 + $0x58]]
    %v1042 = vstv %s1041
    %v1043 = vmul.f32 %v1042, %v1039
    %v1044 = vmul.f32 %v1042, %v1040
    %v1045 = vadd.f32 %v981, %v1043
    %v1046 = vadd.f32 %v982, %v1044
    %s1047 = sld [smem:[#allocation7 + $0x59]]
    %v1048 = vstv %s1047
    %v1049 = vmul.f32 %v1048, %v1039
    %v1050 = vmul.f32 %v1048, %v1040
    %v1051 = vadd.f32 %v997, %v1049
    %v1052 = vadd.f32 %v998, %v1050
    %s1053 = sld [smem:[#allocation7 + $0x5a]]
    %v1054 = vstv %s1053
    %v1055 = vmul.f32 %v1054, %v1039
    %v1056 = vmul.f32 %v1054, %v1040
    %v1057 = vadd.f32 %v1013, %v1055
    %v1058 = vadd.f32 %v1014, %v1056
    %s1059 = sld [smem:[#allocation7 + $0x5b]]
    %v1060 = vstv %s1059
    %v1061 = vmul.f32 %v1060, %v1039
    %v1062 = vmul.f32 %v1060, %v1040
    %v1063 = vadd.f32 %v1029, %v1061
    %v1064 = vadd.f32 %v1030, %v1062
    %1065 = vrot.lane.b32.xlu0 %v831, 113
    %v1066 = vpop.permute.xlu0 %1065
    %1067 = vrot.lane.b32.xlu0 %v832, 113
    %v1068 = vpop.permute.xlu0 %1067
    %v1069 = vsel %vm382, %v1066, %v1068
    %v1072 = vsel %vm382, %v1068, 0.0
    %v1073 = vsel %vm144, %v1069, 0.0
    %v1074 = vsel %vm145, %v1072, 0.0
    %s1075 = sld [smem:[#allocation7 + $0x68]]
    %v1076 = vstv %s1075
    %v1077 = vmul.f32 %v1076, %v1073
    %v1078 = vmul.f32 %v1076, %v1074
    %v1079 = vadd.f32 %v1045, %v1077
    %v1080 = vadd.f32 %v1046, %v1078
    %s1081 = sld [smem:[#allocation7 + $0x69]]
    %v1082 = vstv %s1081
    %v1083 = vmul.f32 %v1082, %v1073
    %v1084 = vmul.f32 %v1082, %v1074
    %v1085 = vadd.f32 %v1051, %v1083
    %v1086 = vadd.f32 %v1052, %v1084
    %s1087 = sld [smem:[#allocation7 + $0x6a]]
    %v1088 = vstv %s1087
    %v1089 = vmul.f32 %v1088, %v1073
    %v1090 = vmul.f32 %v1088, %v1074
    %v1091 = vadd.f32 %v1057, %v1089
    %v1092 = vadd.f32 %v1058, %v1090
    %s1093 = sld [smem:[#allocation7 + $0x6b]]
    %v1094 = vstv %s1093
    %v1095 = vmul.f32 %v1094, %v1073
    %v1096 = vmul.f32 %v1094, %v1074
    %v1097 = vadd.f32 %v1063, %v1095
    %v1098 = vadd.f32 %v1064, %v1096
    %1099 = vrot.lane.b32.xlu0 %v831, 112
    %v1100 = vpop.permute.xlu0 %1099
    %1101 = vrot.lane.b32.xlu0 %v832, 112
    %v1102 = vpop.permute.xlu0 %1101
    %v1103 = vsel %vm417, %v1100, %v1102
    %v1106 = vsel %vm417, %v1102, 0.0
    %s1107 = sld [smem:[#allocation7 + $0x78]]
    %v1108 = vstv %s1107
    %v1109 = vmul.f32 %v1108, %v1103
    %v1110 = vmul.f32 %v1108, %v1106
    %v1111 = vadd.f32 %v1079, %v1109
    %v1112 = vadd.f32 %v1080, %v1110
    %s1113 = sld [smem:[#allocation7 + $0x79]]
    %v1114 = vstv %s1113
    %v1115 = vmul.f32 %v1114, %v1103
    %v1116 = vmul.f32 %v1114, %v1106
    %v1117 = vadd.f32 %v1085, %v1115
    %v1118 = vadd.f32 %v1086, %v1116
    %s1119 = sld [smem:[#allocation7 + $0x7a]]
    %v1120 = vstv %s1119
    %v1121 = vmul.f32 %v1120, %v1103
    %v1122 = vmul.f32 %v1120, %v1106
    %v1123 = vadd.f32 %v1091, %v1121
    %v1124 = vadd.f32 %v1092, %v1122
    %s1125 = sld [smem:[#allocation7 + $0x7b]]
    %v1126 = vstv %s1125
    %v1127 = vmul.f32 %v1126, %v1103
    %v1128 = vmul.f32 %v1126, %v1106
    %v1129 = vadd.f32 %v1097, %v1127
    %v1130 = vadd.f32 %v1098, %v1128
    %1131 = vrot.lane.b32.xlu0 %v831, 111
    %v1132 = vpop.permute.xlu0 %1131
    %1133 = vrot.lane.b32.xlu0 %v832, 111
    %v1134 = vpop.permute.xlu0 %1133
    %v1135 = vsel %vm450, %v1132, %v1134
    %v1138 = vsel %vm450, %v1134, 0.0
    %v1139 = vsel %vm216, %v1135, 0.0
    %v1140 = vsel %vm217, %v1138, 0.0
    %s1141 = sld [smem:[#allocation7 + $0x88]]
    %v1142 = vstv %s1141
    %v1143 = vmul.f32 %v1142, %v1139
    %v1144 = vmul.f32 %v1142, %v1140
    %v1145 = vadd.f32 %v1111, %v1143
    %v1146 = vadd.f32 %v1112, %v1144
    %s1147 = sld [smem:[#allocation7 + $0x89]]
    %v1148 = vstv %s1147
    %v1149 = vmul.f32 %v1148, %v1139
    %v1150 = vmul.f32 %v1148, %v1140
    %v1151 = vadd.f32 %v1117, %v1149
    %v1152 = vadd.f32 %v1118, %v1150
    %s1153 = sld [smem:[#allocation7 + $0x8a]]
    %v1154 = vstv %s1153
    %v1155 = vmul.f32 %v1154, %v1139
    %v1156 = vmul.f32 %v1154, %v1140
    %v1157 = vadd.f32 %v1123, %v1155
    %v1158 = vadd.f32 %v1124, %v1156
    %s1159 = sld [smem:[#allocation7 + $0x8b]]
    %v1160 = vstv %s1159
    %v1161 = vmul.f32 %v1160, %v1139
    %v1162 = vmul.f32 %v1160, %v1140
    %v1163 = vadd.f32 %v1129, %v1161
    %v1164 = vadd.f32 %v1130, %v1162
    %v1165 = vcombine.high %v111, %v111
    %v1167 = vunpack.c.l.s4 1983009808
    %v1168 = vunpack.c.0.s8 %v1167
    %v1169 = vlaneseq
    %v1170 = vshrl.u32 %v1169, 7
    %v1171 = vsub.s32 %v1168, %v1170
    %v1172 = vrot.slane %v1165, %v1171
    %v1173 = vcombine.high %v1172, %v1172
    %1174 = vrot.lane.b32.xlu0 %v1172, 17
    %v1175 = vpop.permute.xlu0 %1174
    %1176 = vrot.lane.b32.xlu0 %v1173, 17
    %v1177 = vpop.permute.xlu0 %1176
    %v1178 = vsel %vm137, %v1175, %v1177
    %v1181 = vsel %vm137, 0.0, %v1175
    %v1182 = vsel %vm144, %v1181, 0.0
    %v1183 = vsel %vm145, %v1178, 0.0
    %s1184 = sld [smem:[#allocation7 + $0xc]]
    %v1185 = vstv %s1184
    %v1186 = vmul.f32 %v1185, %v1182
    %v1187 = vmul.f32 %v1185, %v1183
    %v1188 = vadd.f32 %v1145, %v1186
    %v1189 = vadd.f32 %v1146, %v1187
    %s1190 = sld [smem:[#allocation7 + $0xd]]
    %v1191 = vstv %s1190
    %v1192 = vmul.f32 %v1191, %v1182
    %v1193 = vmul.f32 %v1191, %v1183
    %v1194 = vadd.f32 %v1151, %v1192
    %v1195 = vadd.f32 %v1152, %v1193
    %s1196 = sld [smem:[#allocation7 + $0xe]]
    %v1197 = vstv %s1196
    %v1198 = vmul.f32 %v1197, %v1182
    %v1199 = vmul.f32 %v1197, %v1183
    %v1200 = vadd.f32 %v1157, %v1198
    %v1201 = vadd.f32 %v1158, %v1199
    %s1202 = sld [smem:[#allocation7 + $0xf]]
    %v1203 = vstv %s1202
    %v1204 = vmul.f32 %v1203, %v1182
    %v1205 = vmul.f32 %v1203, %v1183
    %v1206 = vadd.f32 %v1163, %v1204
    %v1207 = vadd.f32 %v1164, %v1205
    %1208 = vrot.lane.b32.xlu0 %v1172, 16
    %v1209 = vpop.permute.xlu0 %1208
    %1210 = vrot.lane.b32.xlu0 %v1173, 16
    %v1211 = vpop.permute.xlu0 %1210
    %v1212 = vsel %vm176, %v1209, %v1211
    %v1215 = vsel %vm176, 0.0, %v1209
    %s1216 = sld [smem:[#allocation7 + $0x1c]]
    %v1217 = vstv %s1216
    %v1218 = vmul.f32 %v1217, %v1215
    %v1219 = vmul.f32 %v1217, %v1212
    %v1220 = vadd.f32 %v1188, %v1218
    %v1221 = vadd.f32 %v1189, %v1219
    %s1222 = sld [smem:[#allocation7 + $0x1d]]
    %v1223 = vstv %s1222
    %v1224 = vmul.f32 %v1223, %v1215
    %v1225 = vmul.f32 %v1223, %v1212
    %v1226 = vadd.f32 %v1194, %v1224
    %v1227 = vadd.f32 %v1195, %v1225
    %s1228 = sld [smem:[#allocation7 + $0x1e]]
    %v1229 = vstv %s1228
    %v1230 = vmul.f32 %v1229, %v1215
    %v1231 = vmul.f32 %v1229, %v1212
    %v1232 = vadd.f32 %v1200, %v1230
    %v1233 = vadd.f32 %v1201, %v1231
    %s1234 = sld [smem:[#allocation7 + $0x1f]]
    %v1235 = vstv %s1234
    %v1236 = vmul.f32 %v1235, %v1215
    %v1237 = vmul.f32 %v1235, %v1212
    %v1238 = vadd.f32 %v1206, %v1236
    %v1239 = vadd.f32 %v1207, %v1237
    %1240 = vrot.lane.b32.xlu0 %v1172, 15
    %v1241 = vpop.permute.xlu0 %1240
    %1242 = vrot.lane.b32.xlu0 %v1173, 15
    %v1243 = vpop.permute.xlu0 %1242
    %v1244 = vsel %vm209, %v1241, %v1243
    %v1247 = vsel %vm209, 0.0, %v1241
    %v1248 = vsel %vm216, %v1247, 0.0
    %v1249 = vsel %vm217, %v1244, 0.0
    %s1250 = sld [smem:[#allocation7 + $0x2c]]
    %v1251 = vstv %s1250
    %v1252 = vmul.f32 %v1251, %v1248
    %v1253 = vmul.f32 %v1251, %v1249
    %v1254 = vadd.f32 %v1220, %v1252
    %v1255 = vadd.f32 %v1221, %v1253
    %s1256 = sld [smem:[#allocation7 + $0x2d]]
    %v1257 = vstv %s1256
    %v1258 = vmul.f32 %v1257, %v1248
    %v1259 = vmul.f32 %v1257, %v1249
    %v1260 = vadd.f32 %v1226, %v1258
    %v1261 = vadd.f32 %v1227, %v1259
    %s1262 = sld [smem:[#allocation7 + $0x2e]]
    %v1263 = vstv %s1262
    %v1264 = vmul.f32 %v1263, %v1248
    %v1265 = vmul.f32 %v1263, %v1249
    %v1266 = vadd.f32 %v1232, %v1264
    %v1267 = vadd.f32 %v1233, %v1265
    %s1268 = sld [smem:[#allocation7 + $0x2f]]
    %v1269 = vstv %s1268
    %v1270 = vmul.f32 %v1269, %v1248
    %v1271 = vmul.f32 %v1269, %v1249
    %v1272 = vadd.f32 %v1238, %v1270
    %v1273 = vadd.f32 %v1239, %v1271
    %1274 = vrot.lane.b32.xlu0 %v1172, 1
    %v1275 = vpop.permute.xlu0 %1274
    %1276 = vrot.lane.b32.xlu0 %v1173, 1
    %v1277 = vpop.permute.xlu0 %1276
    %v1278 = vsel %vm248, %v1275, %v1277
    %v1281 = vsel %vm248, 0.0, %v1275
    %v1282 = vsel %vm144, %v1281, 0.0
    %v1283 = vsel %vm145, %v1278, 0.0
    %s1284 = sld [smem:[#allocation7 + $0x3c]]
    %v1285 = vstv %s1284
    %v1286 = vmul.f32 %v1285, %v1282
    %v1287 = vmul.f32 %v1285, %v1283
    %v1288 = vadd.f32 %v1254, %v1286
    %v1289 = vadd.f32 %v1255, %v1287
    %s1290 = sld [smem:[#allocation7 + $0x3d]]
    %v1291 = vstv %s1290
    %v1292 = vmul.f32 %v1291, %v1282
    %v1293 = vmul.f32 %v1291, %v1283
    %v1294 = vadd.f32 %v1260, %v1292
    %v1295 = vadd.f32 %v1261, %v1293
    %s1296 = sld [smem:[#allocation7 + $0x3e]]
    %v1297 = vstv %s1296
    %v1298 = vmul.f32 %v1297, %v1282
    %v1299 = vmul.f32 %v1297, %v1283
    %v1300 = vadd.f32 %v1266, %v1298
    %v1301 = vadd.f32 %v1267, %v1299
    %s1302 = sld [smem:[#allocation7 + $0x3f]]
    %v1303 = vstv %s1302
    %v1304 = vmul.f32 %v1303, %v1282
    %v1305 = vmul.f32 %v1303, %v1283
    %v1306 = vadd.f32 %v1272, %v1304
    %v1307 = vadd.f32 %v1273, %v1305
    %s1308 = sld [smem:[#allocation7 + $0x4c]]
    %v1309 = vstv %s1308
    %v1310 = vrot.slane %v111, 4
    %v1312 = vmul.f32 %v1309, %v1310
    %v1315 = vunpack.c.l.s4 1983009808
    %v1316 = vunpack.c.0.s8 %v1315
    %v1317 = vlaneseq
    %v1318 = vshrl.u32 %v1317, 7
    %v1319 = vsub.s32 %v1316, %v1318
    %v1320 = vrot.slane %v1312, %v1319
    %v1321 = vcombine.high %v1320, %v1320
    %v1324 = vadd.f32 %v1288, %v1320
    %v1325 = vadd.f32 %v1289, %v1321
    %s1326 = sld [smem:[#allocation7 + $0x4d]]
    %v1327 = vstv %s1326
    %v1328 = vmul.f32 %v1327, %v1310
    %v1331 = vunpack.c.l.s4 1983009808
    %v1332 = vunpack.c.0.s8 %v1331
    %v1333 = vlaneseq
    %v1334 = vshrl.u32 %v1333, 7
    %v1335 = vsub.s32 %v1332, %v1334
    %v1336 = vrot.slane %v1328, %v1335
    %v1337 = vcombine.high %v1336, %v1336
    %v1340 = vadd.f32 %v1294, %v1336
    %v1341 = vadd.f32 %v1295, %v1337
    %s1342 = sld [smem:[#allocation7 + $0x4e]]
    %v1343 = vstv %s1342
    %v1344 = vmul.f32 %v1343, %v1310
    %v1347 = vunpack.c.l.s4 1983009808
    %v1348 = vunpack.c.0.s8 %v1347
    %v1349 = vlaneseq
    %v1350 = vshrl.u32 %v1349, 7
    %v1351 = vsub.s32 %v1348, %v1350
    %v1352 = vrot.slane %v1344, %v1351
    %v1353 = vcombine.high %v1352, %v1352
    %v1356 = vadd.f32 %v1300, %v1352
    %v1357 = vadd.f32 %v1301, %v1353
    %s1358 = sld [smem:[#allocation7 + $0x4f]]
    %v1359 = vstv %s1358
    %v1360 = vmul.f32 %v1359, %v1310
    %v1363 = vunpack.c.l.s4 1983009808
    %v1364 = vunpack.c.0.s8 %v1363
    %v1365 = vlaneseq
    %v1366 = vshrl.u32 %v1365, 7
    %v1367 = vsub.s32 %v1364, %v1366
    %v1368 = vrot.slane %v1360, %v1367
    %v1369 = vcombine.high %v1368, %v1368
    %v1372 = vadd.f32 %v1306, %v1368
    %v1373 = vadd.f32 %v1307, %v1369
    %1374 = vrot.lane.b32.xlu0 %v1172, 127
    %v1375 = vpop.permute.xlu0 %1374
    %1376 = vrot.lane.b32.xlu0 %v1173, 127
    %v1377 = vpop.permute.xlu0 %1376
    %v1378 = vsel %vm347, %v1375, %v1377
    %v1381 = vsel %vm347, %v1377, 0.0
    %v1382 = vsel %vm216, %v1378, 0.0
    %v1383 = vsel %vm217, %v1381, 0.0
    %s1384 = sld [smem:[#allocation7 + $0x5c]]
    %v1385 = vstv %s1384
    %v1386 = vmul.f32 %v1385, %v1382
    %v1387 = vmul.f32 %v1385, %v1383
    %v1388 = vadd.f32 %v1324, %v1386
    %v1389 = vadd.f32 %v1325, %v1387
    %s1390 = sld [smem:[#allocation7 + $0x5d]]
    %v1391 = vstv %s1390
    %v1392 = vmul.f32 %v1391, %v1382
    %v1393 = vmul.f32 %v1391, %v1383
    %v1394 = vadd.f32 %v1340, %v1392
    %v1395 = vadd.f32 %v1341, %v1393
    %s1396 = sld [smem:[#allocation7 + $0x5e]]
    %v1397 = vstv %s1396
    %v1398 = vmul.f32 %v1397, %v1382
    %v1399 = vmul.f32 %v1397, %v1383
    %v1400 = vadd.f32 %v1356, %v1398
    %v1401 = vadd.f32 %v1357, %v1399
    %s1402 = sld [smem:[#allocation7 + $0x5f]]
    %v1403 = vstv %s1402
    %v1404 = vmul.f32 %v1403, %v1382
    %v1405 = vmul.f32 %v1403, %v1383
    %v1406 = vadd.f32 %v1372, %v1404
    %v1407 = vadd.f32 %v1373, %v1405
    %1408 = vrot.lane.b32.xlu0 %v1172, 113
    %v1409 = vpop.permute.xlu0 %1408
    %1410 = vrot.lane.b32.xlu0 %v1173, 113
    %v1411 = vpop.permute.xlu0 %1410
    %v1412 = vsel %vm382, %v1409, %v1411
    %v1415 = vsel %vm382, %v1411, 0.0
    %v1416 = vsel %vm144, %v1412, 0.0
    %v1417 = vsel %vm145, %v1415, 0.0
    %s1418 = sld [smem:[#allocation7 + $0x6c]]
    %v1419 = vstv %s1418
    %v1420 = vmul.f32 %v1419, %v1416
    %v1421 = vmul.f32 %v1419, %v1417
    %v1422 = vadd.f32 %v1388, %v1420
    %v1423 = vadd.f32 %v1389, %v1421
    %s1424 = sld [smem:[#allocation7 + $0x6d]]
    %v1425 = vstv %s1424
    %v1426 = vmul.f32 %v1425, %v1416
    %v1427 = vmul.f32 %v1425, %v1417
    %v1428 = vadd.f32 %v1394, %v1426
    %v1429 = vadd.f32 %v1395, %v1427
    %s1430 = sld [smem:[#allocation7 + $0x6e]]
    %v1431 = vstv %s1430
    %v1432 = vmul.f32 %v1431, %v1416
    %v1433 = vmul.f32 %v1431, %v1417
    %v1434 = vadd.f32 %v1400, %v1432
    %v1435 = vadd.f32 %v1401, %v1433
    %s1436 = sld [smem:[#allocation7 + $0x6f]]
    %v1437 = vstv %s1436
    %v1438 = vmul.f32 %v1437, %v1416
    %v1439 = vmul.f32 %v1437, %v1417
    %v1440 = vadd.f32 %v1406, %v1438
    %v1441 = vadd.f32 %v1407, %v1439
    %1442 = vrot.lane.b32.xlu0 %v1172, 112
    %v1443 = vpop.permute.xlu0 %1442
    %1444 = vrot.lane.b32.xlu0 %v1173, 112
    %v1445 = vpop.permute.xlu0 %1444
    %v1446 = vsel %vm417, %v1443, %v1445
    %v1449 = vsel %vm417, %v1445, 0.0
    %s1450 = sld [smem:[#allocation7 + $0x7c]]
    %v1451 = vstv %s1450
    %v1452 = vmul.f32 %v1451, %v1446
    %v1453 = vmul.f32 %v1451, %v1449
    %v1454 = vadd.f32 %v1422, %v1452
    %v1455 = vadd.f32 %v1423, %v1453
    %s1456 = sld [smem:[#allocation7 + $0x7d]]
    %v1457 = vstv %s1456
    %v1458 = vmul.f32 %v1457, %v1446
    %v1459 = vmul.f32 %v1457, %v1449
    %v1460 = vadd.f32 %v1428, %v1458
    %v1461 = vadd.f32 %v1429, %v1459
    %s1462 = sld [smem:[#allocation7 + $0x7e]]
    %v1463 = vstv %s1462
    %v1464 = vmul.f32 %v1463, %v1446
    %v1465 = vmul.f32 %v1463, %v1449
    %v1466 = vadd.f32 %v1434, %v1464
    %v1467 = vadd.f32 %v1435, %v1465
    %s1468 = sld [smem:[#allocation7 + $0x7f]]
    %v1469 = vstv %s1468
    %v1470 = vmul.f32 %v1469, %v1446
    %v1471 = vmul.f32 %v1469, %v1449
    %v1472 = vadd.f32 %v1440, %v1470
    %v1473 = vadd.f32 %v1441, %v1471
    %1474 = vrot.lane.b32.xlu0 %v1172, 111
    %v1475 = vpop.permute.xlu0 %1474
    %1476 = vrot.lane.b32.xlu0 %v1173, 111
    %v1477 = vpop.permute.xlu0 %1476
    %v1478 = vsel %vm450, %v1475, %v1477
    %v1481 = vsel %vm450, %v1477, 0.0
    %v1482 = vsel %vm216, %v1478, 0.0
    %v1483 = vsel %vm217, %v1481, 0.0
    %s1484 = sld [smem:[#allocation7 + $0x8c]]
    %v1485 = vstv %s1484
    %v1486 = vmul.f32 %v1485, %v1482
    %v1487 = vmul.f32 %v1485, %v1483
    %v1488 = vadd.f32 %v1454, %v1486
    %v1489 = vadd.f32 %v1455, %v1487
    %s1490 = sld [smem:[#allocation7 + $0x8d]]
    %v1491 = vstv %s1490
    %v1492 = vmul.f32 %v1491, %v1482
    %v1493 = vmul.f32 %v1491, %v1483
    %v1494 = vadd.f32 %v1460, %v1492
    %v1495 = vadd.f32 %v1461, %v1493
    %s1496 = sld [smem:[#allocation7 + $0x8e]]
    %v1497 = vstv %s1496
    %v1498 = vmul.f32 %v1497, %v1482
    %v1499 = vmul.f32 %v1497, %v1483
    %v1500 = vadd.f32 %v1466, %v1498
    %v1501 = vadd.f32 %v1467, %v1499
    %s1502 = sld [smem:[#allocation7 + $0x8f]]
    %v1503 = vstv %s1502
    %v1504 = vmul.f32 %v1503, %v1482
    %v1505 = vmul.f32 %v1503, %v1483
    %v1506 = vadd.f32 %v1472, %v1504
    %v1507 = vadd.f32 %v1473, %v1505
    %v1508 = vmax.f32 %v1488, 0.0
    %v1509 = vmax.f32 %v1489, 0.0
    %v1510 = vmax.f32 %v1494, 0.0
    %v1511 = vmax.f32 %v1495, 0.0
    %v1512 = vmax.f32 %v1500, 0.0
    %v1513 = vmax.f32 %v1501, 0.0
    %v1514 = vmax.f32 %v1506, 0.0
    %v1515 = vmax.f32 %v1507, 0.0
    %s1516 = sld [smem:[#allocation11]]
    %v1517 = vstv %s1516
    %v1518 = vadd.f32 %v1517, 0.0
    %s1519 = sld [smem:[#allocation11 + $0x1]]
    %v1520 = vstv %s1519
    %v1521 = vadd.f32 %v1520, 0.0
    %s1522 = sld [smem:[#allocation11 + $0x2]]
    %v1523 = vstv %s1522
    %v1524 = vadd.f32 %v1523, 0.0
    %s1525 = sld [smem:[#allocation11 + $0x3]]
    %v1526 = vstv %s1525
    %v1527 = vadd.f32 %v1526, 0.0
    %1530 = vrot.lane.b32.xlu0 %v1508, 17
    %v1531 = vpop.permute.xlu0 %1530
    %1532 = vrot.lane.b32.xlu0 %v1509, 17
    %v1533 = vpop.permute.xlu0 %1532
    %v1534 = vsel %vm137, %v1531, %v1533
    %v1537 = vsel %vm137, 0.0, %v1531
    %v1538 = vsel %vm144, %v1537, 0.0
    %v1539 = vsel %vm145, %v1534, 0.0
    %s1540 = sld [smem:[#allocation9]]
    %v1541 = vstv %s1540
    %v1542 = vmul.f32 %v1541, %v1538
    %v1543 = vmul.f32 %v1541, %v1539
    %v1544 = vadd.f32 %v1518, %v1542
    %v1545 = vadd.f32 %v1518, %v1543
    %s1546 = sld [smem:[#allocation9 + $0x1]]
    %v1547 = vstv %s1546
    %v1548 = vmul.f32 %v1547, %v1538
    %v1549 = vmul.f32 %v1547, %v1539
    %v1550 = vadd.f32 %v1521, %v1548
    %v1551 = vadd.f32 %v1521, %v1549
    %s1552 = sld [smem:[#allocation9 + $0x2]]
    %v1553 = vstv %s1552
    %v1554 = vmul.f32 %v1553, %v1538
    %v1555 = vmul.f32 %v1553, %v1539
    %v1556 = vadd.f32 %v1524, %v1554
    %v1557 = vadd.f32 %v1524, %v1555
    %s1558 = sld [smem:[#allocation9 + $0x3]]
    %v1559 = vstv %s1558
    %v1560 = vmul.f32 %v1559, %v1538
    %v1561 = vmul.f32 %v1559, %v1539
    %v1562 = vadd.f32 %v1527, %v1560
    %v1563 = vadd.f32 %v1527, %v1561
    %1564 = vrot.lane.b32.xlu0 %v1508, 16
    %v1565 = vpop.permute.xlu0 %1564
    %1566 = vrot.lane.b32.xlu0 %v1509, 16
    %v1567 = vpop.permute.xlu0 %1566
    %v1568 = vsel %vm176, %v1565, %v1567
    %v1571 = vsel %vm176, 0.0, %v1565
    %s1572 = sld [smem:[#allocation9 + $0x10]]
    %v1573 = vstv %s1572
    %v1574 = vmul.f32 %v1573, %v1571
    %v1575 = vmul.f32 %v1573, %v1568
    %v1576 = vadd.f32 %v1544, %v1574
    %v1577 = vadd.f32 %v1545, %v1575
    %s1578 = sld [smem:[#allocation9 + $0x11]]
    %v1579 = vstv %s1578
    %v1580 = vmul.f32 %v1579, %v1571
    %v1581 = vmul.f32 %v1579, %v1568
    %v1582 = vadd.f32 %v1550, %v1580
    %v1583 = vadd.f32 %v1551, %v1581
    %s1584 = sld [smem:[#allocation9 + $0x12]]
    %v1585 = vstv %s1584
    %v1586 = vmul.f32 %v1585, %v1571
    %v1587 = vmul.f32 %v1585, %v1568
    %v1588 = vadd.f32 %v1556, %v1586
    %v1589 = vadd.f32 %v1557, %v1587
    %s1590 = sld [smem:[#allocation9 + $0x13]]
    %v1591 = vstv %s1590
    %v1592 = vmul.f32 %v1591, %v1571
    %v1593 = vmul.f32 %v1591, %v1568
    %v1594 = vadd.f32 %v1562, %v1592
    %v1595 = vadd.f32 %v1563, %v1593
    %1596 = vrot.lane.b32.xlu0 %v1508, 15
    %v1597 = vpop.permute.xlu0 %1596
    %1598 = vrot.lane.b32.xlu0 %v1509, 15
    %v1599 = vpop.permute.xlu0 %1598
    %v1600 = vsel %vm209, %v1597, %v1599
    %v1603 = vsel %vm209, 0.0, %v1597
    %v1604 = vsel %vm216, %v1603, 0.0
    %v1605 = vsel %vm217, %v1600, 0.0
    %s1606 = sld [smem:[#allocation9 + $0x20]]
    %v1607 = vstv %s1606
    %v1608 = vmul.f32 %v1607, %v1604
    %v1609 = vmul.f32 %v1607, %v1605
    %v1610 = vadd.f32 %v1576, %v1608
    %v1611 = vadd.f32 %v1577, %v1609
    %s1612 = sld [smem:[#allocation9 + $0x21]]
    %v1613 = vstv %s1612
    %v1614 = vmul.f32 %v1613, %v1604
    %v1615 = vmul.f32 %v1613, %v1605
    %v1616 = vadd.f32 %v1582, %v1614
    %v1617 = vadd.f32 %v1583, %v1615
    %s1618 = sld [smem:[#allocation9 + $0x22]]
    %v1619 = vstv %s1618
    %v1620 = vmul.f32 %v1619, %v1604
    %v1621 = vmul.f32 %v1619, %v1605
    %v1622 = vadd.f32 %v1588, %v1620
    %v1623 = vadd.f32 %v1589, %v1621
    %s1624 = sld [smem:[#allocation9 + $0x23]]
    %v1625 = vstv %s1624
    %v1626 = vmul.f32 %v1625, %v1604
    %v1627 = vmul.f32 %v1625, %v1605
    %v1628 = vadd.f32 %v1594, %v1626
    %v1629 = vadd.f32 %v1595, %v1627
    %1630 = vrot.lane.b32.xlu0 %v1508, 1
    %v1631 = vpop.permute.xlu0 %1630
    %1632 = vrot.lane.b32.xlu0 %v1509, 1
    %v1633 = vpop.permute.xlu0 %1632
    %v1634 = vsel %vm248, %v1631, %v1633
    %v1637 = vsel %vm248, 0.0, %v1631
    %v1638 = vsel %vm144, %v1637, 0.0
    %v1639 = vsel %vm145, %v1634, 0.0
    %s1640 = sld [smem:[#allocation9 + $0x30]]
    %v1641 = vstv %s1640
    %v1642 = vmul.f32 %v1641, %v1638
    %v1643 = vmul.f32 %v1641, %v1639
    %v1644 = vadd.f32 %v1610, %v1642
    %v1645 = vadd.f32 %v1611, %v1643
    %s1646 = sld [smem:[#allocation9 + $0x31]]
    %v1647 = vstv %s1646
    %v1648 = vmul.f32 %v1647, %v1638
    %v1649 = vmul.f32 %v1647, %v1639
    %v1650 = vadd.f32 %v1616, %v1648
    %v1651 = vadd.f32 %v1617, %v1649
    %s1652 = sld [smem:[#allocation9 + $0x32]]
    %v1653 = vstv %s1652
    %v1654 = vmul.f32 %v1653, %v1638
    %v1655 = vmul.f32 %v1653, %v1639
    %v1656 = vadd.f32 %v1622, %v1654
    %v1657 = vadd.f32 %v1623, %v1655
    %s1658 = sld [smem:[#allocation9 + $0x33]]
    %v1659 = vstv %s1658
    %v1660 = vmul.f32 %v1659, %v1638
    %v1661 = vmul.f32 %v1659, %v1639
    %v1662 = vadd.f32 %v1628, %v1660
    %v1663 = vadd.f32 %v1629, %v1661
    %s1664 = sld [smem:[#allocation9 + $0x40]]
    %v1665 = vstv %s1664
    %v1666 = vmul.f32 %v1665, %v1508
    %v1667 = vmul.f32 %v1665, %v1509
    %v1668 = vadd.f32 %v1644, %v1666
    %v1669 = vadd.f32 %v1645, %v1667
    %s1670 = sld [smem:[#allocation9 + $0x41]]
    %v1671 = vstv %s1670
    %v1672 = vmul.f32 %v1671, %v1508
    %v1673 = vmul.f32 %v1671, %v1509
    %v1674 = vadd.f32 %v1650, %v1672
    %v1675 = vadd.f32 %v1651, %v1673
    %s1676 = sld [smem:[#allocation9 + $0x42]]
    %v1677 = vstv %s1676
    %v1678 = vmul.f32 %v1677, %v1508
    %v1679 = vmul.f32 %v1677, %v1509
    %v1680 = vadd.f32 %v1656, %v1678
    %v1681 = vadd.f32 %v1657, %v1679
    %s1682 = sld [smem:[#allocation9 + $0x43]]
    %v1683 = vstv %s1682
    %v1684 = vmul.f32 %v1683, %v1508
    %v1685 = vmul.f32 %v1683, %v1509
    %v1686 = vadd.f32 %v1662, %v1684
    %v1687 = vadd.f32 %v1663, %v1685
    %1688 = vrot.lane.b32.xlu0 %v1508, 127
    %v1689 = vpop.permute.xlu0 %1688
    %1690 = vrot.lane.b32.xlu0 %v1509, 127
    %v1691 = vpop.permute.xlu0 %1690
    %v1692 = vsel %vm347, %v1689, %v1691
    %v1695 = vsel %vm347, %v1691, 0.0
    %v1696 = vsel %vm216, %v1692, 0.0
    %v1697 = vsel %vm217, %v1695, 0.0
    %s1698 = sld [smem:[#allocation9 + $0x50]]
    %v1699 = vstv %s1698
    %v1700 = vmul.f32 %v1699, %v1696
    %v1701 = vmul.f32 %v1699, %v1697
    %v1702 = vadd.f32 %v1668, %v1700
    %v1703 = vadd.f32 %v1669, %v1701
    %s1704 = sld [smem:[#allocation9 + $0x51]]
    %v1705 = vstv %s1704
    %v1706 = vmul.f32 %v1705, %v1696
    %v1707 = vmul.f32 %v1705, %v1697
    %v1708 = vadd.f32 %v1674, %v1706
    %v1709 = vadd.f32 %v1675, %v1707
    %s1710 = sld [smem:[#allocation9 + $0x52]]
    %v1711 = vstv %s1710
    %v1712 = vmul.f32 %v1711, %v1696
    %v1713 = vmul.f32 %v1711, %v1697
    %v1714 = vadd.f32 %v1680, %v1712
    %v1715 = vadd.f32 %v1681, %v1713
    %s1716 = sld [smem:[#allocation9 + $0x53]]
    %v1717 = vstv %s1716
    %v1718 = vmul.f32 %v1717, %v1696
    %v1719 = vmul.f32 %v1717, %v1697
    %v1720 = vadd.f32 %v1686, %v1718
    %v1721 = vadd.f32 %v1687, %v1719
    %1722 = vrot.lane.b32.xlu0 %v1508, 113
    %v1723 = vpop.permute.xlu0 %1722
    %1724 = vrot.lane.b32.xlu0 %v1509, 113
    %v1725 = vpop.permute.xlu0 %1724
    %v1726 = vsel %vm382, %v1723, %v1725
    %v1729 = vsel %vm382, %v1725, 0.0
    %v1730 = vsel %vm144, %v1726, 0.0
    %v1731 = vsel %vm145, %v1729, 0.0
    %s1732 = sld [smem:[#allocation9 + $0x60]]
    %v1733 = vstv %s1732
    %v1734 = vmul.f32 %v1733, %v1730
    %v1735 = vmul.f32 %v1733, %v1731
    %v1736 = vadd.f32 %v1702, %v1734
    %v1737 = vadd.f32 %v1703, %v1735
    %s1738 = sld [smem:[#allocation9 + $0x61]]
    %v1739 = vstv %s1738
    %v1740 = vmul.f32 %v1739, %v1730
    %v1741 = vmul.f32 %v1739, %v1731
    %v1742 = vadd.f32 %v1708, %v1740
    %v1743 = vadd.f32 %v1709, %v1741
    %s1744 = sld [smem:[#allocation9 + $0x62]]
    %v1745 = vstv %s1744
    %v1746 = vmul.f32 %v1745, %v1730
    %v1747 = vmul.f32 %v1745, %v1731
    %v1748 = vadd.f32 %v1714, %v1746
    %v1749 = vadd.f32 %v1715, %v1747
    %s1750 = sld [smem:[#allocation9 + $0x63]]
    %v1751 = vstv %s1750
    %v1752 = vmul.f32 %v1751, %v1730
    %v1753 = vmul.f32 %v1751, %v1731
    %v1754 = vadd.f32 %v1720, %v1752
    %v1755 = vadd.f32 %v1721, %v1753
    %1756 = vrot.lane.b32.xlu0 %v1508, 112
    %v1757 = vpop.permute.xlu0 %1756
    %1758 = vrot.lane.b32.xlu0 %v1509, 112
    %v1759 = vpop.permute.xlu0 %1758
    %v1760 = vsel %vm417, %v1757, %v1759
    %v1763 = vsel %vm417, %v1759, 0.0
    %s1764 = sld [smem:[#allocation9 + $0x70]]
    %v1765 = vstv %s1764
    %v1766 = vmul.f32 %v1765, %v1760
    %v1767 = vmul.f32 %v1765, %v1763
    %v1768 = vadd.f32 %v1736, %v1766
    %v1769 = vadd.f32 %v1737, %v1767
    %s1770 = sld [smem:[#allocation9 + $0x71]]
    %v1771 = vstv %s1770
    %v1772 = vmul.f32 %v1771, %v1760
    %v1773 = vmul.f32 %v1771, %v1763
    %v1774 = vadd.f32 %v1742, %v1772
    %v1775 = vadd.f32 %v1743, %v1773
    %s1776 = sld [smem:[#allocation9 + $0x72]]
    %v1777 = vstv %s1776
    %v1778 = vmul.f32 %v1777, %v1760
    %v1779 = vmul.f32 %v1777, %v1763
    %v1780 = vadd.f32 %v1748, %v1778
    %v1781 = vadd.f32 %v1749, %v1779
    %s1782 = sld [smem:[#allocation9 + $0x73]]
    %v1783 = vstv %s1782
    %v1784 = vmul.f32 %v1783, %v1760
    %v1785 = vmul.f32 %v1783, %v1763
    %v1786 = vadd.f32 %v1754, %v1784
    %v1787 = vadd.f32 %v1755, %v1785
    %1788 = vrot.lane.b32.xlu0 %v1508, 111
    %v1789 = vpop.permute.xlu0 %1788
    %1790 = vrot.lane.b32.xlu0 %v1509, 111
    %v1791 = vpop.permute.xlu0 %1790
    %v1792 = vsel %vm450, %v1789, %v1791
    %v1795 = vsel %vm450, %v1791, 0.0
    %v1796 = vsel %vm216, %v1792, 0.0
    %v1797 = vsel %vm217, %v1795, 0.0
    %s1798 = sld [smem:[#allocation9 + $0x80]]
    %v1799 = vstv %s1798
    %v1800 = vmul.f32 %v1799, %v1796
    %v1801 = vmul.f32 %v1799, %v1797
    %v1802 = vadd.f32 %v1768, %v1800
    %v1803 = vadd.f32 %v1769, %v1801
    %s1804 = sld [smem:[#allocation9 + $0x81]]
    %v1805 = vstv %s1804
    %v1806 = vmul.f32 %v1805, %v1796
    %v1807 = vmul.f32 %v1805, %v1797
    %v1808 = vadd.f32 %v1774, %v1806
    %v1809 = vadd.f32 %v1775, %v1807
    %s1810 = sld [smem:[#allocation9 + $0x82]]
    %v1811 = vstv %s1810
    %v1812 = vmul.f32 %v1811, %v1796
    %v1813 = vmul.f32 %v1811, %v1797
    %v1814 = vadd.f32 %v1780, %v1812
    %v1815 = vadd.f32 %v1781, %v1813
    %s1816 = sld [smem:[#allocation9 + $0x83]]
    %v1817 = vstv %s1816
    %v1818 = vmul.f32 %v1817, %v1796
    %v1819 = vmul.f32 %v1817, %v1797
    %v1820 = vadd.f32 %v1786, %v1818
    %v1821 = vadd.f32 %v1787, %v1819
    %1824 = vrot.lane.b32.xlu0 %v1510, 17
    %v1825 = vpop.permute.xlu0 %1824
    %1826 = vrot.lane.b32.xlu0 %v1511, 17
    %v1827 = vpop.permute.xlu0 %1826
    %v1828 = vsel %vm137, %v1825, %v1827
    %v1831 = vsel %vm137, 0.0, %v1825
    %v1832 = vsel %vm144, %v1831, 0.0
    %v1833 = vsel %vm145, %v1828, 0.0
    %s1834 = sld [smem:[#allocation9 + $0x4]]
    %v1835 = vstv %s1834
    %v1836 = vmul.f32 %v1835, %v1832
    %v1837 = vmul.f32 %v1835, %v1833
    %v1838 = vadd.f32 %v1802, %v1836
    %v1839 = vadd.f32 %v1803, %v1837
    %s1840 = sld [smem:[#allocation9 + $0x5]]
    %v1841 = vstv %s1840
    %v1842 = vmul.f32 %v1841, %v1832
    %v1843 = vmul.f32 %v1841, %v1833
    %v1844 = vadd.f32 %v1808, %v1842
    %v1845 = vadd.f32 %v1809, %v1843
    %s1846 = sld [smem:[#allocation9 + $0x6]]
    %v1847 = vstv %s1846
    %v1848 = vmul.f32 %v1847, %v1832
    %v1849 = vmul.f32 %v1847, %v1833
    %v1850 = vadd.f32 %v1814, %v1848
    %v1851 = vadd.f32 %v1815, %v1849
    %s1852 = sld [smem:[#allocation9 + $0x7]]
    %v1853 = vstv %s1852
    %v1854 = vmul.f32 %v1853, %v1832
    %v1855 = vmul.f32 %v1853, %v1833
    %v1856 = vadd.f32 %v1820, %v1854
    %v1857 = vadd.f32 %v1821, %v1855
    %1858 = vrot.lane.b32.xlu0 %v1510, 16
    %v1859 = vpop.permute.xlu0 %1858
    %1860 = vrot.lane.b32.xlu0 %v1511, 16
    %v1861 = vpop.permute.xlu0 %1860
    %v1862 = vsel %vm176, %v1859, %v1861
    %v1865 = vsel %vm176, 0.0, %v1859
    %s1866 = sld [smem:[#allocation9 + $0x14]]
    %v1867 = vstv %s1866
    %v1868 = vmul.f32 %v1867, %v1865
    %v1869 = vmul.f32 %v1867, %v1862
    %v1870 = vadd.f32 %v1838, %v1868
    %v1871 = vadd.f32 %v1839, %v1869
    %s1872 = sld [smem:[#allocation9 + $0x15]]
    %v1873 = vstv %s1872
    %v1874 = vmul.f32 %v1873, %v1865
    %v1875 = vmul.f32 %v1873, %v1862
    %v1876 = vadd.f32 %v1844, %v1874
    %v1877 = vadd.f32 %v1845, %v1875
    %s1878 = sld [smem:[#allocation9 + $0x16]]
    %v1879 = vstv %s1878
    %v1880 = vmul.f32 %v1879, %v1865
    %v1881 = vmul.f32 %v1879, %v1862
    %v1882 = vadd.f32 %v1850, %v1880
    %v1883 = vadd.f32 %v1851, %v1881
    %s1884 = sld [smem:[#allocation9 + $0x17]]
    %v1885 = vstv %s1884
    %v1886 = vmul.f32 %v1885, %v1865
    %v1887 = vmul.f32 %v1885, %v1862
    %v1888 = vadd.f32 %v1856, %v1886
    %v1889 = vadd.f32 %v1857, %v1887
    %1890 = vrot.lane.b32.xlu0 %v1510, 15
    %v1891 = vpop.permute.xlu0 %1890
    %1892 = vrot.lane.b32.xlu0 %v1511, 15
    %v1893 = vpop.permute.xlu0 %1892
    %v1894 = vsel %vm209, %v1891, %v1893
    %v1897 = vsel %vm209, 0.0, %v1891
    %v1898 = vsel %vm216, %v1897, 0.0
    %v1899 = vsel %vm217, %v1894, 0.0
    %s1900 = sld [smem:[#allocation9 + $0x24]]
    %v1901 = vstv %s1900
    %v1902 = vmul.f32 %v1901, %v1898
    %v1903 = vmul.f32 %v1901, %v1899
    %v1904 = vadd.f32 %v1870, %v1902
    %v1905 = vadd.f32 %v1871, %v1903
    %s1906 = sld [smem:[#allocation9 + $0x25]]
    %v1907 = vstv %s1906
    %v1908 = vmul.f32 %v1907, %v1898
    %v1909 = vmul.f32 %v1907, %v1899
    %v1910 = vadd.f32 %v1876, %v1908
    %v1911 = vadd.f32 %v1877, %v1909
    %s1912 = sld [smem:[#allocation9 + $0x26]]
    %v1913 = vstv %s1912
    %v1914 = vmul.f32 %v1913, %v1898
    %v1915 = vmul.f32 %v1913, %v1899
    %v1916 = vadd.f32 %v1882, %v1914
    %v1917 = vadd.f32 %v1883, %v1915
    %s1918 = sld [smem:[#allocation9 + $0x27]]
    %v1919 = vstv %s1918
    %v1920 = vmul.f32 %v1919, %v1898
    %v1921 = vmul.f32 %v1919, %v1899
    %v1922 = vadd.f32 %v1888, %v1920
    %v1923 = vadd.f32 %v1889, %v1921
    %1924 = vrot.lane.b32.xlu0 %v1510, 1
    %v1925 = vpop.permute.xlu0 %1924
    %1926 = vrot.lane.b32.xlu0 %v1511, 1
    %v1927 = vpop.permute.xlu0 %1926
    %v1928 = vsel %vm248, %v1925, %v1927
    %v1931 = vsel %vm248, 0.0, %v1925
    %v1932 = vsel %vm144, %v1931, 0.0
    %v1933 = vsel %vm145, %v1928, 0.0
    %s1934 = sld [smem:[#allocation9 + $0x34]]
    %v1935 = vstv %s1934
    %v1936 = vmul.f32 %v1935, %v1932
    %v1937 = vmul.f32 %v1935, %v1933
    %v1938 = vadd.f32 %v1904, %v1936
    %v1939 = vadd.f32 %v1905, %v1937
    %s1940 = sld [smem:[#allocation9 + $0x35]]
    %v1941 = vstv %s1940
    %v1942 = vmul.f32 %v1941, %v1932
    %v1943 = vmul.f32 %v1941, %v1933
    %v1944 = vadd.f32 %v1910, %v1942
    %v1945 = vadd.f32 %v1911, %v1943
    %s1946 = sld [smem:[#allocation9 + $0x36]]
    %v1947 = vstv %s1946
    %v1948 = vmul.f32 %v1947, %v1932
    %v1949 = vmul.f32 %v1947, %v1933
    %v1950 = vadd.f32 %v1916, %v1948
    %v1951 = vadd.f32 %v1917, %v1949
    %s1952 = sld [smem:[#allocation9 + $0x37]]
    %v1953 = vstv %s1952
    %v1954 = vmul.f32 %v1953, %v1932
    %v1955 = vmul.f32 %v1953, %v1933
    %v1956 = vadd.f32 %v1922, %v1954
    %v1957 = vadd.f32 %v1923, %v1955
    %s1958 = sld [smem:[#allocation9 + $0x44]]
    %v1959 = vstv %s1958
    %v1960 = vmul.f32 %v1959, %v1510
    %v1961 = vmul.f32 %v1959, %v1511
    %v1962 = vadd.f32 %v1938, %v1960
    %v1963 = vadd.f32 %v1939, %v1961
    %s1964 = sld [smem:[#allocation9 + $0x45]]
    %v1965 = vstv %s1964
    %v1966 = vmul.f32 %v1965, %v1510
    %v1967 = vmul.f32 %v1965, %v1511
    %v1968 = vadd.f32 %v1944, %v1966
    %v1969 = vadd.f32 %v1945, %v1967
    %s1970 = sld [smem:[#allocation9 + $0x46]]
    %v1971 = vstv %s1970
    %v1972 = vmul.f32 %v1971, %v1510
    %v1973 = vmul.f32 %v1971, %v1511
    %v1974 = vadd.f32 %v1950, %v1972
    %v1975 = vadd.f32 %v1951, %v1973
    %s1976 = sld [smem:[#allocation9 + $0x47]]
    %v1977 = vstv %s1976
    %v1978 = vmul.f32 %v1977, %v1510
    %v1979 = vmul.f32 %v1977, %v1511
    %v1980 = vadd.f32 %v1956, %v1978
    %v1981 = vadd.f32 %v1957, %v1979
    %1982 = vrot.lane.b32.xlu0 %v1510, 127
    %v1983 = vpop.permute.xlu0 %1982
    %1984 = vrot.lane.b32.xlu0 %v1511, 127
    %v1985 = vpop.permute.xlu0 %1984
    %v1986 = vsel %vm347, %v1983, %v1985
    %v1989 = vsel %vm347, %v1985, 0.0
    %v1990 = vsel %vm216, %v1986, 0.0
    %v1991 = vsel %vm217, %v1989, 0.0
    %s1992 = sld [smem:[#allocation9 + $0x54]]
    %v1993 = vstv %s1992
    %v1994 = vmul.f32 %v1993, %v1990
    %v1995 = vmul.f32 %v1993, %v1991
    %v1996 = vadd.f32 %v1962, %v1994
    %v1997 = vadd.f32 %v1963, %v1995
    %s1998 = sld [smem:[#allocation9 + $0x55]]
    %v1999 = vstv %s1998
    %v2000 = vmul.f32 %v1999, %v1990
    %v2001 = vmul.f32 %v1999, %v1991
    %v2002 = vadd.f32 %v1968, %v2000
    %v2003 = vadd.f32 %v1969, %v2001
    %s2004 = sld [smem:[#allocation9 + $0x56]]
    %v2005 = vstv %s2004
    %v2006 = vmul.f32 %v2005, %v1990
    %v2007 = vmul.f32 %v2005, %v1991
    %v2008 = vadd.f32 %v1974, %v2006
    %v2009 = vadd.f32 %v1975, %v2007
    %s2010 = sld [smem:[#allocation9 + $0x57]]
    %v2011 = vstv %s2010
    %v2012 = vmul.f32 %v2011, %v1990
    %v2013 = vmul.f32 %v2011, %v1991
    %v2014 = vadd.f32 %v1980, %v2012
    %v2015 = vadd.f32 %v1981, %v2013
    %2016 = vrot.lane.b32.xlu0 %v1510, 113
    %v2017 = vpop.permute.xlu0 %2016
    %2018 = vrot.lane.b32.xlu0 %v1511, 113
    %v2019 = vpop.permute.xlu0 %2018
    %v2020 = vsel %vm382, %v2017, %v2019
    %v2023 = vsel %vm382, %v2019, 0.0
    %v2024 = vsel %vm144, %v2020, 0.0
    %v2025 = vsel %vm145, %v2023, 0.0
    %s2026 = sld [smem:[#allocation9 + $0x64]]
    %v2027 = vstv %s2026
    %v2028 = vmul.f32 %v2027, %v2024
    %v2029 = vmul.f32 %v2027, %v2025
    %v2030 = vadd.f32 %v1996, %v2028
    %v2031 = vadd.f32 %v1997, %v2029
    %s2032 = sld [smem:[#allocation9 + $0x65]]
    %v2033 = vstv %s2032
    %v2034 = vmul.f32 %v2033, %v2024
    %v2035 = vmul.f32 %v2033, %v2025
    %v2036 = vadd.f32 %v2002, %v2034
    %v2037 = vadd.f32 %v2003, %v2035
    %s2038 = sld [smem:[#allocation9 + $0x66]]
    %v2039 = vstv %s2038
    %v2040 = vmul.f32 %v2039, %v2024
    %v2041 = vmul.f32 %v2039, %v2025
    %v2042 = vadd.f32 %v2008, %v2040
    %v2043 = vadd.f32 %v2009, %v2041
    %s2044 = sld [smem:[#allocation9 + $0x67]]
    %v2045 = vstv %s2044
    %v2046 = vmul.f32 %v2045, %v2024
    %v2047 = vmul.f32 %v2045, %v2025
    %v2048 = vadd.f32 %v2014, %v2046
    %v2049 = vadd.f32 %v2015, %v2047
    %2050 = vrot.lane.b32.xlu0 %v1510, 112
    %v2051 = vpop.permute.xlu0 %2050
    %2052 = vrot.lane.b32.xlu0 %v1511, 112
    %v2053 = vpop.permute.xlu0 %2052
    %v2054 = vsel %vm417, %v2051, %v2053
    %v2057 = vsel %vm417, %v2053, 0.0
    %s2058 = sld [smem:[#allocation9 + $0x74]]
    %v2059 = vstv %s2058
    %v2060 = vmul.f32 %v2059, %v2054
    %v2061 = vmul.f32 %v2059, %v2057
    %v2062 = vadd.f32 %v2030, %v2060
    %v2063 = vadd.f32 %v2031, %v2061
    %s2064 = sld [smem:[#allocation9 + $0x75]]
    %v2065 = vstv %s2064
    %v2066 = vmul.f32 %v2065, %v2054
    %v2067 = vmul.f32 %v2065, %v2057
    %v2068 = vadd.f32 %v2036, %v2066
    %v2069 = vadd.f32 %v2037, %v2067
    %s2070 = sld [smem:[#allocation9 + $0x76]]
    %v2071 = vstv %s2070
    %v2072 = vmul.f32 %v2071, %v2054
    %v2073 = vmul.f32 %v2071, %v2057
    %v2074 = vadd.f32 %v2042, %v2072
    %v2075 = vadd.f32 %v2043, %v2073
    %s2076 = sld [smem:[#allocation9 + $0x77]]
    %v2077 = vstv %s2076
    %v2078 = vmul.f32 %v2077, %v2054
    %v2079 = vmul.f32 %v2077, %v2057
    %v2080 = vadd.f32 %v2048, %v2078
    %v2081 = vadd.f32 %v2049, %v2079
    %2082 = vrot.lane.b32.xlu0 %v1510, 111
    %v2083 = vpop.permute.xlu0 %2082
    %2084 = vrot.lane.b32.xlu0 %v1511, 111
    %v2085 = vpop.permute.xlu0 %2084
    %v2086 = vsel %vm450, %v2083, %v2085
    %v2089 = vsel %vm450, %v2085, 0.0
    %v2090 = vsel %vm216, %v2086, 0.0
    %v2091 = vsel %vm217, %v2089, 0.0
    %s2092 = sld [smem:[#allocation9 + $0x84]]
    %v2093 = vstv %s2092
    %v2094 = vmul.f32 %v2093, %v2090
    %v2095 = vmul.f32 %v2093, %v2091
    %v2096 = vadd.f32 %v2062, %v2094
    %v2097 = vadd.f32 %v2063, %v2095
    %s2098 = sld [smem:[#allocation9 + $0x85]]
    %v2099 = vstv %s2098
    %v2100 = vmul.f32 %v2099, %v2090
    %v2101 = vmul.f32 %v2099, %v2091
    %v2102 = vadd.f32 %v2068, %v2100
    %v2103 = vadd.f32 %v2069, %v2101
    %s2104 = sld [smem:[#allocation9 + $0x86]]
    %v2105 = vstv %s2104
    %v2106 = vmul.f32 %v2105, %v2090
    %v2107 = vmul.f32 %v2105, %v2091
    %v2108 = vadd.f32 %v2074, %v2106
    %v2109 = vadd.f32 %v2075, %v2107
    %s2110 = sld [smem:[#allocation9 + $0x87]]
    %v2111 = vstv %s2110
    %v2112 = vmul.f32 %v2111, %v2090
    %v2113 = vmul.f32 %v2111, %v2091
    %v2114 = vadd.f32 %v2080, %v2112
    %v2115 = vadd.f32 %v2081, %v2113
    %2118 = vrot.lane.b32.xlu0 %v1512, 17
    %v2119 = vpop.permute.xlu0 %2118
    %2120 = vrot.lane.b32.xlu0 %v1513, 17
    %v2121 = vpop.permute.xlu0 %2120
    %v2122 = vsel %vm137, %v2119, %v2121
    %v2125 = vsel %vm137, 0.0, %v2119
    %v2126 = vsel %vm144, %v2125, 0.0
    %v2127 = vsel %vm145, %v2122, 0.0
    %s2128 = sld [smem:[#allocation9 + $0x8]]
    %v2129 = vstv %s2128
    %v2130 = vmul.f32 %v2129, %v2126
    %v2131 = vmul.f32 %v2129, %v2127
    %v2132 = vadd.f32 %v2096, %v2130
    %v2133 = vadd.f32 %v2097, %v2131
    %s2134 = sld [smem:[#allocation9 + $0x9]]
    %v2135 = vstv %s2134
    %v2136 = vmul.f32 %v2135, %v2126
    %v2137 = vmul.f32 %v2135, %v2127
    %v2138 = vadd.f32 %v2102, %v2136
    %v2139 = vadd.f32 %v2103, %v2137
    %s2140 = sld [smem:[#allocation9 + $0xa]]
    %v2141 = vstv %s2140
    %v2142 = vmul.f32 %v2141, %v2126
    %v2143 = vmul.f32 %v2141, %v2127
    %v2144 = vadd.f32 %v2108, %v2142
    %v2145 = vadd.f32 %v2109, %v2143
    %s2146 = sld [smem:[#allocation9 + $0xb]]
    %v2147 = vstv %s2146
    %v2148 = vmul.f32 %v2147, %v2126
    %v2149 = vmul.f32 %v2147, %v2127
    %v2150 = vadd.f32 %v2114, %v2148
    %v2151 = vadd.f32 %v2115, %v2149
    %2152 = vrot.lane.b32.xlu0 %v1512, 16
    %v2153 = vpop.permute.xlu0 %2152
    %2154 = vrot.lane.b32.xlu0 %v1513, 16
    %v2155 = vpop.permute.xlu0 %2154
    %v2156 = vsel %vm176, %v2153, %v2155
    %v2159 = vsel %vm176, 0.0, %v2153
    %s2160 = sld [smem:[#allocation9 + $0x18]]
    %v2161 = vstv %s2160
    %v2162 = vmul.f32 %v2161, %v2159
    %v2163 = vmul.f32 %v2161, %v2156
    %v2164 = vadd.f32 %v2132, %v2162
    %v2165 = vadd.f32 %v2133, %v2163
    %s2166 = sld [smem:[#allocation9 + $0x19]]
    %v2167 = vstv %s2166
    %v2168 = vmul.f32 %v2167, %v2159
    %v2169 = vmul.f32 %v2167, %v2156
    %v2170 = vadd.f32 %v2138, %v2168
    %v2171 = vadd.f32 %v2139, %v2169
    %s2172 = sld [smem:[#allocation9 + $0x1a]]
    %v2173 = vstv %s2172
    %v2174 = vmul.f32 %v2173, %v2159
    %v2175 = vmul.f32 %v2173, %v2156
    %v2176 = vadd.f32 %v2144, %v2174
    %v2177 = vadd.f32 %v2145, %v2175
    %s2178 = sld [smem:[#allocation9 + $0x1b]]
    %v2179 = vstv %s2178
    %v2180 = vmul.f32 %v2179, %v2159
    %v2181 = vmul.f32 %v2179, %v2156
    %v2182 = vadd.f32 %v2150, %v2180
    %v2183 = vadd.f32 %v2151, %v2181
    %2184 = vrot.lane.b32.xlu0 %v1512, 15
    %v2185 = vpop.permute.xlu0 %2184
    %2186 = vrot.lane.b32.xlu0 %v1513, 15
    %v2187 = vpop.permute.xlu0 %2186
    %v2188 = vsel %vm209, %v2185, %v2187
    %v2191 = vsel %vm209, 0.0, %v2185
    %v2192 = vsel %vm216, %v2191, 0.0
    %v2193 = vsel %vm217, %v2188, 0.0
    %s2194 = sld [smem:[#allocation9 + $0x28]]
    %v2195 = vstv %s2194
    %v2196 = vmul.f32 %v2195, %v2192
    %v2197 = vmul.f32 %v2195, %v2193
    %v2198 = vadd.f32 %v2164, %v2196
    %v2199 = vadd.f32 %v2165, %v2197
    %s2200 = sld [smem:[#allocation9 + $0x29]]
    %v2201 = vstv %s2200
    %v2202 = vmul.f32 %v2201, %v2192
    %v2203 = vmul.f32 %v2201, %v2193
    %v2204 = vadd.f32 %v2170, %v2202
    %v2205 = vadd.f32 %v2171, %v2203
    %s2206 = sld [smem:[#allocation9 + $0x2a]]
    %v2207 = vstv %s2206
    %v2208 = vmul.f32 %v2207, %v2192
    %v2209 = vmul.f32 %v2207, %v2193
    %v2210 = vadd.f32 %v2176, %v2208
    %v2211 = vadd.f32 %v2177, %v2209
    %s2212 = sld [smem:[#allocation9 + $0x2b]]
    %v2213 = vstv %s2212
    %v2214 = vmul.f32 %v2213, %v2192
    %v2215 = vmul.f32 %v2213, %v2193
    %v2216 = vadd.f32 %v2182, %v2214
    %v2217 = vadd.f32 %v2183, %v2215
    %2218 = vrot.lane.b32.xlu0 %v1512, 1
    %v2219 = vpop.permute.xlu0 %2218
    %2220 = vrot.lane.b32.xlu0 %v1513, 1
    %v2221 = vpop.permute.xlu0 %2220
    %v2222 = vsel %vm248, %v2219, %v2221
    %v2225 = vsel %vm248, 0.0, %v2219
    %v2226 = vsel %vm144, %v2225, 0.0
    %v2227 = vsel %vm145, %v2222, 0.0
    %s2228 = sld [smem:[#allocation9 + $0x38]]
    %v2229 = vstv %s2228
    %v2230 = vmul.f32 %v2229, %v2226
    %v2231 = vmul.f32 %v2229, %v2227
    %v2232 = vadd.f32 %v2198, %v2230
    %v2233 = vadd.f32 %v2199, %v2231
    %s2234 = sld [smem:[#allocation9 + $0x39]]
    %v2235 = vstv %s2234
    %v2236 = vmul.f32 %v2235, %v2226
    %v2237 = vmul.f32 %v2235, %v2227
    %v2238 = vadd.f32 %v2204, %v2236
    %v2239 = vadd.f32 %v2205, %v2237
    %s2240 = sld [smem:[#allocation9 + $0x3a]]
    %v2241 = vstv %s2240
    %v2242 = vmul.f32 %v2241, %v2226
    %v2243 = vmul.f32 %v2241, %v2227
    %v2244 = vadd.f32 %v2210, %v2242
    %v2245 = vadd.f32 %v2211, %v2243
    %s2246 = sld [smem:[#allocation9 + $0x3b]]
    %v2247 = vstv %s2246
    %v2248 = vmul.f32 %v2247, %v2226
    %v2249 = vmul.f32 %v2247, %v2227
    %v2250 = vadd.f32 %v2216, %v2248
    %v2251 = vadd.f32 %v2217, %v2249
    %s2252 = sld [smem:[#allocation9 + $0x48]]
    %v2253 = vstv %s2252
    %v2254 = vmul.f32 %v2253, %v1512
    %v2255 = vmul.f32 %v2253, %v1513
    %v2256 = vadd.f32 %v2232, %v2254
    %v2257 = vadd.f32 %v2233, %v2255
    %s2258 = sld [smem:[#allocation9 + $0x49]]
    %v2259 = vstv %s2258
    %v2260 = vmul.f32 %v2259, %v1512
    %v2261 = vmul.f32 %v2259, %v1513
    %v2262 = vadd.f32 %v2238, %v2260
    %v2263 = vadd.f32 %v2239, %v2261
    %s2264 = sld [smem:[#allocation9 + $0x4a]]
    %v2265 = vstv %s2264
    %v2266 = vmul.f32 %v2265, %v1512
    %v2267 = vmul.f32 %v2265, %v1513
    %v2268 = vadd.f32 %v2244, %v2266
    %v2269 = vadd.f32 %v2245, %v2267
    %s2270 = sld [smem:[#allocation9 + $0x4b]]
    %v2271 = vstv %s2270
    %v2272 = vmul.f32 %v2271, %v1512
    %v2273 = vmul.f32 %v2271, %v1513
    %v2274 = vadd.f32 %v2250, %v2272
    %v2275 = vadd.f32 %v2251, %v2273
    %2276 = vrot.lane.b32.xlu0 %v1512, 127
    %v2277 = vpop.permute.xlu0 %2276
    %2278 = vrot.lane.b32.xlu0 %v1513, 127
    %v2279 = vpop.permute.xlu0 %2278
    %v2280 = vsel %vm347, %v2277, %v2279
    %v2283 = vsel %vm347, %v2279, 0.0
    %v2284 = vsel %vm216, %v2280, 0.0
    %v2285 = vsel %vm217, %v2283, 0.0
    %s2286 = sld [smem:[#allocation9 + $0x58]]
    %v2287 = vstv %s2286
    %v2288 = vmul.f32 %v2287, %v2284
    %v2289 = vmul.f32 %v2287, %v2285
    %v2290 = vadd.f32 %v2256, %v2288
    %v2291 = vadd.f32 %v2257, %v2289
    %s2292 = sld [smem:[#allocation9 + $0x59]]
    %v2293 = vstv %s2292
    %v2294 = vmul.f32 %v2293, %v2284
    %v2295 = vmul.f32 %v2293, %v2285
    %v2296 = vadd.f32 %v2262, %v2294
    %v2297 = vadd.f32 %v2263, %v2295
    %s2298 = sld [smem:[#allocation9 + $0x5a]]
    %v2299 = vstv %s2298
    %v2300 = vmul.f32 %v2299, %v2284
    %v2301 = vmul.f32 %v2299, %v2285
    %v2302 = vadd.f32 %v2268, %v2300
    %v2303 = vadd.f32 %v2269, %v2301
    %s2304 = sld [smem:[#allocation9 + $0x5b]]
    %v2305 = vstv %s2304
    %v2306 = vmul.f32 %v2305, %v2284
    %v2307 = vmul.f32 %v2305, %v2285
    %v2308 = vadd.f32 %v2274, %v2306
    %v2309 = vadd.f32 %v2275, %v2307
    %2310 = vrot.lane.b32.xlu0 %v1512, 113
    %v2311 = vpop.permute.xlu0 %2310
    %2312 = vrot.lane.b32.xlu0 %v1513, 113
    %v2313 = vpop.permute.xlu0 %2312
    %v2314 = vsel %vm382, %v2311, %v2313
    %v2317 = vsel %vm382, %v2313, 0.0
    %v2318 = vsel %vm144, %v2314, 0.0
    %v2319 = vsel %vm145, %v2317, 0.0
    %s2320 = sld [smem:[#allocation9 + $0x68]]
    %v2321 = vstv %s2320
    %v2322 = vmul.f32 %v2321, %v2318
    %v2323 = vmul.f32 %v2321, %v2319
    %v2324 = vadd.f32 %v2290, %v2322
    %v2325 = vadd.f32 %v2291, %v2323
    %s2326 = sld [smem:[#allocation9 + $0x69]]
    %v2327 = vstv %s2326
    %v2328 = vmul.f32 %v2327, %v2318
    %v2329 = vmul.f32 %v2327, %v2319
    %v2330 = vadd.f32 %v2296, %v2328
    %v2331 = vadd.f32 %v2297, %v2329
    %s2332 = sld [smem:[#allocation9 + $0x6a]]
    %v2333 = vstv %s2332
    %v2334 = vmul.f32 %v2333, %v2318
    %v2335 = vmul.f32 %v2333, %v2319
    %v2336 = vadd.f32 %v2302, %v2334
    %v2337 = vadd.f32 %v2303, %v2335
    %s2338 = sld [smem:[#allocation9 + $0x6b]]
    %v2339 = vstv %s2338
    %v2340 = vmul.f32 %v2339, %v2318
    %v2341 = vmul.f32 %v2339, %v2319
    %v2342 = vadd.f32 %v2308, %v2340
    %v2343 = vadd.f32 %v2309, %v2341
    %2344 = vrot.lane.b32.xlu0 %v1512, 112
    %v2345 = vpop.permute.xlu0 %2344
    %2346 = vrot.lane.b32.xlu0 %v1513, 112
    %v2347 = vpop.permute.xlu0 %2346
    %v2348 = vsel %vm417, %v2345, %v2347
    %v2351 = vsel %vm417, %v2347, 0.0
    %s2352 = sld [smem:[#allocation9 + $0x78]]
    %v2353 = vstv %s2352
    %v2354 = vmul.f32 %v2353, %v2348
    %v2355 = vmul.f32 %v2353, %v2351
    %v2356 = vadd.f32 %v2324, %v2354
    %v2357 = vadd.f32 %v2325, %v2355
    %s2358 = sld [smem:[#allocation9 + $0x79]]
    %v2359 = vstv %s2358
    %v2360 = vmul.f32 %v2359, %v2348
    %v2361 = vmul.f32 %v2359, %v2351
    %v2362 = vadd.f32 %v2330, %v2360
    %v2363 = vadd.f32 %v2331, %v2361
    %s2364 = sld [smem:[#allocation9 + $0x7a]]
    %v2365 = vstv %s2364
    %v2366 = vmul.f32 %v2365, %v2348
    %v2367 = vmul.f32 %v2365, %v2351
    %v2368 = vadd.f32 %v2336, %v2366
    %v2369 = vadd.f32 %v2337, %v2367
    %s2370 = sld [smem:[#allocation9 + $0x7b]]
    %v2371 = vstv %s2370
    %v2372 = vmul.f32 %v2371, %v2348
    %v2373 = vmul.f32 %v2371, %v2351
    %v2374 = vadd.f32 %v2342, %v2372
    %v2375 = vadd.f32 %v2343, %v2373
    %2376 = vrot.lane.b32.xlu0 %v1512, 111
    %v2377 = vpop.permute.xlu0 %2376
    %2378 = vrot.lane.b32.xlu0 %v1513, 111
    %v2379 = vpop.permute.xlu0 %2378
    %v2380 = vsel %vm450, %v2377, %v2379
    %v2383 = vsel %vm450, %v2379, 0.0
    %v2384 = vsel %vm216, %v2380, 0.0
    %v2385 = vsel %vm217, %v2383, 0.0
    %s2386 = sld [smem:[#allocation9 + $0x88]]
    %v2387 = vstv %s2386
    %v2388 = vmul.f32 %v2387, %v2384
    %v2389 = vmul.f32 %v2387, %v2385
    %v2390 = vadd.f32 %v2356, %v2388
    %v2391 = vadd.f32 %v2357, %v2389
    %s2392 = sld [smem:[#allocation9 + $0x89]]
    %v2393 = vstv %s2392
    %v2394 = vmul.f32 %v2393, %v2384
    %v2395 = vmul.f32 %v2393, %v2385
    %v2396 = vadd.f32 %v2362, %v2394
    %v2397 = vadd.f32 %v2363, %v2395
    %s2398 = sld [smem:[#allocation9 + $0x8a]]
    %v2399 = vstv %s2398
    %v2400 = vmul.f32 %v2399, %v2384
    %v2401 = vmul.f32 %v2399, %v2385
    %v2402 = vadd.f32 %v2368, %v2400
    %v2403 = vadd.f32 %v2369, %v2401
    %s2404 = sld [smem:[#allocation9 + $0x8b]]
    %v2405 = vstv %s2404
    %v2406 = vmul.f32 %v2405, %v2384
    %v2407 = vmul.f32 %v2405, %v2385
    %v2408 = vadd.f32 %v2374, %v2406
    %v2409 = vadd.f32 %v2375, %v2407
    %2412 = vrot.lane.b32.xlu0 %v1514, 17
    %v2413 = vpop.permute.xlu0 %2412
    %2414 = vrot.lane.b32.xlu0 %v1515, 17
    %v2415 = vpop.permute.xlu0 %2414
    %v2416 = vsel %vm137, %v2413, %v2415
    %v2419 = vsel %vm137, 0.0, %v2413
    %v2420 = vsel %vm144, %v2419, 0.0
    %v2421 = vsel %vm145, %v2416, 0.0
    %s2422 = sld [smem:[#allocation9 + $0xc]]
    %v2423 = vstv %s2422
    %v2424 = vmul.f32 %v2423, %v2420
    %v2425 = vmul.f32 %v2423, %v2421
    %v2426 = vadd.f32 %v2390, %v2424
    %v2427 = vadd.f32 %v2391, %v2425
    %s2428 = sld [smem:[#allocation9 + $0xd]]
    %v2429 = vstv %s2428
    %v2430 = vmul.f32 %v2429, %v2420
    %v2431 = vmul.f32 %v2429, %v2421
    %v2432 = vadd.f32 %v2396, %v2430
    %v2433 = vadd.f32 %v2397, %v2431
    %s2434 = sld [smem:[#allocation9 + $0xe]]
    %v2435 = vstv %s2434
    %v2436 = vmul.f32 %v2435, %v2420
    %v2437 = vmul.f32 %v2435, %v2421
    %v2438 = vadd.f32 %v2402, %v2436
    %v2439 = vadd.f32 %v2403, %v2437
    %s2440 = sld [smem:[#allocation9 + $0xf]]
    %v2441 = vstv %s2440
    %v2442 = vmul.f32 %v2441, %v2420
    %v2443 = vmul.f32 %v2441, %v2421
    %v2444 = vadd.f32 %v2408, %v2442
    %v2445 = vadd.f32 %v2409, %v2443
    %2446 = vrot.lane.b32.xlu0 %v1514, 16
    %v2447 = vpop.permute.xlu0 %2446
    %2448 = vrot.lane.b32.xlu0 %v1515, 16
    %v2449 = vpop.permute.xlu0 %2448
    %v2450 = vsel %vm176, %v2447, %v2449
    %v2453 = vsel %vm176, 0.0, %v2447
    %s2454 = sld [smem:[#allocation9 + $0x1c]]
    %v2455 = vstv %s2454
    %v2456 = vmul.f32 %v2455, %v2453
    %v2457 = vmul.f32 %v2455, %v2450
    %v2458 = vadd.f32 %v2426, %v2456
    %v2459 = vadd.f32 %v2427, %v2457
    %s2460 = sld [smem:[#allocation9 + $0x1d]]
    %v2461 = vstv %s2460
    %v2462 = vmul.f32 %v2461, %v2453
    %v2463 = vmul.f32 %v2461, %v2450
    %v2464 = vadd.f32 %v2432, %v2462
    %v2465 = vadd.f32 %v2433, %v2463
    %s2466 = sld [smem:[#allocation9 + $0x1e]]
    %v2467 = vstv %s2466
    %v2468 = vmul.f32 %v2467, %v2453
    %v2469 = vmul.f32 %v2467, %v2450
    %v2470 = vadd.f32 %v2438, %v2468
    %v2471 = vadd.f32 %v2439, %v2469
    %s2472 = sld [smem:[#allocation9 + $0x1f]]
    %v2473 = vstv %s2472
    %v2474 = vmul.f32 %v2473, %v2453
    %v2475 = vmul.f32 %v2473, %v2450
    %v2476 = vadd.f32 %v2444, %v2474
    %v2477 = vadd.f32 %v2445, %v2475
    %2478 = vrot.lane.b32.xlu0 %v1514, 15
    %v2479 = vpop.permute.xlu0 %2478
    %2480 = vrot.lane.b32.xlu0 %v1515, 15
    %v2481 = vpop.permute.xlu0 %2480
    %v2482 = vsel %vm209, %v2479, %v2481
    %v2485 = vsel %vm209, 0.0, %v2479
    %v2486 = vsel %vm216, %v2485, 0.0
    %v2487 = vsel %vm217, %v2482, 0.0
    %s2488 = sld [smem:[#allocation9 + $0x2c]]
    %v2489 = vstv %s2488
    %v2490 = vmul.f32 %v2489, %v2486
    %v2491 = vmul.f32 %v2489, %v2487
    %v2492 = vadd.f32 %v2458, %v2490
    %v2493 = vadd.f32 %v2459, %v2491
    %s2494 = sld [smem:[#allocation9 + $0x2d]]
    %v2495 = vstv %s2494
    %v2496 = vmul.f32 %v2495, %v2486
    %v2497 = vmul.f32 %v2495, %v2487
    %v2498 = vadd.f32 %v2464, %v2496
    %v2499 = vadd.f32 %v2465, %v2497
    %s2500 = sld [smem:[#allocation9 + $0x2e]]
    %v2501 = vstv %s2500
    %v2502 = vmul.f32 %v2501, %v2486
    %v2503 = vmul.f32 %v2501, %v2487
    %v2504 = vadd.f32 %v2470, %v2502
    %v2505 = vadd.f32 %v2471, %v2503
    %s2506 = sld [smem:[#allocation9 + $0x2f]]
    %v2507 = vstv %s2506
    %v2508 = vmul.f32 %v2507, %v2486
    %v2509 = vmul.f32 %v2507, %v2487
    %v2510 = vadd.f32 %v2476, %v2508
    %v2511 = vadd.f32 %v2477, %v2509
    %2512 = vrot.lane.b32.xlu0 %v1514, 1
    %v2513 = vpop.permute.xlu0 %2512
    %2514 = vrot.lane.b32.xlu0 %v1515, 1
    %v2515 = vpop.permute.xlu0 %2514
    %v2516 = vsel %vm248, %v2513, %v2515
    %v2519 = vsel %vm248, 0.0, %v2513
    %v2520 = vsel %vm144, %v2519, 0.0
    %v2521 = vsel %vm145, %v2516, 0.0
    %s2522 = sld [smem:[#allocation9 + $0x3c]]
    %v2523 = vstv %s2522
    %v2524 = vmul.f32 %v2523, %v2520
    %v2525 = vmul.f32 %v2523, %v2521
    %v2526 = vadd.f32 %v2492, %v2524
    %v2527 = vadd.f32 %v2493, %v2525
    %s2528 = sld [smem:[#allocation9 + $0x3d]]
    %v2529 = vstv %s2528
    %v2530 = vmul.f32 %v2529, %v2520
    %v2531 = vmul.f32 %v2529, %v2521
    %v2532 = vadd.f32 %v2498, %v2530
    %v2533 = vadd.f32 %v2499, %v2531
    %s2534 = sld [smem:[#allocation9 + $0x3e]]
    %v2535 = vstv %s2534
    %v2536 = vmul.f32 %v2535, %v2520
    %v2537 = vmul.f32 %v2535, %v2521
    %v2538 = vadd.f32 %v2504, %v2536
    %v2539 = vadd.f32 %v2505, %v2537
    %s2540 = sld [smem:[#allocation9 + $0x3f]]
    %v2541 = vstv %s2540
    %v2542 = vmul.f32 %v2541, %v2520
    %v2543 = vmul.f32 %v2541, %v2521
    %v2544 = vadd.f32 %v2510, %v2542
    %v2545 = vadd.f32 %v2511, %v2543
    %s2546 = sld [smem:[#allocation9 + $0x4c]]
    %v2547 = vstv %s2546
    %v2548 = vmul.f32 %v2547, %v1514
    %v2549 = vmul.f32 %v2547, %v1515
    %v2550 = vadd.f32 %v2526, %v2548
    %v2551 = vadd.f32 %v2527, %v2549
    %s2552 = sld [smem:[#allocation9 + $0x4d]]
    %v2553 = vstv %s2552
    %v2554 = vmul.f32 %v2553, %v1514
    %v2555 = vmul.f32 %v2553, %v1515
    %v2556 = vadd.f32 %v2532, %v2554
    %v2557 = vadd.f32 %v2533, %v2555
    %s2558 = sld [smem:[#allocation9 + $0x4e]]
    %v2559 = vstv %s2558
    %v2560 = vmul.f32 %v2559, %v1514
    %v2561 = vmul.f32 %v2559, %v1515
    %v2562 = vadd.f32 %v2538, %v2560
    %v2563 = vadd.f32 %v2539, %v2561
    %s2564 = sld [smem:[#allocation9 + $0x4f]]
    %v2565 = vstv %s2564
    %v2566 = vmul.f32 %v2565, %v1514
    %v2567 = vmul.f32 %v2565, %v1515
    %v2568 = vadd.f32 %v2544, %v2566
    %v2569 = vadd.f32 %v2545, %v2567
    %2570 = vrot.lane.b32.xlu0 %v1514, 127
    %v2571 = vpop.permute.xlu0 %2570
    %2572 = vrot.lane.b32.xlu0 %v1515, 127
    %v2573 = vpop.permute.xlu0 %2572
    %v2574 = vsel %vm347, %v2571, %v2573
    %v2577 = vsel %vm347, %v2573, 0.0
    %v2578 = vsel %vm216, %v2574, 0.0
    %v2579 = vsel %vm217, %v2577, 0.0
    %s2580 = sld [smem:[#allocation9 + $0x5c]]
    %v2581 = vstv %s2580
    %v2582 = vmul.f32 %v2581, %v2578
    %v2583 = vmul.f32 %v2581, %v2579
    %v2584 = vadd.f32 %v2550, %v2582
    %v2585 = vadd.f32 %v2551, %v2583
    %s2586 = sld [smem:[#allocation9 + $0x5d]]
    %v2587 = vstv %s2586
    %v2588 = vmul.f32 %v2587, %v2578
    %v2589 = vmul.f32 %v2587, %v2579
    %v2590 = vadd.f32 %v2556, %v2588
    %v2591 = vadd.f32 %v2557, %v2589
    %s2592 = sld [smem:[#allocation9 + $0x5e]]
    %v2593 = vstv %s2592
    %v2594 = vmul.f32 %v2593, %v2578
    %v2595 = vmul.f32 %v2593, %v2579
    %v2596 = vadd.f32 %v2562, %v2594
    %v2597 = vadd.f32 %v2563, %v2595
    %s2598 = sld [smem:[#allocation9 + $0x5f]]
    %v2599 = vstv %s2598
    %v2600 = vmul.f32 %v2599, %v2578
    %v2601 = vmul.f32 %v2599, %v2579
    %v2602 = vadd.f32 %v2568, %v2600
    %v2603 = vadd.f32 %v2569, %v2601
    %2604 = vrot.lane.b32.xlu0 %v1514, 113
    %v2605 = vpop.permute.xlu0 %2604
    %2606 = vrot.lane.b32.xlu0 %v1515, 113
    %v2607 = vpop.permute.xlu0 %2606
    %v2608 = vsel %vm382, %v2605, %v2607
    %v2611 = vsel %vm382, %v2607, 0.0
    %v2612 = vsel %vm144, %v2608, 0.0
    %v2613 = vsel %vm145, %v2611, 0.0
    %s2614 = sld [smem:[#allocation9 + $0x6c]]
    %v2615 = vstv %s2614
    %v2616 = vmul.f32 %v2615, %v2612
    %v2617 = vmul.f32 %v2615, %v2613
    %v2618 = vadd.f32 %v2584, %v2616
    %v2619 = vadd.f32 %v2585, %v2617
    %s2620 = sld [smem:[#allocation9 + $0x6d]]
    %v2621 = vstv %s2620
    %v2622 = vmul.f32 %v2621, %v2612
    %v2623 = vmul.f32 %v2621, %v2613
    %v2624 = vadd.f32 %v2590, %v2622
    %v2625 = vadd.f32 %v2591, %v2623
    %s2626 = sld [smem:[#allocation9 + $0x6e]]
    %v2627 = vstv %s2626
    %v2628 = vmul.f32 %v2627, %v2612
    %v2629 = vmul.f32 %v2627, %v2613
    %v2630 = vadd.f32 %v2596, %v2628
    %v2631 = vadd.f32 %v2597, %v2629
    %s2632 = sld [smem:[#allocation9 + $0x6f]]
    %v2633 = vstv %s2632
    %v2634 = vmul.f32 %v2633, %v2612
    %v2635 = vmul.f32 %v2633, %v2613
    %v2636 = vadd.f32 %v2602, %v2634
    %v2637 = vadd.f32 %v2603, %v2635
    %2638 = vrot.lane.b32.xlu0 %v1514, 112
    %v2639 = vpop.permute.xlu0 %2638
    %2640 = vrot.lane.b32.xlu0 %v1515, 112
    %v2641 = vpop.permute.xlu0 %2640
    %v2642 = vsel %vm417, %v2639, %v2641
    %v2645 = vsel %vm417, %v2641, 0.0
    %s2646 = sld [smem:[#allocation9 + $0x7c]]
    %v2647 = vstv %s2646
    %v2648 = vmul.f32 %v2647, %v2642
    %v2649 = vmul.f32 %v2647, %v2645
    %v2650 = vadd.f32 %v2618, %v2648
    %v2651 = vadd.f32 %v2619, %v2649
    %s2652 = sld [smem:[#allocation9 + $0x7d]]
    %v2653 = vstv %s2652
    %v2654 = vmul.f32 %v2653, %v2642
    %v2655 = vmul.f32 %v2653, %v2645
    %v2656 = vadd.f32 %v2624, %v2654
    %v2657 = vadd.f32 %v2625, %v2655
    %s2658 = sld [smem:[#allocation9 + $0x7e]]
    %v2659 = vstv %s2658
    %v2660 = vmul.f32 %v2659, %v2642
    %v2661 = vmul.f32 %v2659, %v2645
    %v2662 = vadd.f32 %v2630, %v2660
    %v2663 = vadd.f32 %v2631, %v2661
    %s2664 = sld [smem:[#allocation9 + $0x7f]]
    %v2665 = vstv %s2664
    %v2666 = vmul.f32 %v2665, %v2642
    %v2667 = vmul.f32 %v2665, %v2645
    %v2668 = vadd.f32 %v2636, %v2666
    %v2669 = vadd.f32 %v2637, %v2667
    %2670 = vrot.lane.b32.xlu0 %v1514, 111
    %v2671 = vpop.permute.xlu0 %2670
    %2672 = vrot.lane.b32.xlu0 %v1515, 111
    %v2673 = vpop.permute.xlu0 %2672
    %v2674 = vsel %vm450, %v2671, %v2673
    %v2677 = vsel %vm450, %v2673, 0.0
    %v2678 = vsel %vm216, %v2674, 0.0
    %v2679 = vsel %vm217, %v2677, 0.0
    %s2680 = sld [smem:[#allocation9 + $0x8c]]
    %v2681 = vstv %s2680
    %v2682 = vmul.f32 %v2681, %v2678
    %v2683 = vmul.f32 %v2681, %v2679
    %v2684 = vadd.f32 %v2650, %v2682
    %v2685 = vadd.f32 %v2651, %v2683
    %s2686 = sld [smem:[#allocation9 + $0x8d]]
    %v2687 = vstv %s2686
    %v2688 = vmul.f32 %v2687, %v2678
    %v2689 = vmul.f32 %v2687, %v2679
    %v2690 = vadd.f32 %v2656, %v2688
    %v2691 = vadd.f32 %v2657, %v2689
    %s2692 = sld [smem:[#allocation9 + $0x8e]]
    %v2693 = vstv %s2692
    %v2694 = vmul.f32 %v2693, %v2678
    %v2695 = vmul.f32 %v2693, %v2679
    %v2696 = vadd.f32 %v2662, %v2694
    %v2697 = vadd.f32 %v2663, %v2695
    %s2698 = sld [smem:[#allocation9 + $0x8f]]
    %v2699 = vstv %s2698
    %v2700 = vmul.f32 %v2699, %v2678
    %v2701 = vmul.f32 %v2699, %v2679
    %v2702 = vadd.f32 %v2668, %v2700
    %v2703 = vadd.f32 %v2669, %v2701
    %v2706 = vadd.f32 %v2684, %v131
    %v2707 = vadd.f32 %v2685, %v132
    %v2708 = vmax.f32 %v2706, 0.0
    %v2709 = vmax.f32 %v2707, 0.0
    %v2712 = vcombine.low %v2708, %v2709
    %v2714 = vunpack.c.l.s4 1983009808
    %v2715 = vunpack.c.0.s8 %v2714
    %v2716 = vlaneseq
    %v2717 = vshrl.u32 %v2716, 7
    %v2718 = vsub.s32 %v2715, %v2717
    %v2719 = vrot.slane %v2712, %v2718
    %2721 = vst [vmem:[#allocation12] sm:$0xf] %v2719
    %v2724 = vadd.f32 %v2690, %v488
    %v2725 = vadd.f32 %v2691, %v489
    %v2726 = vmax.f32 %v2724, 0.0
    %v2727 = vmax.f32 %v2725, 0.0
    %v2730 = vcombine.low %v2726, %v2727
    %v2732 = vunpack.c.l.s4 1983009808
    %v2733 = vunpack.c.0.s8 %v2732
    %v2734 = vlaneseq
    %v2735 = vshrl.u32 %v2734, 7
    %v2736 = vsub.s32 %v2733, %v2735
    %v2737 = vrot.slane %v2730, %v2736
    %2739 = vst [vmem:[#allocation12 + $0x4] sm:$0xf] %v2737
    %v2742 = vadd.f32 %v2696, %v831
    %v2743 = vadd.f32 %v2697, %v832
    %v2744 = vmax.f32 %v2742, 0.0
    %v2745 = vmax.f32 %v2743, 0.0
    %v2748 = vcombine.low %v2744, %v2745
    %v2750 = vunpack.c.l.s4 1983009808
    %v2751 = vunpack.c.0.s8 %v2750
    %v2752 = vlaneseq
    %v2753 = vshrl.u32 %v2752, 7
    %v2754 = vsub.s32 %v2751, %v2753
    %v2755 = vrot.slane %v2748, %v2754
    %2757 = vst [vmem:[#allocation12 + $0x8] sm:$0xf] %v2755
    %v2760 = vadd.f32 %v2702, %v1172
    %v2761 = vadd.f32 %v2703, %v1173
    %v2762 = vmax.f32 %v2760, 0.0
    %v2763 = vmax.f32 %v2761, 0.0
    %v2766 = vcombine.low %v2762, %v2763
    %v2768 = vunpack.c.l.s4 1983009808
    %v2769 = vunpack.c.0.s8 %v2768
    %v2770 = vlaneseq
    %v2771 = vshrl.u32 %v2770, 7
    %v2772 = vsub.s32 %v2769, %v2771
    %v2773 = vrot.slane %v2766, %v2772
    %2775 = vst [vmem:[#allocation12 + $0xc] sm:$0xf] %v2773
    // Predicated region
    $region42: #{tpu_custom_call.1} parent=1 // pred_check
      _
    $region43: #{tpu_custom_call.1} parent=1 // pred_check_branch
      %2777 = sbr.rel (0) target = $region45
    $region44: #{tpu_custom_call.1} parent=1 // pred_region
      %s2779 = ssub.s32 256, 256
      %2780 = vsyncadd [#allocation4], %s2779
      %s2782 = sshll.u32 [#allocation12], 4
      %s2783 = int_to_ptr.vmem [resolvable:$true] %s2782
      %2785 = dma.vmem_to_hbm [thread:$0]  %s2783, 256, %s5, [#allocation4]
    $region45: #{tpu_custom_call.1} parent=1 // pred_fallthru
      _
    // Predicated region
    $region46: #{tpu_custom_call.1} parent=1 // pred_check
      _
    $region47: #{tpu_custom_call.1} parent=1 // pred_check_branch
      %2787 = sbr.rel (0) target = $region49
    $region48: #{tpu_custom_call.1} parent=1 // pred_region
      %2788 = dma.done [#allocation4], 256
    $region49: #{tpu_custom_call.1} parent=1 // pred_fallthru
      _
    %2789 = vsyncpa [#allocation3], 1
    %2790 = vsyncpa [#allocation4], 1
    %2791 = vsyncpa [#allocation5], 1
    %2792 = vsyncpa [#allocation6], 1
    %2793 = vsyncpa [#allocation10], 1

</llo_original>
